<compile_context>
chip_gen: v7x
topology: tpu7x:2x2x1
jax: 0.10.0
libtpu: 0.0.40
codegen_flags: <defaults>
</compile_context>

<pallas_src>
import functools

import jax
import jax.numpy as jnp
import numpy as np
from jax.experimental import pallas as pl
from jax.experimental.pallas import tpu as pltpu


def _hardswish(x):
    # x * hardtanh(x + 3, 0, 6) / 6
    return x * jnp.clip(x + 3.0, 0.0, 6.0) * (1.0 / 6.0)


def _round_up(v, m):
    return (v + m - 1) // m * m


def _bottleneck_kernel(x_ref, w1_ref, b1_ref, w2_ref, b2_ref, o_ref, pad_ref,
                       *, add):
    _, H, W, C1 = x_ref.shape
    Cmp = w1_ref.shape[1]          # padded hidden channels (multiple of 128)
    C2 = w2_ref.shape[2]
    HW = H * W
    cdt = pad_ref.dtype            # MXU compute dtype (bf16 or f32)

    # Zero only the two 1-pixel dy-halo rows (interior rows are fully
    # overwritten below).  Done every step rather than under
    # pl.when(program_id == 0) so the kernel stays correct when the
    # "parallel" batch axis is sharded across TensorCores (each core owns its
    # own scratch); the cost is 2 rows per image, not the whole buffer.
    halo = jnp.zeros((1, W, 3 * Cmp), cdt)
    pad_ref[0:1] = halo
    pad_ref[H + 1:H + 2] = halo

    # ---- cv1: 1x1 conv == one (H*W, C1) @ (C1, Cmp) MXU matmul -------------
    x2 = x_ref[0].reshape(HW, C1).astype(cdt)
    y1 = jnp.dot(x2, w1_ref[...], preferred_element_type=jnp.float32)
    y1 = _hardswish(y1 + b1_ref[...])          # BN scale folded into w1

    # ---- dx = -1/+1 taps: flat-row shift + boundary mask --------------------
    # Row index of y1 is h*W + w, so the pixel to the left/right of (h, w) is
    # the previous/next flat row.  jnp.roll with a static shift lowers to a
    # concatenate of two static slices (sublane axis); the circular wrap
    # (row (h-1, W-1) -> (h, 0) and vice versa) is exactly the set of rows the
    # boundary mask forces to zero, so the wraparound never leaks through.
    wcol = jax.lax.broadcasted_iota(jnp.int32, (HW, Cmp), 0) % W
    left = jnp.where(wcol == 0, 0.0, jnp.roll(y1, 1, axis=0))
    right = jnp.where(wcol == W - 1, 0.0, jnp.roll(y1, -1, axis=0))

    # Interior rows of the dy-padded scratch; lane blocks are 128-aligned.
    pad_ref[1:H + 1, :, 0 * Cmp:1 * Cmp] = left.reshape(H, W, Cmp).astype(cdt)
    pad_ref[1:H + 1, :, 1 * Cmp:2 * Cmp] = y1.reshape(H, W, Cmp).astype(cdt)
    pad_ref[1:H + 1, :, 2 * Cmp:3 * Cmp] = right.reshape(H, W, Cmp).astype(cdt)

    # ---- cv2: 3x3 conv == 3 fat matmuls (K = 3*Cmp); dy shifts are free
    # leading-axis offsets into the scratch; no zero-init of the accumulator.
    acc = None
    for dy in range(3):
        patch = pad_ref[dy:dy + H].reshape(HW, 3 * Cmp)
        part = jnp.dot(patch, w2_ref[dy], preferred_element_type=jnp.float32)
        acc = part if acc is None else acc + part
    y2 = _hardswish(acc + b2_ref[...])         # BN scale folded into w2

    if add:
        # Reload x (already resident in VMEM) only where it is needed,
        # keeping its live range short.
        y2 = y2 + x_ref[0].reshape(HW, C1).astype(jnp.float32)
    o_ref[0] = y2.reshape(H, W, C2).astype(o_ref.dtype)


def bottleneck_pallas(x, params, *, shortcut=True,
                      compute_dtype=jnp.bfloat16, lane_multiple=128):
    """x: (N, H, W, C1) NHWC float32.  params from make_params (natural shapes)."""
    w1, s1, b1, w2, s2, b2 = params
    N, H, W, C1 = x.shape
    Cm = w1.shape[1]
    C2 = w2.shape[2]
    add = shortcut and (C1 == C2)
    Cmp = _round_up(Cm, lane_multiple)

    # Fold BN scale into the conv weights, pad the (kernel-internal) hidden
    # channel dim to a lane-dense multiple of 128 and pre-cast MXU operands.
    w1f = jnp.zeros((C1, Cmp), jnp.float32).at[:, :Cm].set(w1 * s1[None, :])
    w1f = w1f.astype(compute_dtype)
    b1p = jnp.zeros((1, Cmp), jnp.float32).at[0, :Cm].set(b1)

    # w2f[dy, dx*Cmp : dx*Cmp+Cm, :] = w2[dy*3+dx] * s2  (im2col weight layout)
    w2f = jnp.zeros((3, 3 * Cmp, C2), jnp.float32)
    for dy in range(3):
        for dx in range(3):
            w2f = w2f.at[dy, dx * Cmp:dx * Cmp + Cm, :].set(
                w2[dy * 3 + dx] * s2[None, :])
    w2f = w2f.astype(compute_dtype)
    b2p = b2.reshape(1, C2).astype(jnp.float32)

    # VMEM budget: double-buffered I/O tiles + weights + pad scratch.
    itemsize = jnp.dtype(compute_dtype).itemsize
    scratch_bytes = (H + 2) * W * 3 * Cmp * itemsize
    io_bytes = 2 * H * W * (C1 + C2) * x.dtype.itemsize
    w_bytes = (C1 * Cmp + 3 * 3 * Cmp * C2) * itemsize + (Cmp + C2) * 4
    vmem_limit = int(min(max(2 * (scratch_bytes + io_bytes + w_bytes)
                             + (8 << 20), 32 << 20), 64 << 20))

    kernel = functools.partial(_bottleneck_kernel, add=add)
    # TODO(synk): add a halo-aware H-tile grid axis for large feature maps so a
    # tile (not the full image) bounds VMEM on v7x (64 MiB) and both of its
    # TensorCores get work even at small batch.
    return pl.pallas_call(
        kernel,
        out_shape=jax.ShapeDtypeStruct((N, H, W, C2), x.dtype),
        grid_spec=pltpu.PrefetchScalarGridSpec(
            num_scalar_prefetch=0,
            grid=(N,),
            in_specs=[
                pl.BlockSpec((1, H, W, C1), lambda n: (n, 0, 0, 0)),
                pl.BlockSpec((C1, Cmp), lambda n: (0, 0)),
                pl.BlockSpec((1, Cmp), lambda n: (0, 0)),
                pl.BlockSpec((3, 3 * Cmp, C2), lambda n: (0, 0, 0)),
                pl.BlockSpec((1, C2), lambda n: (0, 0)),
            ],
            out_specs=pl.BlockSpec((1, H, W, C2), lambda n: (n, 0, 0, 0)),
            scratch_shapes=[pltpu.VMEM((H + 2, W, 3 * Cmp), compute_dtype)],
        ),
        compiler_params=pltpu.CompilerParams(
            dimension_semantics=("parallel",),
            vmem_limit_bytes=vmem_limit),
    )(x, w1f, b1p, w2f, b2p)


def bottleneck_reference(x, params, *, shortcut=True):
    """Pure-JAX reference (NHWC, f32)."""
    w1, s1, b1, w2, s2, b2 = params
    N, H, W, C1 = x.shape
    C2 = w2.shape[2]
    y1 = _hardswish(jnp.einsum('nhwc,cd->nhwd', x, w1) * s1 + b1)
    yp = jnp.pad(y1, ((0, 0), (1, 1), (1, 1), (0, 0)))
    acc = jnp.zeros((N, H, W, C2), jnp.float32)
    for k in range(9):
        dy, dx = k // 3, k % 3
        acc = acc + jnp.einsum('nhwc,cd->nhwd',
                               yp[:, dy:dy + H, dx:dx + W, :], w2[k])
    y2 = _hardswish(acc * s2 + b2)
    return x + y2 if (shortcut and C1 == C2) else y2


def make_params(key, c1, c2, e=0.5):
    """Deterministic synthetic weights; BN folded to scale/bias (eval mode)."""
    c_ = int(c2 * e)
    ks = jax.random.split(key, 10)
    eps = 1e-5
    # cv1: PyTorch weight (c_, c1, 1, 1) stored transposed as (c1, c_)
    w1 = jax.random.normal(ks[0], (c1, c_), jnp.float32) * 0.3
    g1 = 1.0 + 0.1 * jax.random.normal(ks[1], (c_,), jnp.float32)
    be1 = 0.1 * jax.random.normal(ks[2], (c_,), jnp.float32)
    mu1 = 0.1 * jax.random.normal(ks[3], (c_,), jnp.float32)
    var1 = jnp.abs(jax.random.normal(ks[4], (c_,), jnp.float32)) + 0.5
    s1 = g1 / jnp.sqrt(var1 + eps)
    b1 = be1 - mu1 * s1
    # cv2: PyTorch weight (c2, c_, 3, 3) stored as (9, c_, c2), k = dy*3+dx
    w2 = jax.random.normal(ks[5], (9, c_, c2), jnp.float32) * 0.3
    g2 = 1.0 + 0.1 * jax.random.normal(ks[6], (c2,), jnp.float32)
    be2 = 0.1 * jax.random.normal(ks[7], (c2,), jnp.float32)
    mu2 = 0.1 * jax.random.normal(ks[8], (c2,), jnp.float32)
    var2 = jnp.abs(jax.random.normal(ks[9], (c2,), jnp.float32)) + 0.5
    s2 = g2 / jnp.sqrt(var2 + eps)
    b2 = be2 - mu2 * s2
    return w1, s1, b1, w2, s2, b2


if __name__ == "__main__":
    key = jax.random.PRNGKey(0)
    kx, kp = jax.random.split(key)

    N, H, W, C = 2, 16, 16, 4          # c1 == c2 == 4 -> shortcut active
    x = jax.random.normal(kx, (N, H, W, C), jnp.float32)
    params = make_params(kp, C, C, e=0.5)

    ref = bottleneck_reference(x, params, shortcut=True)

    # Default path: bf16 MXU operands, f32 accumulation / elementwise.
    out_bf16 = jax.block_until_ready(bottleneck_pallas(x, params, shortcut=True))
    np.testing.assert_allclose(np.asarray(out_bf16), np.asarray(ref),
                               rtol=5e-2, atol=5e-2)

    # f32-compute path for a tighter numerical check of the same structure.
    out_f32 = jax.block_until_ready(
        bottleneck_pallas(x, params, shortcut=True, compute_dtype=jnp.float32))
    np.testing.assert_allclose(np.asarray(out_f32), np.asarray(ref),
                               rtol=2e-2, atol=2e-2)

    print("KERNEL_OK")
</pallas_src>

<mosaic_0001>
module attributes {stable_mosaic.version = 11 : i64} {
  func.func @_bottleneck_kernel(%arg0: i32, %arg1: memref<1x16x16x4xf32, #tpu.memory_space<vmem>>, %arg2: memref<4x128xbf16, #tpu.memory_space<vmem>>, %arg3: memref<1x128xf32, #tpu.memory_space<vmem>>, %arg4: memref<3x384x4xbf16, #tpu.memory_space<vmem>>, %arg5: memref<1x4xf32, #tpu.memory_space<vmem>>, %arg6: memref<1x16x16x4xf32, #tpu.memory_space<vmem>>, %arg7: memref<18x16x384xbf16, #tpu.memory_space<vmem>>) attributes {dimension_semantics = [#tpu.dimension_semantics<parallel>], iteration_bounds = array<i64: 2>, scalar_prefetch = 0 : i64, scratch_operands = 1 : i64, tpu.core_type = #tpu.core_type<tc>, window_params = [{transform_indices = @transform_0, window_bounds = array<i64: 1, 16, 16, 4>}, {pipeline_mode = #tpu.pipeline_mode<synchronous>, transform_indices = @transform_1, window_bounds = array<i64: 4, 128>}, {pipeline_mode = #tpu.pipeline_mode<synchronous>, transform_indices = @transform_2, window_bounds = array<i64: 1, 128>}, {pipeline_mode = #tpu.pipeline_mode<synchronous>, transform_indices = @transform_3, window_bounds = array<i64: 3, 384, 4>}, {pipeline_mode = #tpu.pipeline_mode<synchronous>, transform_indices = @transform_4, window_bounds = array<i64: 1, 4>}, {transform_indices = @transform_5, window_bounds = array<i64: 1, 16, 16, 4>}]} {
    %cst = arith.constant 0.000000e+00 : bf16
    %0 = vector.broadcast %cst : bf16 to vector<1x16x384xbf16>
    %c0 = arith.constant 0 : index
    %c0_0 = arith.constant 0 : index
    %c0_1 = arith.constant 0 : index
    %1 = vector.load %arg7[%c0, %c0_0, %c0_1] : memref<18x16x384xbf16, #tpu.memory_space<vmem>>, vector<1x16x384xbf16>
    tpu.vector_store %arg7[%c0, %c0_0, %c0_1], %0 {strides = array<i32>} : memref<18x16x384xbf16, #tpu.memory_space<vmem>>, vector<1x16x384xbf16>,
    %c17 = arith.constant 17 : index
    %c0_2 = arith.constant 0 : index
    %c0_3 = arith.constant 0 : index
    %2 = vector.load %arg7[%c17, %c0_2, %c0_3] : memref<18x16x384xbf16, #tpu.memory_space<vmem>>, vector<1x16x384xbf16>
    tpu.vector_store %arg7[%c17, %c0_2, %c0_3], %0 {strides = array<i32>} : memref<18x16x384xbf16, #tpu.memory_space<vmem>>, vector<1x16x384xbf16>,
    %c0_4 = arith.constant 0 : index
    %c0_5 = arith.constant 0 : index
    %c0_6 = arith.constant 0 : index
    %c0_7 = arith.constant 0 : index
    %3 = vector.load %arg1[%c0_4, %c0_5, %c0_6, %c0_7] : memref<1x16x16x4xf32, #tpu.memory_space<vmem>>, vector<1x16x16x4xf32>
    %4 = vector.shape_cast %3 : vector<1x16x16x4xf32> to vector<16x16x4xf32>
    %5 = vector.shape_cast %4 : vector<16x16x4xf32> to vector<256x4xf32>
    %6 = arith.truncf %5 : vector<256x4xf32> to vector<256x4xbf16>
    %c0_8 = arith.constant 0 : index
    %c0_9 = arith.constant 0 : index
    %7 = vector.load %arg2[%c0_8, %c0_9] : memref<4x128xbf16, #tpu.memory_space<vmem>>, vector<4x128xbf16>
    %cst_10 = arith.constant dense<0.000000e+00> : vector<256x128xf32>
    %8 = tpu.matmul %6, %7, %cst_10 {dimension_numbers = #tpu.dot_dimension_numbers<[1], [0], [0], [1], [0, 0, 1, 1], [], []>} : vector<256x4xbf16>, vector<4x128xbf16>, vector<256x128xf32> -> vector<256x128xf32>
    %c0_11 = arith.constant 0 : index
    %c0_12 = arith.constant 0 : index
    %9 = vector.load %arg3[%c0_11, %c0_12] : memref<1x128xf32, #tpu.memory_space<vmem>>, vector<1x128xf32>
    %10 = vector.broadcast %9 : vector<1x128xf32> to vector<256x128xf32>
    %11 = arith.addf %8, %10 : vector<256x128xf32>
    %cst_13 = arith.constant 3.000000e+00 : f32
    %12 = vector.broadcast %cst_13 : f32 to vector<256x128xf32>
    %13 = arith.addf %11, %12 : vector<256x128xf32>
    %cst_14 = arith.constant 0.000000e+00 : f32
    %cst_15 = arith.constant 6.000000e+00 : f32
    %14 = vector.broadcast %cst_14 : f32 to vector<256x128xf32>
    %15 = arith.maximumf %14, %13 : vector<256x128xf32>
    %16 = vector.broadcast %cst_15 : f32 to vector<256x128xf32>
    %17 = arith.minimumf %16, %15 : vector<256x128xf32>
    %18 = arith.mulf %11, %17 : vector<256x128xf32>
    %cst_16 = arith.constant 0.166666672 : f32
    %19 = vector.broadcast %cst_16 : f32 to vector<256x128xf32>
    %20 = arith.mulf %18, %19 : vector<256x128xf32>
    %21 = tpu.iota {dimensions = array<i32: 0>} : vector<256x128xi32>
    %c16_i32 = arith.constant 16 : i32
    %c0_i32 = arith.constant 0 : i32
    %22 = arith.cmpi eq, %c16_i32, %c0_i32 : i32
    %c1_i32 = arith.constant 1 : i32
    %23 = arith.select %22, %c1_i32, %c16_i32 : i32
    %24 = vector.broadcast %23 : i32 to vector<256x128xi32>
    %25 = arith.remsi %21, %24 : vector<256x128xi32>
    %c0_i32_17 = arith.constant 0 : i32
    %26 = vector.broadcast %c0_i32_17 : i32 to vector<256x128xi32>
    %27 = arith.cmpi ne, %25, %26 : vector<256x128xi32>
    %c0_i32_18 = arith.constant 0 : i32
    %28 = vector.broadcast %c0_i32_18 : i32 to vector<256x128xi32>
    %29 = arith.cmpi slt, %25, %28 : vector<256x128xi32>
    %c0_i32_19 = arith.constant 0 : i32
    %30 = arith.cmpi slt, %23, %c0_i32_19 : i32
    %31 = vector.broadcast %30 : i1 to vector<256x128xi1>
    %32 = vector.broadcast %31 : vector<256x128xi1> to vector<256x128xi1>
    %33 = arith.xori %29, %32 : vector<256x128xi1>
    %34 = arith.andi %33, %27 : vector<256x128xi1>
    %35 = vector.broadcast %23 : i32 to vector<256x128xi32>
    %36 = arith.addi %25, %35 : vector<256x128xi32>
    %37 = arith.select %34, %36, %25 : vector<256x128xi1>, vector<256x128xi32>
    %c0_i32_20 = arith.constant 0 : i32
    %38 = vector.broadcast %c0_i32_20 : i32 to vector<256x128xi32>
    %39 = arith.cmpi eq, %37, %38 : vector<256x128xi32>
    %40 = vector.extract_strided_slice %20 {offsets = [255, 0], sizes = [1, 128], strides = [1, 1]} : vector<256x128xf32> to vector<1x128xf32>
    %41 = vector.extract_strided_slice %20 {offsets = [0, 0], sizes = [255, 128], strides = [1, 1]} : vector<256x128xf32> to vector<255x128xf32>
    %42 = tpu.concatenate %40, %41 in 0 : vector<1x128xf32>, vector<255x128xf32> -> vector<256x128xf32>
    %cst_21 = arith.constant 0.000000e+00 : f32
    %43 = vector.broadcast %cst_21 : f32 to vector<256x128xf32>
    %44 = arith.select %39, %43, %42 : vector<256x128xi1>, vector<256x128xf32>
    %c15_i32 = arith.constant 15 : i32
    %45 = vector.broadcast %c15_i32 : i32 to vector<256x128xi32>
    %46 = arith.cmpi eq, %37, %45 : vector<256x128xi32>
    %47 = vector.extract_strided_slice %20 {offsets = [1, 0], sizes = [255, 128], strides = [1, 1]} : vector<256x128xf32> to vector<255x128xf32>
    %48 = vector.extract_strided_slice %20 {offsets = [0, 0], sizes = [1, 128], strides = [1, 1]} : vector<256x128xf32> to vector<1x128xf32>
    %49 = tpu.concatenate %47, %48 in 0 : vector<255x128xf32>, vector<1x128xf32> -> vector<256x128xf32>
    %cst_22 = arith.constant 0.000000e+00 : f32
    %50 = vector.broadcast %cst_22 : f32 to vector<256x128xf32>
    %51 = arith.select %46, %50, %49 : vector<256x128xi1>, vector<256x128xf32>
    %52 = vector.shape_cast %44 : vector<256x128xf32> to vector<16x16x128xf32>
    %53 = arith.truncf %52 : vector<16x16x128xf32> to vector<16x16x128xbf16>
    %c1 = arith.constant 1 : index
    %c0_23 = arith.constant 0 : index
    %c0_24 = arith.constant 0 : index
    %54 = vector.load %arg7[%c1, %c0_23, %c0_24] : memref<18x16x384xbf16, #tpu.memory_space<vmem>>, vector<16x16x128xbf16>
    tpu.vector_store %arg7[%c1, %c0_23, %c0_24], %53 {strides = array<i32>} : memref<18x16x384xbf16, #tpu.memory_space<vmem>>, vector<16x16x128xbf16>,
    %55 = vector.shape_cast %20 : vector<256x128xf32> to vector<16x16x128xf32>
    %56 = arith.truncf %55 : vector<16x16x128xf32> to vector<16x16x128xbf16>
    %c1_25 = arith.constant 1 : index
    %c0_26 = arith.constant 0 : index
    %c128 = arith.constant 128 : index
    %57 = vector.load %arg7[%c1_25, %c0_26, %c128] : memref<18x16x384xbf16, #tpu.memory_space<vmem>>, vector<16x16x128xbf16>
    tpu.vector_store %arg7[%c1_25, %c0_26, %c128], %56 {strides = array<i32>} : memref<18x16x384xbf16, #tpu.memory_space<vmem>>, vector<16x16x128xbf16>,
    %58 = vector.shape_cast %51 : vector<256x128xf32> to vector<16x16x128xf32>
    %59 = arith.truncf %58 : vector<16x16x128xf32> to vector<16x16x128xbf16>
    %c1_27 = arith.constant 1 : index
    %c0_28 = arith.constant 0 : index
    %c256 = arith.constant 256 : index
    %60 = vector.load %arg7[%c1_27, %c0_28, %c256] : memref<18x16x384xbf16, #tpu.memory_space<vmem>>, vector<16x16x128xbf16>
    tpu.vector_store %arg7[%c1_27, %c0_28, %c256], %59 {strides = array<i32>} : memref<18x16x384xbf16, #tpu.memory_space<vmem>>, vector<16x16x128xbf16>,
    %c0_29 = arith.constant 0 : index
    %c0_30 = arith.constant 0 : index
    %c0_31 = arith.constant 0 : index
    %61 = vector.load %arg7[%c0_29, %c0_30, %c0_31] : memref<18x16x384xbf16, #tpu.memory_space<vmem>>, vector<16x16x384xbf16>
    %62 = vector.shape_cast %61 : vector<16x16x384xbf16> to vector<256x384xbf16>
    %c0_32 = arith.constant 0 : index
    %c0_33 = arith.constant 0 : index
    %c0_34 = arith.constant 0 : index
    %63 = vector.load %arg4[%c0_32, %c0_33, %c0_34] : memref<3x384x4xbf16, #tpu.memory_space<vmem>>, vector<1x384x4xbf16>
    %64 = vector.shape_cast %63 : vector<1x384x4xbf16> to vector<384x4xbf16>
    %cst_35 = arith.constant dense<0.000000e+00> : vector<256x4xf32>
    %65 = tpu.matmul %62, %64, %cst_35 {dimension_numbers = #tpu.dot_dimension_numbers<[1], [0], [0], [1], [0, 0, 1, 1], [], []>} : vector<256x384xbf16>, vector<384x4xbf16>, vector<256x4xf32> -> vector<256x4xf32>
    %c1_36 = arith.constant 1 : index
    %c0_37 = arith.constant 0 : index
    %c0_38 = arith.constant 0 : index
    %66 = vector.load %arg7[%c1_36, %c0_37, %c0_38] : memref<18x16x384xbf16, #tpu.memory_space<vmem>>, vector<16x16x384xbf16>
    %67 = vector.shape_cast %66 : vector<16x16x384xbf16> to vector<256x384xbf16>
    %c1_39 = arith.constant 1 : index
    %c0_40 = arith.constant 0 : index
    %c0_41 = arith.constant 0 : index
    %68 = vector.load %arg4[%c1_39, %c0_40, %c0_41] : memref<3x384x4xbf16, #tpu.memory_space<vmem>>, vector<1x384x4xbf16>
    %69 = vector.shape_cast %68 : vector<1x384x4xbf16> to vector<384x4xbf16>
    %cst_42 = arith.constant dense<0.000000e+00> : vector<256x4xf32>
    %70 = tpu.matmul %67, %69, %cst_42 {dimension_numbers = #tpu.dot_dimension_numbers<[1], [0], [0], [1], [0, 0, 1, 1], [], []>} : vector<256x384xbf16>, vector<384x4xbf16>, vector<256x4xf32> -> vector<256x4xf32>
    %71 = arith.addf %65, %70 : vector<256x4xf32>
    %c2 = arith.constant 2 : index
    %c0_43 = arith.constant 0 : index
    %c0_44 = arith.constant 0 : index
    %72 = vector.load %arg7[%c2, %c0_43, %c0_44] : memref<18x16x384xbf16, #tpu.memory_space<vmem>>, vector<16x16x384xbf16>
    %73 = vector.shape_cast %72 : vector<16x16x384xbf16> to vector<256x384xbf16>
    %c2_45 = arith.constant 2 : index
    %c0_46 = arith.constant 0 : index
    %c0_47 = arith.constant 0 : index
    %74 = vector.load %arg4[%c2_45, %c0_46, %c0_47] : memref<3x384x4xbf16, #tpu.memory_space<vmem>>, vector<1x384x4xbf16>
    %75 = vector.shape_cast %74 : vector<1x384x4xbf16> to vector<384x4xbf16>
    %cst_48 = arith.constant dense<0.000000e+00> : vector<256x4xf32>
    %76 = tpu.matmul %73, %75, %cst_48 {dimension_numbers = #tpu.dot_dimension_numbers<[1], [0], [0], [1], [0, 0, 1, 1], [], []>} : vector<256x384xbf16>, vector<384x4xbf16>, vector<256x4xf32> -> vector<256x4xf32>
    %77 = arith.addf %71, %76 : vector<256x4xf32>
    %c0_49 = arith.constant 0 : index
    %c0_50 = arith.constant 0 : index
    %78 = vector.load %arg5[%c0_49, %c0_50] : memref<1x4xf32, #tpu.memory_space<vmem>>, vector<1x4xf32>
    %79 = vector.broadcast %78 : vector<1x4xf32> to vector<256x4xf32>
    %80 = arith.addf %77, %79 : vector<256x4xf32>
    %cst_51 = arith.constant 3.000000e+00 : f32
    %81 = vector.broadcast %cst_51 : f32 to vector<256x4xf32>
    %82 = arith.addf %80, %81 : vector<256x4xf32>
    %cst_52 = arith.constant 0.000000e+00 : f32
    %cst_53 = arith.constant 6.000000e+00 : f32
    %83 = vector.broadcast %cst_52 : f32 to vector<256x4xf32>
    %84 = arith.maximumf %83, %82 : vector<256x4xf32>
    %85 = vector.broadcast %cst_53 : f32 to vector<256x4xf32>
    %86 = arith.minimumf %85, %84 : vector<256x4xf32>
    %87 = arith.mulf %80, %86 : vector<256x4xf32>
    %cst_54 = arith.constant 0.166666672 : f32
    %88 = vector.broadcast %cst_54 : f32 to vector<256x4xf32>
    %89 = arith.mulf %87, %88 : vector<256x4xf32>
    %c0_55 = arith.constant 0 : index
    %c0_56 = arith.constant 0 : index
    %c0_57 = arith.constant 0 : index
    %c0_58 = arith.constant 0 : index
    %90 = vector.load %arg1[%c0_55, %c0_56, %c0_57, %c0_58] : memref<1x16x16x4xf32, #tpu.memory_space<vmem>>, vector<1x16x16x4xf32>
    %91 = vector.shape_cast %90 : vector<1x16x16x4xf32> to vector<16x16x4xf32>
    %92 = vector.shape_cast %91 : vector<16x16x4xf32> to vector<256x4xf32>
    %93 = arith.addf %89, %92 : vector<256x4xf32>
    %94 = vector.shape_cast %93 : vector<256x4xf32> to vector<16x16x4xf32>
    %c0_59 = arith.constant 0 : index
    %c0_60 = arith.constant 0 : index
    %c0_61 = arith.constant 0 : index
    %c0_62 = arith.constant 0 : index
    %95 = vector.load %arg6[%c0_59, %c0_60, %c0_61, %c0_62] : memref<1x16x16x4xf32, #tpu.memory_space<vmem>>, vector<1x16x16x4xf32>
    %96 = vector.shape_cast %95 : vector<1x16x16x4xf32> to vector<16x16x4xf32>
    %97 = vector.shape_cast %94 : vector<16x16x4xf32> to vector<1x16x16x4xf32>
    tpu.vector_store %arg6[%c0_59, %c0_60, %c0_61, %c0_62], %97 {strides = array<i32>} : memref<1x16x16x4xf32, #tpu.memory_space<vmem>>, vector<1x16x16x4xf32>,
    return
  }
  func.func @transform_0(%arg0: i32) -> (i32, i32, i32, i32) {
    %c0_i32 = arith.constant 0 : i32
    %c0_i32_0 = arith.constant 0 : i32
    %c0_i32_1 = arith.constant 0 : i32
    %c0_i32_2 = arith.constant 0 : i32
    return %arg0, %c0_i32, %c0_i32_0, %c0_i32_1 : i32, i32, i32, i32
  }
  func.func @transform_1(%arg0: i32) -> (i32, i32) {
    %c0_i32 = arith.constant 0 : i32
    %c0_i32_0 = arith.constant 0 : i32
    %c0_i32_1 = arith.constant 0 : i32
    return %c0_i32, %c0_i32_0 : i32, i32
  }
  func.func @transform_2(%arg0: i32) -> (i32, i32) {
    %c0_i32 = arith.constant 0 : i32
    %c0_i32_0 = arith.constant 0 : i32
    %c0_i32_1 = arith.constant 0 : i32
    return %c0_i32, %c0_i32_0 : i32, i32
  }
  func.func @transform_3(%arg0: i32) -> (i32, i32, i32) {
    %c0_i32 = arith.constant 0 : i32
    %c0_i32_0 = arith.constant 0 : i32
    %c0_i32_1 = arith.constant 0 : i32
    %c0_i32_2 = arith.constant 0 : i32
    return %c0_i32, %c0_i32_0, %c0_i32_1 : i32, i32, i32
  }
  func.func @transform_4(%arg0: i32) -> (i32, i32) {
    %c0_i32 = arith.constant 0 : i32
    %c0_i32_0 = arith.constant 0 : i32
    %c0_i32_1 = arith.constant 0 : i32
    return %c0_i32, %c0_i32_0 : i32, i32
  }
  func.func @transform_5(%arg0: i32) -> (i32, i32, i32, i32) {
    %c0_i32 = arith.constant 0 : i32
    %c0_i32_0 = arith.constant 0 : i32
    %c0_i32_1 = arith.constant 0 : i32
    %c0_i32_2 = arith.constant 0 : i32
    return %arg0, %c0_i32, %c0_i32_0, %c0_i32_1 : i32, i32, i32, i32
  }
}

</mosaic_0001>

<llo_original>
// kernel: tpu_custom_call.1
$region0: #{tpu_custom_call.1}
  #allocation0 [shape = 'u32[]', space=smem, size = 0x4, offset = 0x4, fixed_abs, tag = 'smem constant byte address 0x4 - core index']
  #allocation1 [shape = 'u32[144,128]{1,0:T(1,128)}', space=vmem, size = 0x12000, scoped, tag = 'internal scratch']
  #allocation2 [shape = 'bf16[18,16,384]{2,1,0:T(16,128)(2,1)}', space=vmem, size = 0x36000, scoped, tag = 'scratch operand']
  %s0 = inlined_call_operand.vmem [shape: f32[2,16,16,4], index: 0, kind: input, shape index: {}]
  %s1 = inlined_call_operand.vmem [shape: bf16[4,128], index: 1, kind: input, shape index: {}]
  %s2 = inlined_call_operand.vmem [shape: f32[1,128], index: 2, kind: input, shape index: {}]
  %s3 = inlined_call_operand.vmem [shape: bf16[3,384,4], index: 3, kind: input, shape index: {}]
  %s4 = inlined_call_operand.vmem [shape: f32[1,4], index: 4, kind: input, shape index: {}]
  %s5 = inlined_call_operand.vmem [shape: f32[2,16,16,4], index: 5, kind: output, shape index: {}]
  %s6 = sld [smem:[#allocation0]]
  $region53: #{tpu_custom_call.1} parent=0
    _
  %s8 = ssub.s32 1, %s6
  %s9 = scalar_select 0, %s8, %s6
  loop: start=0, step=1, limit=4
  $region2: #{tpu_custom_call.1} parent=0 // loop_pre_header
    _
  $region3: #{tpu_custom_call.1} parent=0 // loop_header
    %s11 = sphi 0, %s15
    %p12 = scmp.ge.s32.totalorder %s11, 4
    %s21 = sphi 0, %s23
    %s24 = sphi 0, %s21
    %s25 = sphi 0, %s24
    %s41 = sphi 0, %s25
    %s45 = sphi 0, %s45
    %s47 = sphi 0, %s45
    %s48 = sphi 0, %s47
    %s62 = sphi 0, %s48
    %s66 = sphi 0, %s66
    %s68 = sphi 0, %s66
    %s69 = sphi 0, %s68
    %s83 = sphi 0, %s69
    %s87 = sphi 0, %s87
    %s89 = sphi 0, %s87
    %s90 = sphi 0, %s89
    %s104 = sphi 0, %s90
    %s108 = sphi 0, %s108
    %s110 = sphi 0, %s108
    %s111 = sphi 0, %s110
    %s125 = sphi 0, %s111
    %s131 = sphi 0, %s133
    %s134 = sphi 0, %s131
    %s135 = sphi 0, %s134
    %s151 = sphi 0, %s135
  $region4: #{tpu_custom_call.1} parent=0 // loop_header_branch
    %14 = sbr.rel (%p12) target = $region8
  $region5: #{tpu_custom_call.1} parent=0 // loop_body
    %s16 = ssub.s32 %s11, 1
    %s17 = ssub.s32 %s11, 2
    %s18 = sadd.s32 %s11, 1
    %s19 = ssub.s32 %s11, %s18
    %p20 = scmp.eq.s32.totalorder %s19, 0
    %s22 = sadd.s32 %s21, 1
    %s23 = scalar_select %p20, %s21, %s22
    %p26 = pneg %p20
    %p27 = scmp.eq.s32.totalorder %s11, 1
    %p28 = por %p26, %p27
    %p29 = scmp.ne.s32.totalorder %s21, %s24
    %p30 = scmp.eq.s32.totalorder %s11, 0
    %p31 = por %p29, %p30
    %p32 = scmp.ne.s32.totalorder %s21, %s24
    %p33 = scmp.eq.s32.totalorder %s16, 1
    %p34 = por %p32, %p33
    %p35 = scmp.ne.s32.totalorder %s24, %s25
    %p36 = scmp.eq.s32.totalorder %s16, 0
    %p37 = por %p35, %p36
    %p38 = scmp.ne.s32.totalorder %s24, %s25
    %p39 = scmp.eq.s32.totalorder %s17, 1
    %p40 = por %p38, %p39
    %p42 = scmp.ne.s32.totalorder %s25, %s41
    %p43 = scmp.eq.s32.totalorder %s17, 0
    %p44 = por %p42, %p43
    %s46 = sadd.s32 %s45, 1
    %p49 = scmp.eq.s32.totalorder %s11, 1
    %p50 = scmp.ne.s32.totalorder %s45, %s47
    %p51 = scmp.eq.s32.totalorder %s11, 0
    %p52 = por %p50, %p51
    %p53 = scmp.ne.s32.totalorder %s45, %s47
    %p54 = scmp.eq.s32.totalorder %s16, 1
    %p55 = por %p53, %p54
    %p56 = scmp.ne.s32.totalorder %s47, %s48
    %p57 = scmp.eq.s32.totalorder %s16, 0
    %p58 = por %p56, %p57
    %p59 = scmp.ne.s32.totalorder %s47, %s48
    %p60 = scmp.eq.s32.totalorder %s17, 1
    %p61 = por %p59, %p60
    %p63 = scmp.ne.s32.totalorder %s48, %s62
    %p64 = scmp.eq.s32.totalorder %s17, 0
    %p65 = por %p63, %p64
    %s67 = sadd.s32 %s66, 1
    %p70 = scmp.eq.s32.totalorder %s11, 1
    %p71 = scmp.ne.s32.totalorder %s66, %s68
    %p72 = scmp.eq.s32.totalorder %s11, 0
    %p73 = por %p71, %p72
    %p74 = scmp.ne.s32.totalorder %s66, %s68
    %p75 = scmp.eq.s32.totalorder %s16, 1
    %p76 = por %p74, %p75
    %p77 = scmp.ne.s32.totalorder %s68, %s69
    %p78 = scmp.eq.s32.totalorder %s16, 0
    %p79 = por %p77, %p78
    %p80 = scmp.ne.s32.totalorder %s68, %s69
    %p81 = scmp.eq.s32.totalorder %s17, 1
    %p82 = por %p80, %p81
    %p84 = scmp.ne.s32.totalorder %s69, %s83
    %p85 = scmp.eq.s32.totalorder %s17, 0
    %p86 = por %p84, %p85
    %s88 = sadd.s32 %s87, 1
    %p91 = scmp.eq.s32.totalorder %s11, 1
    %p92 = scmp.ne.s32.totalorder %s87, %s89
    %p93 = scmp.eq.s32.totalorder %s11, 0
    %p94 = por %p92, %p93
    %p95 = scmp.ne.s32.totalorder %s87, %s89
    %p96 = scmp.eq.s32.totalorder %s16, 1
    %p97 = por %p95, %p96
    %p98 = scmp.ne.s32.totalorder %s89, %s90
    %p99 = scmp.eq.s32.totalorder %s16, 0
    %p100 = por %p98, %p99
    %p101 = scmp.ne.s32.totalorder %s89, %s90
    %p102 = scmp.eq.s32.totalorder %s17, 1
    %p103 = por %p101, %p102
    %p105 = scmp.ne.s32.totalorder %s90, %s104
    %p106 = scmp.eq.s32.totalorder %s17, 0
    %p107 = por %p105, %p106
    %s109 = sadd.s32 %s108, 1
    %p112 = scmp.eq.s32.totalorder %s11, 1
    %p113 = scmp.ne.s32.totalorder %s108, %s110
    %p114 = scmp.eq.s32.totalorder %s11, 0
    %p115 = por %p113, %p114
    %p116 = scmp.ne.s32.totalorder %s108, %s110
    %p117 = scmp.eq.s32.totalorder %s16, 1
    %p118 = por %p116, %p117
    %p119 = scmp.ne.s32.totalorder %s110, %s111
    %p120 = scmp.eq.s32.totalorder %s16, 0
    %p121 = por %p119, %p120
    %p122 = scmp.ne.s32.totalorder %s110, %s111
    %p123 = scmp.eq.s32.totalorder %s17, 1
    %p124 = por %p122, %p123
    %p126 = scmp.ne.s32.totalorder %s111, %s125
    %p127 = scmp.eq.s32.totalorder %s17, 0
    %p128 = por %p126, %p127
    %s129 = ssub.s32 %s11, %s18
    %p130 = scmp.eq.s32.totalorder %s129, 0
    %s132 = sadd.s32 %s131, 1
    %s133 = scalar_select %p130, %s131, %s132
    %p136 = pneg %p130
    %p137 = scmp.eq.s32.totalorder %s11, 1
    %p138 = por %p136, %p137
    %p139 = scmp.ne.s32.totalorder %s131, %s134
    %p140 = scmp.eq.s32.totalorder %s11, 0
    %p141 = por %p139, %p140
    %p142 = scmp.ne.s32.totalorder %s131, %s134
    %p143 = scmp.eq.s32.totalorder %s16, 1
    %p144 = por %p142, %p143
    %p145 = scmp.ne.s32.totalorder %s134, %s135
    %p146 = scmp.eq.s32.totalorder %s16, 0
    %p147 = por %p145, %p146
    %p148 = scmp.ne.s32.totalorder %s134, %s135
    %p149 = scmp.eq.s32.totalorder %s17, 1
    %p150 = por %p148, %p149
    %p152 = scmp.ne.s32.totalorder %s135, %s151
    %p153 = scmp.eq.s32.totalorder %s17, 0
    %p154 = por %p152, %p153
    %p155 = scmp.le.s32.totalorder 1, %s11
    %p156 = scmp.lt.s32.totalorder %s11, 3
    %p157 = pnand %p155, %p156
    %p158 = pneg %p157
    // Predicated region
    $region9: #{tpu_custom_call.1} parent=5 // pred_check
      _
    $region10: #{tpu_custom_call.1} parent=5 // pred_check_branch
      %160 = sbr.rel (%p157) target = $region12
    $region11: #{tpu_custom_call.1} parent=5 // pred_region
      %s161 = ssub.s32 %s11, 1
      // Predicated region
      $region13: #{tpu_custom_call.1} parent=11 // pred_check
        %p162 = pneg %p58
      $region14: #{tpu_custom_call.1} parent=11 // pred_check_branch
        %164 = sbr.rel (%p162) target = $region16
      $region15: #{tpu_custom_call.1} parent=11 // pred_region
        _
      $region16: #{tpu_custom_call.1} parent=11 // pred_fallthru
        _
      // Predicated region
      $region17: #{tpu_custom_call.1} parent=11 // pred_check
        %p165 = pneg %p79
      $region18: #{tpu_custom_call.1} parent=11 // pred_check_branch
        %167 = sbr.rel (%p165) target = $region20
      $region19: #{tpu_custom_call.1} parent=11 // pred_region
        _
      $region20: #{tpu_custom_call.1} parent=11 // pred_fallthru
        _
      // Predicated region
      $region21: #{tpu_custom_call.1} parent=11 // pred_check
        %p168 = pneg %p100
      $region22: #{tpu_custom_call.1} parent=11 // pred_check_branch
        %170 = sbr.rel (%p168) target = $region24
      $region23: #{tpu_custom_call.1} parent=11 // pred_region
        _
      $region24: #{tpu_custom_call.1} parent=11 // pred_fallthru
        _
      // Predicated region
      $region25: #{tpu_custom_call.1} parent=11 // pred_check
        %p171 = pneg %p121
      $region26: #{tpu_custom_call.1} parent=11 // pred_check_branch
        %173 = sbr.rel (%p171) target = $region28
      $region27: #{tpu_custom_call.1} parent=11 // pred_region
        _
      $region28: #{tpu_custom_call.1} parent=11 // pred_fallthru
        _
    $region12: #{tpu_custom_call.1} parent=5 // pred_fallthru
      _
    %p174 = scmp.lt.s32.totalorder %s11, 2
    // Predicated region
    $region29: #{tpu_custom_call.1} parent=5 // pred_check
      %p175 = pneg %p174
    $region30: #{tpu_custom_call.1} parent=5 // pred_check_branch
      %177 = sbr.rel (%p175) target = $region32
    $region31: #{tpu_custom_call.1} parent=5 // pred_region
      // Predicated region
      $region33: #{tpu_custom_call.1} parent=31 // pred_check
        %p178 = pneg %p31
      $region34: #{tpu_custom_call.1} parent=31 // pred_check_branch
        %180 = sbr.rel (%p178) target = $region36
      $region35: #{tpu_custom_call.1} parent=31 // pred_region
        %p181 = scmp.lt.s32.totalorder %s11, 1
        %s182 = scalar_select %p181, %s11, 1
        %s183 = smul.addr %s182, 32
        %s184 = smul.addr %s183, 8
        %s185 = scalar_lea.vmem %s0, %s184
      $region36: #{tpu_custom_call.1} parent=31 // pred_fallthru
        _
    $region32: #{tpu_custom_call.1} parent=5 // pred_fallthru
      _
    %p186 = scmp.le.s32.totalorder 1, %s11
    %p187 = scmp.lt.s32.totalorder %s11, 3
    %p188 = pnand %p186, %p187
    %p189 = pneg %p188
    // Predicated region
    $region37: #{tpu_custom_call.1} parent=5 // pred_check
      _
    $region38: #{tpu_custom_call.1} parent=5 // pred_check_branch
      %191 = sbr.rel (%p188) target = $region40
    $region39: #{tpu_custom_call.1} parent=5 // pred_region
      %s192 = ssub.s32 %s11, 1
      %p193 = scmp.lt.s32.totalorder %s16, 1
      %s194 = scalar_select %p193, %s16, 1
      %s195 = smul.addr %s194, 32
      %s196 = smul.addr %s195, 8
      %s197 = scalar_lea.vmem %s0, %s196
      %p198 = pneg %p37
      %p199 = pneg %p34
      %p200 = pneg %p58
      %p201 = pneg %p55
      %p202 = pneg %p79
      %p203 = pneg %p76
      %p204 = pneg %p100
      %p205 = pneg %p97
      %p206 = pneg %p121
      %p207 = pneg %p118
      %p208 = pneg %p147
      %p209 = pneg %p144
      %p210 = scmp.lt.s32.totalorder %s16, 1
      %s211 = scalar_select %p210, %s16, 1
      %s212 = smul.addr %s211, 32
      %s213 = smul.addr %s212, 8
      %s214 = scalar_lea.vmem %s5, %s213
      %p215 = scmp.lt.s32.totalorder %s16, 1
      %s216 = scalar_select %p215, %s16, 1
      %s217 = smul.addr %s216, 32
      %s218 = smul.addr %s217, 8
      %s219 = scalar_lea.vmem %s0, %s218
      %p220 = scmp.lt.s32.totalorder %s16, 1
      %s221 = scalar_select %p220, %s16, 1
      %s222 = smul.addr %s221, 32
      %s223 = smul.addr %s222, 8
      %s224 = scalar_lea.vmem %s5, %s223
      %226 = vst [vmem:[#allocation2] sm:$0xff] 0
      %227 = vst [vmem:[#allocation2 + $0x8] sm:$0xff] 0
      %228 = vst [vmem:[#allocation2 + $0x10] sm:$0xff] 0
      %s229 = scalar_lea.vmem [#allocation2], 408
      %230 = vst [vmem:[%s229] sm:$0xff] 0
      %231 = vst [vmem:[%s229 + $0x8] sm:$0xff] 0
      %232 = vst [vmem:[%s229 + $0x10] sm:$0xff] 0
      %v233 = vld [vmem:[%s219] sm:$0xff]
      %v234 = vld [vmem:[%s219 + $0x8] sm:$0xff]
      %v235 = vld [vmem:[%s219 + $0x10] sm:$0xff]
      %v236 = vld [vmem:[%s219 + $0x18] sm:$0xff]
      %v237 = vld [vmem:[%s219 + $0x20] sm:$0xff]
      %v238 = vld [vmem:[%s219 + $0x28] sm:$0xff]
      %v239 = vld [vmem:[%s219 + $0x30] sm:$0xff]
      %v240 = vld [vmem:[%s219 + $0x38] sm:$0xff]
      %v241 = vld [vmem:[%s219 + $0x40] sm:$0xff]
      %v242 = vld [vmem:[%s219 + $0x48] sm:$0xff]
      %v243 = vld [vmem:[%s219 + $0x50] sm:$0xff]
      %v244 = vld [vmem:[%s219 + $0x58] sm:$0xff]
      %v245 = vld [vmem:[%s219 + $0x60] sm:$0xff]
      %v246 = vld [vmem:[%s219 + $0x68] sm:$0xff]
      %v247 = vld [vmem:[%s219 + $0x70] sm:$0xff]
      %v248 = vld [vmem:[%s219 + $0x78] sm:$0xff]
      %v249 = vld [vmem:[%s219 + $0x80] sm:$0xff]
      %v250 = vld [vmem:[%s219 + $0x88] sm:$0xff]
      %v251 = vld [vmem:[%s219 + $0x90] sm:$0xff]
      %v252 = vld [vmem:[%s219 + $0x98] sm:$0xff]
      %v253 = vld [vmem:[%s219 + $0xa0] sm:$0xff]
      %v254 = vld [vmem:[%s219 + $0xa8] sm:$0xff]
      %v255 = vld [vmem:[%s219 + $0xb0] sm:$0xff]
      %v256 = vld [vmem:[%s219 + $0xb8] sm:$0xff]
      %v257 = vld [vmem:[%s219 + $0xc0] sm:$0xff]
      %v258 = vld [vmem:[%s219 + $0xc8] sm:$0xff]
      %v259 = vld [vmem:[%s219 + $0xd0] sm:$0xff]
      %v260 = vld [vmem:[%s219 + $0xd8] sm:$0xff]
      %v261 = vld [vmem:[%s219 + $0xe0] sm:$0xff]
      %v262 = vld [vmem:[%s219 + $0xe8] sm:$0xff]
      %v263 = vld [vmem:[%s219 + $0xf0] sm:$0xff]
      %v264 = vld [vmem:[%s219 + $0xf8] sm:$0xff]
      %v265 = vpack.c.bf16 %v234, %v233
      %v266 = vpack.c.bf16 %v236, %v235
      %v267 = vpack.c.bf16 %v238, %v237
      %v268 = vpack.c.bf16 %v240, %v239
      %v269 = vpack.c.bf16 %v242, %v241
      %v270 = vpack.c.bf16 %v244, %v243
      %v271 = vpack.c.bf16 %v246, %v245
      %v272 = vpack.c.bf16 %v248, %v247
      %v273 = vpack.c.bf16 %v250, %v249
      %v274 = vpack.c.bf16 %v252, %v251
      %v275 = vpack.c.bf16 %v254, %v253
      %v276 = vpack.c.bf16 %v256, %v255
      %v277 = vpack.c.bf16 %v258, %v257
      %v278 = vpack.c.bf16 %v260, %v259
      %v279 = vpack.c.bf16 %v262, %v261
      %v280 = vpack.c.bf16 %v264, %v263
      %v281 = vld [vmem:[%s1] sm:$0x3]
      %v282 = vld [vmem:[%s2] sm:$0x1]
      %v284 = vlaneseq
      %v285 = vshrl.u32 %v284, 7
      %v286 = vsub.s32 0, %v285
      %v287 = vrot.slane %v282, %v286
      %vm289 = vcmask 31744
      %v291 = vsel %vm289, %v265, 0
      %v294 = vsel %vm289, %v266, 0
      %v297 = vsel %vm289, %v267, 0
      %v300 = vsel %vm289, %v268, 0
      %v303 = vsel %vm289, %v269, 0
      %v306 = vsel %vm289, %v270, 0
      %v309 = vsel %vm289, %v271, 0
      %v312 = vsel %vm289, %v272, 0
      %v315 = vsel %vm289, %v273, 0
      %v318 = vsel %vm289, %v274, 0
      %v321 = vsel %vm289, %v275, 0
      %v324 = vsel %vm289, %v276, 0
      %v327 = vsel %vm289, %v277, 0
      %v330 = vsel %vm289, %v278, 0
      %v333 = vsel %vm289, %v279, 0
      %v336 = vsel %vm289, %v280, 0
      %vm338 = vcmask 1041408
      %v340 = vsel %vm338, %v281, 0
      %342 = vmatprep.subr.bf16.mxu0 0
      %343 = vmatpush1.bf16.msra.mxu0 %v340
      %344 = vmatprep.subr.bf16.mxu0 0
      %345 = vmatpush1.bf16.msra.mxu0 0
      %346 = vmatprep.subr.bf16.mxu0 0
      %347 = vmatpush1.bf16.msra.mxu0 0
      %348 = vmatprep.subr.bf16.mxu0 0
      %349 = vmatpush1.bf16.msra.mxu0 0
      %350 = vmatprep.subr.bf16.mxu0 0
      %351 = vmatpush1.bf16.msra.mxu0 0
      %352 = vmatprep.subr.bf16.mxu0 0
      %353 = vmatpush1.bf16.msra.mxu0 0
      %354 = vmatprep.subr.bf16.mxu0 0
      %355 = vmatpush1.bf16.msra.mxu0 0
      %356 = vmatprep.subr.bf16.mxu0 0
      %357 = vmatpush1.bf16.msra.mxu0 0
      %358 = vmatprep.subr.bf16.mxu0 0
      %359 = vmatpush1.bf16.msra.mxu0 0
      %360 = vmatprep.subr.bf16.mxu0 0
      %361 = vmatpush1.bf16.msra.mxu0 0
      %362 = vmatprep.subr.bf16.mxu0 0
      %363 = vmatpush1.bf16.msra.mxu0 0
      %364 = vmatprep.subr.bf16.mxu0 0
      %365 = vmatpush1.bf16.msra.mxu0 0
      %366 = vmatprep.subr.bf16.mxu0 0
      %367 = vmatpush1.bf16.msra.mxu0 0
      %368 = vmatprep.subr.bf16.mxu0 0
      %369 = vmatpush1.bf16.msra.mxu0 0
      %370 = vmatprep.subr.bf16.mxu0 0
      %371 = vmatpush1.bf16.msra.mxu0 0
      %372 = vmatprep.subr.bf16.mxu0 0
      %373 = vmatpush1.bf16.msra.mxu0 0
      %374 = vmatprep.mubr.bf16.mxu0 0
      %375 = vmatmul.mubr.bf16.gmra.mrb[0].mxu0 %v291
      %v376 = vpop.f32.mrb[0].mxu0
      %v377 = vadd.f32 %v287, %v376
      %v378 = vpop.f32.mrb[0].mxu0
      %v379 = vpop.f32.mrb[0].mxu0
      %v380 = vadd.f32 %v287, %v379
      %v381 = vpop.f32.mrb[0].mxu0
      %382 = vmatprep.mubr.bf16.mxu0 0
      %383 = vmatmul.mubr.bf16.gmra.mrb[0].mxu0 %v294
      %v384 = vpop.f32.mrb[0].mxu0
      %v385 = vadd.f32 %v287, %v384
      %v386 = vpop.f32.mrb[0].mxu0
      %v387 = vpop.f32.mrb[0].mxu0
      %v388 = vadd.f32 %v287, %v387
      %v389 = vpop.f32.mrb[0].mxu0
      %390 = vmatprep.mubr.bf16.mxu0 0
      %391 = vmatmul.mubr.bf16.gmra.mrb[0].mxu0 %v297
      %v392 = vpop.f32.mrb[0].mxu0
      %v393 = vadd.f32 %v287, %v392
      %v394 = vpop.f32.mrb[0].mxu0
      %v395 = vpop.f32.mrb[0].mxu0
      %v396 = vadd.f32 %v287, %v395
      %v397 = vpop.f32.mrb[0].mxu0
      %398 = vmatprep.mubr.bf16.mxu0 0
      %399 = vmatmul.mubr.bf16.gmra.mrb[0].mxu0 %v300
      %v400 = vpop.f32.mrb[0].mxu0
      %v401 = vadd.f32 %v287, %v400
      %v402 = vpop.f32.mrb[0].mxu0
      %v403 = vpop.f32.mrb[0].mxu0
      %v404 = vadd.f32 %v287, %v403
      %v405 = vpop.f32.mrb[0].mxu0
      %406 = vmatprep.mubr.bf16.mxu0 0
      %407 = vmatmul.mubr.bf16.gmra.mrb[0].mxu0 %v303
      %v408 = vpop.f32.mrb[0].mxu0
      %v409 = vadd.f32 %v287, %v408
      %v410 = vpop.f32.mrb[0].mxu0
      %v411 = vpop.f32.mrb[0].mxu0
      %v412 = vadd.f32 %v287, %v411
      %v413 = vpop.f32.mrb[0].mxu0
      %414 = vmatprep.mubr.bf16.mxu0 0
      %415 = vmatmul.mubr.bf16.gmra.mrb[0].mxu0 %v306
      %v416 = vpop.f32.mrb[0].mxu0
      %v417 = vadd.f32 %v287, %v416
      %v418 = vpop.f32.mrb[0].mxu0
      %v419 = vpop.f32.mrb[0].mxu0
      %v420 = vadd.f32 %v287, %v419
      %v421 = vpop.f32.mrb[0].mxu0
      %422 = vmatprep.mubr.bf16.mxu0 0
      %423 = vmatmul.mubr.bf16.gmra.mrb[0].mxu0 %v309
      %v424 = vpop.f32.mrb[0].mxu0
      %v425 = vadd.f32 %v287, %v424
      %v426 = vpop.f32.mrb[0].mxu0
      %v427 = vpop.f32.mrb[0].mxu0
      %v428 = vadd.f32 %v287, %v427
      %v429 = vpop.f32.mrb[0].mxu0
      %430 = vmatprep.mubr.bf16.mxu0 0
      %431 = vmatmul.mubr.bf16.gmra.mrb[0].mxu0 %v312
      %v432 = vpop.f32.mrb[0].mxu0
      %v433 = vadd.f32 %v287, %v432
      %v434 = vpop.f32.mrb[0].mxu0
      %v435 = vpop.f32.mrb[0].mxu0
      %v436 = vadd.f32 %v287, %v435
      %v437 = vpop.f32.mrb[0].mxu0
      %438 = vmatprep.mubr.bf16.mxu0 0
      %439 = vmatmul.mubr.bf16.gmra.mrb[0].mxu0 %v315
      %v440 = vpop.f32.mrb[0].mxu0
      %v441 = vadd.f32 %v287, %v440
      %v442 = vpop.f32.mrb[0].mxu0
      %v443 = vpop.f32.mrb[0].mxu0
      %v444 = vadd.f32 %v287, %v443
      %v445 = vpop.f32.mrb[0].mxu0
      %446 = vmatprep.mubr.bf16.mxu0 0
      %447 = vmatmul.mubr.bf16.gmra.mrb[0].mxu0 %v318
      %v448 = vpop.f32.mrb[0].mxu0
      %v449 = vadd.f32 %v287, %v448
      %v450 = vpop.f32.mrb[0].mxu0
      %v451 = vpop.f32.mrb[0].mxu0
      %v452 = vadd.f32 %v287, %v451
      %v453 = vpop.f32.mrb[0].mxu0
      %454 = vmatprep.mubr.bf16.mxu0 0
      %455 = vmatmul.mubr.bf16.gmra.mrb[0].mxu0 %v321
      %v456 = vpop.f32.mrb[0].mxu0
      %v457 = vadd.f32 %v287, %v456
      %v458 = vpop.f32.mrb[0].mxu0
      %v459 = vpop.f32.mrb[0].mxu0
      %v460 = vadd.f32 %v287, %v459
      %v461 = vpop.f32.mrb[0].mxu0
      %462 = vmatprep.mubr.bf16.mxu0 0
      %463 = vmatmul.mubr.bf16.gmra.mrb[0].mxu0 %v324
      %v464 = vpop.f32.mrb[0].mxu0
      %v465 = vadd.f32 %v287, %v464
      %v466 = vpop.f32.mrb[0].mxu0
      %v467 = vpop.f32.mrb[0].mxu0
      %v468 = vadd.f32 %v287, %v467
      %v469 = vpop.f32.mrb[0].mxu0
      %470 = vmatprep.mubr.bf16.mxu0 0
      %471 = vmatmul.mubr.bf16.gmra.mrb[0].mxu0 %v327
      %v472 = vpop.f32.mrb[0].mxu0
      %v473 = vadd.f32 %v287, %v472
      %v474 = vpop.f32.mrb[0].mxu0
      %v475 = vpop.f32.mrb[0].mxu0
      %v476 = vadd.f32 %v287, %v475
      %v477 = vpop.f32.mrb[0].mxu0
      %478 = vmatprep.mubr.bf16.mxu0 0
      %479 = vmatmul.mubr.bf16.gmra.mrb[0].mxu0 %v330
      %v480 = vpop.f32.mrb[0].mxu0
      %v481 = vadd.f32 %v287, %v480
      %v482 = vpop.f32.mrb[0].mxu0
      %v483 = vpop.f32.mrb[0].mxu0
      %v484 = vadd.f32 %v287, %v483
      %v485 = vpop.f32.mrb[0].mxu0
      %486 = vmatprep.mubr.bf16.mxu0 0
      %487 = vmatmul.mubr.bf16.gmra.mrb[0].mxu0 %v333
      %v488 = vpop.f32.mrb[0].mxu0
      %v489 = vadd.f32 %v287, %v488
      %v490 = vpop.f32.mrb[0].mxu0
      %v491 = vpop.f32.mrb[0].mxu0
      %v492 = vadd.f32 %v287, %v491
      %v493 = vpop.f32.mrb[0].mxu0
      %494 = vmatprep.mubr.bf16.mxu0 0
      %495 = vmatmul.mubr.bf16.gmra.mrb[0].mxu0 %v336
      %v496 = vpop.f32.mrb[0].mxu0
      %v497 = vadd.f32 %v287, %v496
      %v498 = vpop.f32.mrb[0].mxu0
      %v499 = vpop.f32.mrb[0].mxu0
      %v500 = vadd.f32 %v287, %v499
      %v501 = vpop.f32.mrb[0].mxu0
      %502 = vdwg.mxu0
      %v503 = vadd.f32 %v377, 3.0
      %v504 = vadd.f32 %v380, 3.0
      %v505 = vadd.f32 %v385, 3.0
      %v506 = vadd.f32 %v388, 3.0
      %v507 = vadd.f32 %v393, 3.0
      %v508 = vadd.f32 %v396, 3.0
      %v509 = vadd.f32 %v401, 3.0
      %v510 = vadd.f32 %v404, 3.0
      %v511 = vadd.f32 %v409, 3.0
      %v512 = vadd.f32 %v412, 3.0
      %v513 = vadd.f32 %v417, 3.0
      %v514 = vadd.f32 %v420, 3.0
      %v515 = vadd.f32 %v425, 3.0
      %v516 = vadd.f32 %v428, 3.0
      %v517 = vadd.f32 %v433, 3.0
      %v518 = vadd.f32 %v436, 3.0
      %v519 = vadd.f32 %v441, 3.0
      %v520 = vadd.f32 %v444, 3.0
      %v521 = vadd.f32 %v449, 3.0
      %v522 = vadd.f32 %v452, 3.0
      %v523 = vadd.f32 %v457, 3.0
      %v524 = vadd.f32 %v460, 3.0
      %v525 = vadd.f32 %v465, 3.0
      %v526 = vadd.f32 %v468, 3.0
      %v527 = vadd.f32 %v473, 3.0
      %v528 = vadd.f32 %v476, 3.0
      %v529 = vadd.f32 %v481, 3.0
      %v530 = vadd.f32 %v484, 3.0
      %v531 = vadd.f32 %v489, 3.0
      %v532 = vadd.f32 %v492, 3.0
      %v533 = vadd.f32 %v497, 3.0
      %v534 = vadd.f32 %v500, 3.0
      %v535 = vmax.f32 %v503, 0.0
      %v536 = vmax.f32 %v504, 0.0
      %v537 = vmax.f32 %v505, 0.0
      %v538 = vmax.f32 %v506, 0.0
      %v539 = vmax.f32 %v507, 0.0
      %v540 = vmax.f32 %v508, 0.0
      %v541 = vmax.f32 %v509, 0.0
      %v542 = vmax.f32 %v510, 0.0
      %v543 = vmax.f32 %v511, 0.0
      %v544 = vmax.f32 %v512, 0.0
      %v545 = vmax.f32 %v513, 0.0
      %v546 = vmax.f32 %v514, 0.0
      %v547 = vmax.f32 %v515, 0.0
      %v548 = vmax.f32 %v516, 0.0
      %v549 = vmax.f32 %v517, 0.0
      %v550 = vmax.f32 %v518, 0.0
      %v551 = vmax.f32 %v519, 0.0
      %v552 = vmax.f32 %v520, 0.0
      %v553 = vmax.f32 %v521, 0.0
      %v554 = vmax.f32 %v522, 0.0
      %v555 = vmax.f32 %v523, 0.0
      %v556 = vmax.f32 %v524, 0.0
      %v557 = vmax.f32 %v525, 0.0
      %v558 = vmax.f32 %v526, 0.0
      %v559 = vmax.f32 %v527, 0.0
      %v560 = vmax.f32 %v528, 0.0
      %v561 = vmax.f32 %v529, 0.0
      %v562 = vmax.f32 %v530, 0.0
      %v563 = vmax.f32 %v531, 0.0
      %v564 = vmax.f32 %v532, 0.0
      %v565 = vmax.f32 %v533, 0.0
      %v566 = vmax.f32 %v534, 0.0
      %v567 = vmin.f32 %v535, 6.0
      %v568 = vmin.f32 %v536, 6.0
      %v569 = vmin.f32 %v537, 6.0
      %v570 = vmin.f32 %v538, 6.0
      %v571 = vmin.f32 %v539, 6.0
      %v572 = vmin.f32 %v540, 6.0
      %v573 = vmin.f32 %v541, 6.0
      %v574 = vmin.f32 %v542, 6.0
      %v575 = vmin.f32 %v543, 6.0
      %v576 = vmin.f32 %v544, 6.0
      %v577 = vmin.f32 %v545, 6.0
      %v578 = vmin.f32 %v546, 6.0
      %v579 = vmin.f32 %v547, 6.0
      %v580 = vmin.f32 %v548, 6.0
      %v581 = vmin.f32 %v549, 6.0
      %v582 = vmin.f32 %v550, 6.0
      %v583 = vmin.f32 %v551, 6.0
      %v584 = vmin.f32 %v552, 6.0
      %v585 = vmin.f32 %v553, 6.0
      %v586 = vmin.f32 %v554, 6.0
      %v587 = vmin.f32 %v555, 6.0
      %v588 = vmin.f32 %v556, 6.0
      %v589 = vmin.f32 %v557, 6.0
      %v590 = vmin.f32 %v558, 6.0
      %v591 = vmin.f32 %v559, 6.0
      %v592 = vmin.f32 %v560, 6.0
      %v593 = vmin.f32 %v561, 6.0
      %v594 = vmin.f32 %v562, 6.0
      %v595 = vmin.f32 %v563, 6.0
      %v596 = vmin.f32 %v564, 6.0
      %v597 = vmin.f32 %v565, 6.0
      %v598 = vmin.f32 %v566, 6.0
      %v599 = vmul.f32 %v377, %v567
      %v600 = vmul.f32 %v380, %v568
      %v601 = vmul.f32 %v385, %v569
      %v602 = vmul.f32 %v388, %v570
      %v603 = vmul.f32 %v393, %v571
      %v604 = vmul.f32 %v396, %v572
      %v605 = vmul.f32 %v401, %v573
      %v606 = vmul.f32 %v404, %v574
      %v607 = vmul.f32 %v409, %v575
      %v608 = vmul.f32 %v412, %v576
      %v609 = vmul.f32 %v417, %v577
      %v610 = vmul.f32 %v420, %v578
      %v611 = vmul.f32 %v425, %v579
      %v612 = vmul.f32 %v428, %v580
      %v613 = vmul.f32 %v433, %v581
      %v614 = vmul.f32 %v436, %v582
      %v615 = vmul.f32 %v441, %v583
      %v616 = vmul.f32 %v444, %v584
      %v617 = vmul.f32 %v449, %v585
      %v618 = vmul.f32 %v452, %v586
      %v619 = vmul.f32 %v457, %v587
      %v620 = vmul.f32 %v460, %v588
      %v621 = vmul.f32 %v465, %v589
      %v622 = vmul.f32 %v468, %v590
      %v623 = vmul.f32 %v473, %v591
      %v624 = vmul.f32 %v476, %v592
      %v625 = vmul.f32 %v481, %v593
      %v626 = vmul.f32 %v484, %v594
      %v627 = vmul.f32 %v489, %v595
      %v628 = vmul.f32 %v492, %v596
      %v629 = vmul.f32 %v497, %v597
      %v630 = vmul.f32 %v500, %v598
      %v631 = vmul.f32 %v599, 0.16666667
      %v632 = vmul.f32 %v600, 0.16666667
      %v633 = vmul.f32 %v601, 0.16666667
      %v634 = vmul.f32 %v602, 0.16666667
      %v635 = vmul.f32 %v603, 0.16666667
      %v636 = vmul.f32 %v604, 0.16666667
      %v637 = vmul.f32 %v605, 0.16666667
      %v638 = vmul.f32 %v606, 0.16666667
      %v639 = vmul.f32 %v607, 0.16666667
      %v640 = vmul.f32 %v608, 0.16666667
      %v641 = vmul.f32 %v609, 0.16666667
      %v642 = vmul.f32 %v610, 0.16666667
      %v643 = vmul.f32 %v611, 0.16666667
      %v644 = vmul.f32 %v612, 0.16666667
      %v645 = vmul.f32 %v613, 0.16666667
      %v646 = vmul.f32 %v614, 0.16666667
      %v647 = vmul.f32 %v615, 0.16666667
      %v648 = vmul.f32 %v616, 0.16666667
      %v649 = vmul.f32 %v617, 0.16666667
      %v650 = vmul.f32 %v618, 0.16666667
      %v651 = vmul.f32 %v619, 0.16666667
      %v652 = vmul.f32 %v620, 0.16666667
      %v653 = vmul.f32 %v621, 0.16666667
      %v654 = vmul.f32 %v622, 0.16666667
      %v655 = vmul.f32 %v623, 0.16666667
      %v656 = vmul.f32 %v624, 0.16666667
      %v657 = vmul.f32 %v625, 0.16666667
      %v658 = vmul.f32 %v626, 0.16666667
      %v659 = vmul.f32 %v627, 0.16666667
      %v660 = vmul.f32 %v628, 0.16666667
      %v661 = vmul.f32 %v629, 0.16666667
      %v662 = vmul.f32 %v630, 0.16666667
      %v663 = vlaneseq
      %v664 = vshrl.u32 %v663, 7
      %v665 = vadd.s32 %v664, 8
      %v666 = vadd.s32 %v664, 16
      %v667 = vadd.s32 %v664, 24
      %v668 = vadd.s32 %v664, 32
      %v669 = vadd.s32 %v664, 40
      %v670 = vadd.s32 %v664, 48
      %v671 = vadd.s32 %v664, 56
      %v672 = vadd.s32 %v664, 64
      %v673 = vadd.s32 %v664, 72
      %v674 = vadd.s32 %v664, 80
      %v675 = vadd.s32 %v664, 88
      %v676 = vadd.s32 %v664, 96
      %v677 = vadd.s32 %v664, 104
      %v678 = vadd.s32 %v664, 112
      %v679 = vadd.s32 %v664, 120
      %v680 = vadd.s32 %v664, 128
      %v681 = vadd.s32 %v664, 136
      %v682 = vadd.s32 %v664, 144
      %v683 = vadd.s32 %v664, 152
      %v684 = vadd.s32 %v664, 160
      %v685 = vadd.s32 %v664, 168
      %v686 = vadd.s32 %v664, 176
      %v687 = vadd.s32 %v664, 184
      %v688 = vadd.s32 %v664, 192
      %v689 = vadd.s32 %v664, 200
      %v690 = vadd.s32 %v664, 208
      %v691 = vadd.s32 %v664, 216
      %v692 = vadd.s32 %v664, 224
      %v693 = vadd.s32 %v664, 232
      %v694 = vadd.s32 %v664, 240
      %v695 = vadd.s32 %v664, 248
      %vm696 = vcmp.lt.s32.totalorder %v664, 0
      %v697 = vsub.s32 0, %v664
      %v698 = vsel %vm696, %v697, %v664
      %v699 = vshrl.u32 %v698, 4
      %v700 = vand.u32 %v698, 15
      %v701 = vsub.s32 0, %v700
      %v702 = vsel %vm696, %v701, %v700
      %vm703 = vcmp.lt.s32.totalorder %v665, 0
      %v704 = vsub.s32 0, %v665
      %v705 = vsel %vm703, %v704, %v665
      %v706 = vshrl.u32 %v705, 4
      %v707 = vand.u32 %v705, 15
      %v708 = vsub.s32 0, %v707
      %v709 = vsel %vm703, %v708, %v707
      %vm710 = vcmp.lt.s32.totalorder %v666, 0
      %v711 = vsub.s32 0, %v666
      %v712 = vsel %vm710, %v711, %v666
      %v713 = vshrl.u32 %v712, 4
      %v714 = vand.u32 %v712, 15
      %v715 = vsub.s32 0, %v714
      %v716 = vsel %vm710, %v715, %v714
      %vm717 = vcmp.lt.s32.totalorder %v667, 0
      %v718 = vsub.s32 0, %v667
      %v719 = vsel %vm717, %v718, %v667
      %v720 = vshrl.u32 %v719, 4
      %v721 = vand.u32 %v719, 15
      %v722 = vsub.s32 0, %v721
      %v723 = vsel %vm717, %v722, %v721
      %vm724 = vcmp.lt.s32.totalorder %v668, 0
      %v725 = vsub.s32 0, %v668
      %v726 = vsel %vm724, %v725, %v668
      %v727 = vshrl.u32 %v726, 4
      %v728 = vand.u32 %v726, 15
      %v729 = vsub.s32 0, %v728
      %v730 = vsel %vm724, %v729, %v728
      %vm731 = vcmp.lt.s32.totalorder %v669, 0
      %v732 = vsub.s32 0, %v669
      %v733 = vsel %vm731, %v732, %v669
      %v734 = vshrl.u32 %v733, 4
      %v735 = vand.u32 %v733, 15
      %v736 = vsub.s32 0, %v735
      %v737 = vsel %vm731, %v736, %v735
      %vm738 = vcmp.lt.s32.totalorder %v670, 0
      %v739 = vsub.s32 0, %v670
      %v740 = vsel %vm738, %v739, %v670
      %v741 = vshrl.u32 %v740, 4
      %v742 = vand.u32 %v740, 15
      %v743 = vsub.s32 0, %v742
      %v744 = vsel %vm738, %v743, %v742
      %vm745 = vcmp.lt.s32.totalorder %v671, 0
      %v746 = vsub.s32 0, %v671
      %v747 = vsel %vm745, %v746, %v671
      %v748 = vshrl.u32 %v747, 4
      %v749 = vand.u32 %v747, 15
      %v750 = vsub.s32 0, %v749
      %v751 = vsel %vm745, %v750, %v749
      %vm752 = vcmp.lt.s32.totalorder %v672, 0
      %v753 = vsub.s32 0, %v672
      %v754 = vsel %vm752, %v753, %v672
      %v755 = vshrl.u32 %v754, 4
      %v756 = vand.u32 %v754, 15
      %v757 = vsub.s32 0, %v756
      %v758 = vsel %vm752, %v757, %v756
      %vm759 = vcmp.lt.s32.totalorder %v673, 0
      %v760 = vsub.s32 0, %v673
      %v761 = vsel %vm759, %v760, %v673
      %v762 = vshrl.u32 %v761, 4
      %v763 = vand.u32 %v761, 15
      %v764 = vsub.s32 0, %v763
      %v765 = vsel %vm759, %v764, %v763
      %vm766 = vcmp.lt.s32.totalorder %v674, 0
      %v767 = vsub.s32 0, %v674
      %v768 = vsel %vm766, %v767, %v674
      %v769 = vshrl.u32 %v768, 4
      %v770 = vand.u32 %v768, 15
      %v771 = vsub.s32 0, %v770
      %v772 = vsel %vm766, %v771, %v770
      %vm773 = vcmp.lt.s32.totalorder %v675, 0
      %v774 = vsub.s32 0, %v675
      %v775 = vsel %vm773, %v774, %v675
      %v776 = vshrl.u32 %v775, 4
      %v777 = vand.u32 %v775, 15
      %v778 = vsub.s32 0, %v777
      %v779 = vsel %vm773, %v778, %v777
      %vm780 = vcmp.lt.s32.totalorder %v676, 0
      %v781 = vsub.s32 0, %v676
      %v782 = vsel %vm780, %v781, %v676
      %v783 = vshrl.u32 %v782, 4
      %v784 = vand.u32 %v782, 15
      %v785 = vsub.s32 0, %v784
      %v786 = vsel %vm780, %v785, %v784
      %vm787 = vcmp.lt.s32.totalorder %v677, 0
      %v788 = vsub.s32 0, %v677
      %v789 = vsel %vm787, %v788, %v677
      %v790 = vshrl.u32 %v789, 4
      %v791 = vand.u32 %v789, 15
      %v792 = vsub.s32 0, %v791
      %v793 = vsel %vm787, %v792, %v791
      %vm794 = vcmp.lt.s32.totalorder %v678, 0
      %v795 = vsub.s32 0, %v678
      %v796 = vsel %vm794, %v795, %v678
      %v797 = vshrl.u32 %v796, 4
      %v798 = vand.u32 %v796, 15
      %v799 = vsub.s32 0, %v798
      %v800 = vsel %vm794, %v799, %v798
      %vm801 = vcmp.lt.s32.totalorder %v679, 0
      %v802 = vsub.s32 0, %v679
      %v803 = vsel %vm801, %v802, %v679
      %v804 = vshrl.u32 %v803, 4
      %v805 = vand.u32 %v803, 15
      %v806 = vsub.s32 0, %v805
      %v807 = vsel %vm801, %v806, %v805
      %vm808 = vcmp.lt.s32.totalorder %v680, 0
      %v809 = vsub.s32 0, %v680
      %v810 = vsel %vm808, %v809, %v680
      %v811 = vshrl.u32 %v810, 4
      %v812 = vand.u32 %v810, 15
      %v813 = vsub.s32 0, %v812
      %v814 = vsel %vm808, %v813, %v812
      %vm815 = vcmp.lt.s32.totalorder %v681, 0
      %v816 = vsub.s32 0, %v681
      %v817 = vsel %vm815, %v816, %v681
      %v818 = vshrl.u32 %v817, 4
      %v819 = vand.u32 %v817, 15
      %v820 = vsub.s32 0, %v819
      %v821 = vsel %vm815, %v820, %v819
      %vm822 = vcmp.lt.s32.totalorder %v682, 0
      %v823 = vsub.s32 0, %v682
      %v824 = vsel %vm822, %v823, %v682
      %v825 = vshrl.u32 %v824, 4
      %v826 = vand.u32 %v824, 15
      %v827 = vsub.s32 0, %v826
      %v828 = vsel %vm822, %v827, %v826
      %vm829 = vcmp.lt.s32.totalorder %v683, 0
      %v830 = vsub.s32 0, %v683
      %v831 = vsel %vm829, %v830, %v683
      %v832 = vshrl.u32 %v831, 4
      %v833 = vand.u32 %v831, 15
      %v834 = vsub.s32 0, %v833
      %v835 = vsel %vm829, %v834, %v833
      %vm836 = vcmp.lt.s32.totalorder %v684, 0
      %v837 = vsub.s32 0, %v684
      %v838 = vsel %vm836, %v837, %v684
      %v839 = vshrl.u32 %v838, 4
      %v840 = vand.u32 %v838, 15
      %v841 = vsub.s32 0, %v840
      %v842 = vsel %vm836, %v841, %v840
      %vm843 = vcmp.lt.s32.totalorder %v685, 0
      %v844 = vsub.s32 0, %v685
      %v845 = vsel %vm843, %v844, %v685
      %v846 = vshrl.u32 %v845, 4
      %v847 = vand.u32 %v845, 15
      %v848 = vsub.s32 0, %v847
      %v849 = vsel %vm843, %v848, %v847
      %vm850 = vcmp.lt.s32.totalorder %v686, 0
      %v851 = vsub.s32 0, %v686
      %v852 = vsel %vm850, %v851, %v686
      %v853 = vshrl.u32 %v852, 4
      %v854 = vand.u32 %v852, 15
      %v855 = vsub.s32 0, %v854
      %v856 = vsel %vm850, %v855, %v854
      %vm857 = vcmp.lt.s32.totalorder %v687, 0
      %v858 = vsub.s32 0, %v687
      %v859 = vsel %vm857, %v858, %v687
      %v860 = vshrl.u32 %v859, 4
      %v861 = vand.u32 %v859, 15
      %v862 = vsub.s32 0, %v861
      %v863 = vsel %vm857, %v862, %v861
      %vm864 = vcmp.lt.s32.totalorder %v688, 0
      %v865 = vsub.s32 0, %v688
      %v866 = vsel %vm864, %v865, %v688
      %v867 = vshrl.u32 %v866, 4
      %v868 = vand.u32 %v866, 15
      %v869 = vsub.s32 0, %v868
      %v870 = vsel %vm864, %v869, %v868
      %vm871 = vcmp.lt.s32.totalorder %v689, 0
      %v872 = vsub.s32 0, %v689
      %v873 = vsel %vm871, %v872, %v689
      %v874 = vshrl.u32 %v873, 4
      %v875 = vand.u32 %v873, 15
      %v876 = vsub.s32 0, %v875
      %v877 = vsel %vm871, %v876, %v875
      %vm878 = vcmp.lt.s32.totalorder %v690, 0
      %v879 = vsub.s32 0, %v690
      %v880 = vsel %vm878, %v879, %v690
      %v881 = vshrl.u32 %v880, 4
      %v882 = vand.u32 %v880, 15
      %v883 = vsub.s32 0, %v882
      %v884 = vsel %vm878, %v883, %v882
      %vm885 = vcmp.lt.s32.totalorder %v691, 0
      %v886 = vsub.s32 0, %v691
      %v887 = vsel %vm885, %v886, %v691
      %v888 = vshrl.u32 %v887, 4
      %v889 = vand.u32 %v887, 15
      %v890 = vsub.s32 0, %v889
      %v891 = vsel %vm885, %v890, %v889
      %vm892 = vcmp.lt.s32.totalorder %v692, 0
      %v893 = vsub.s32 0, %v692
      %v894 = vsel %vm892, %v893, %v692
      %v895 = vshrl.u32 %v894, 4
      %v896 = vand.u32 %v894, 15
      %v897 = vsub.s32 0, %v896
      %v898 = vsel %vm892, %v897, %v896
      %vm899 = vcmp.lt.s32.totalorder %v693, 0
      %v900 = vsub.s32 0, %v693
      %v901 = vsel %vm899, %v900, %v693
      %v902 = vshrl.u32 %v901, 4
      %v903 = vand.u32 %v901, 15
      %v904 = vsub.s32 0, %v903
      %v905 = vsel %vm899, %v904, %v903
      %vm906 = vcmp.lt.s32.totalorder %v694, 0
      %v907 = vsub.s32 0, %v694
      %v908 = vsel %vm906, %v907, %v694
      %v909 = vshrl.u32 %v908, 4
      %v910 = vand.u32 %v908, 15
      %v911 = vsub.s32 0, %v910
      %v912 = vsel %vm906, %v911, %v910
      %vm913 = vcmp.lt.s32.totalorder %v695, 0
      %v914 = vsub.s32 0, %v695
      %v915 = vsel %vm913, %v914, %v695
      %v916 = vshrl.u32 %v915, 4
      %v917 = vand.u32 %v915, 15
      %v918 = vsub.s32 0, %v917
      %v919 = vsel %vm913, %v918, %v917
      %vm920 = vcmp.ne.s32.totalorder %v702, 0
      %vm921 = vcmp.ne.s32.totalorder %v709, 0
      %vm922 = vcmp.ne.s32.totalorder %v716, 0
      %vm923 = vcmp.ne.s32.totalorder %v723, 0
      %vm924 = vcmp.ne.s32.totalorder %v730, 0
      %vm925 = vcmp.ne.s32.totalorder %v737, 0
      %vm926 = vcmp.ne.s32.totalorder %v744, 0
      %vm927 = vcmp.ne.s32.totalorder %v751, 0
      %vm928 = vcmp.ne.s32.totalorder %v758, 0
      %vm929 = vcmp.ne.s32.totalorder %v765, 0
      %vm930 = vcmp.ne.s32.totalorder %v772, 0
      %vm931 = vcmp.ne.s32.totalorder %v779, 0
      %vm932 = vcmp.ne.s32.totalorder %v786, 0
      %vm933 = vcmp.ne.s32.totalorder %v793, 0
      %vm934 = vcmp.ne.s32.totalorder %v800, 0
      %vm935 = vcmp.ne.s32.totalorder %v807, 0
      %vm936 = vcmp.ne.s32.totalorder %v814, 0
      %vm937 = vcmp.ne.s32.totalorder %v821, 0
      %vm938 = vcmp.ne.s32.totalorder %v828, 0
      %vm939 = vcmp.ne.s32.totalorder %v835, 0
      %vm940 = vcmp.ne.s32.totalorder %v842, 0
      %vm941 = vcmp.ne.s32.totalorder %v849, 0
      %vm942 = vcmp.ne.s32.totalorder %v856, 0
      %vm943 = vcmp.ne.s32.totalorder %v863, 0
      %vm944 = vcmp.ne.s32.totalorder %v870, 0
      %vm945 = vcmp.ne.s32.totalorder %v877, 0
      %vm946 = vcmp.ne.s32.totalorder %v884, 0
      %vm947 = vcmp.ne.s32.totalorder %v891, 0
      %vm948 = vcmp.ne.s32.totalorder %v898, 0
      %vm949 = vcmp.ne.s32.totalorder %v905, 0
      %vm950 = vcmp.ne.s32.totalorder %v912, 0
      %vm951 = vcmp.ne.s32.totalorder %v919, 0
      %vm952 = vcmp.lt.s32.totalorder %v702, 0
      %vm953 = vcmp.lt.s32.totalorder %v709, 0
      %vm954 = vcmp.lt.s32.totalorder %v716, 0
      %vm955 = vcmp.lt.s32.totalorder %v723, 0
      %vm956 = vcmp.lt.s32.totalorder %v730, 0
      %vm957 = vcmp.lt.s32.totalorder %v737, 0
      %vm958 = vcmp.lt.s32.totalorder %v744, 0
      %vm959 = vcmp.lt.s32.totalorder %v751, 0
      %vm960 = vcmp.lt.s32.totalorder %v758, 0
      %vm961 = vcmp.lt.s32.totalorder %v765, 0
      %vm962 = vcmp.lt.s32.totalorder %v772, 0
      %vm963 = vcmp.lt.s32.totalorder %v779, 0
      %vm964 = vcmp.lt.s32.totalorder %v786, 0
      %vm965 = vcmp.lt.s32.totalorder %v793, 0
      %vm966 = vcmp.lt.s32.totalorder %v800, 0
      %vm967 = vcmp.lt.s32.totalorder %v807, 0
      %vm968 = vcmp.lt.s32.totalorder %v814, 0
      %vm969 = vcmp.lt.s32.totalorder %v821, 0
      %vm970 = vcmp.lt.s32.totalorder %v828, 0
      %vm971 = vcmp.lt.s32.totalorder %v835, 0
      %vm972 = vcmp.lt.s32.totalorder %v842, 0
      %vm973 = vcmp.lt.s32.totalorder %v849, 0
      %vm974 = vcmp.lt.s32.totalorder %v856, 0
      %vm975 = vcmp.lt.s32.totalorder %v863, 0
      %vm976 = vcmp.lt.s32.totalorder %v870, 0
      %vm977 = vcmp.lt.s32.totalorder %v877, 0
      %vm978 = vcmp.lt.s32.totalorder %v884, 0
      %vm979 = vcmp.lt.s32.totalorder %v891, 0
      %vm980 = vcmp.lt.s32.totalorder %v898, 0
      %vm981 = vcmp.lt.s32.totalorder %v905, 0
      %vm982 = vcmp.lt.s32.totalorder %v912, 0
      %vm983 = vcmp.lt.s32.totalorder %v919, 0
      %vm984 = vmand %vm952, %vm920
      %vm985 = vmand %vm953, %vm921
      %vm986 = vmand %vm954, %vm922
      %vm987 = vmand %vm955, %vm923
      %vm988 = vmand %vm956, %vm924
      %vm989 = vmand %vm957, %vm925
      %vm990 = vmand %vm958, %vm926
      %vm991 = vmand %vm959, %vm927
      %vm992 = vmand %vm960, %vm928
      %vm993 = vmand %vm961, %vm929
      %vm994 = vmand %vm962, %vm930
      %vm995 = vmand %vm963, %vm931
      %vm996 = vmand %vm964, %vm932
      %vm997 = vmand %vm965, %vm933
      %vm998 = vmand %vm966, %vm934
      %vm999 = vmand %vm967, %vm935
      %vm1000 = vmand %vm968, %vm936
      %vm1001 = vmand %vm969, %vm937
      %vm1002 = vmand %vm970, %vm938
      %vm1003 = vmand %vm971, %vm939
      %vm1004 = vmand %vm972, %vm940
      %vm1005 = vmand %vm973, %vm941
      %vm1006 = vmand %vm974, %vm942
      %vm1007 = vmand %vm975, %vm943
      %vm1008 = vmand %vm976, %vm944
      %vm1009 = vmand %vm977, %vm945
      %vm1010 = vmand %vm978, %vm946
      %vm1011 = vmand %vm979, %vm947
      %vm1012 = vmand %vm980, %vm948
      %vm1013 = vmand %vm981, %vm949
      %vm1014 = vmand %vm982, %vm950
      %vm1015 = vmand %vm983, %vm951
      %v1016 = vadd.s32 %v702, 16
      %v1017 = vadd.s32 %v709, 16
      %v1018 = vadd.s32 %v716, 16
      %v1019 = vadd.s32 %v723, 16
      %v1020 = vadd.s32 %v730, 16
      %v1021 = vadd.s32 %v737, 16
      %v1022 = vadd.s32 %v744, 16
      %v1023 = vadd.s32 %v751, 16
      %v1024 = vadd.s32 %v758, 16
      %v1025 = vadd.s32 %v765, 16
      %v1026 = vadd.s32 %v772, 16
      %v1027 = vadd.s32 %v779, 16
      %v1028 = vadd.s32 %v786, 16
      %v1029 = vadd.s32 %v793, 16
      %v1030 = vadd.s32 %v800, 16
      %v1031 = vadd.s32 %v807, 16
      %v1032 = vadd.s32 %v814, 16
      %v1033 = vadd.s32 %v821, 16
      %v1034 = vadd.s32 %v828, 16
      %v1035 = vadd.s32 %v835, 16
      %v1036 = vadd.s32 %v842, 16
      %v1037 = vadd.s32 %v849, 16
      %v1038 = vadd.s32 %v856, 16
      %v1039 = vadd.s32 %v863, 16
      %v1040 = vadd.s32 %v870, 16
      %v1041 = vadd.s32 %v877, 16
      %v1042 = vadd.s32 %v884, 16
      %v1043 = vadd.s32 %v891, 16
      %v1044 = vadd.s32 %v898, 16
      %v1045 = vadd.s32 %v905, 16
      %v1046 = vadd.s32 %v912, 16
      %v1047 = vadd.s32 %v919, 16
      %v1048 = vsel %vm984, %v1016, %v702
      %v1049 = vsel %vm985, %v1017, %v709
      %v1050 = vsel %vm986, %v1018, %v716
      %v1051 = vsel %vm987, %v1019, %v723
      %v1052 = vsel %vm988, %v1020, %v730
      %v1053 = vsel %vm989, %v1021, %v737
      %v1054 = vsel %vm990, %v1022, %v744
      %v1055 = vsel %vm991, %v1023, %v751
      %v1056 = vsel %vm992, %v1024, %v758
      %v1057 = vsel %vm993, %v1025, %v765
      %v1058 = vsel %vm994, %v1026, %v772
      %v1059 = vsel %vm995, %v1027, %v779
      %v1060 = vsel %vm996, %v1028, %v786
      %v1061 = vsel %vm997, %v1029, %v793
      %v1062 = vsel %vm998, %v1030, %v800
      %v1063 = vsel %vm999, %v1031, %v807
      %v1064 = vsel %vm1000, %v1032, %v814
      %v1065 = vsel %vm1001, %v1033, %v821
      %v1066 = vsel %vm1002, %v1034, %v828
      %v1067 = vsel %vm1003, %v1035, %v835
      %v1068 = vsel %vm1004, %v1036, %v842
      %v1069 = vsel %vm1005, %v1037, %v849
      %v1070 = vsel %vm1006, %v1038, %v856
      %v1071 = vsel %vm1007, %v1039, %v863
      %v1072 = vsel %vm1008, %v1040, %v870
      %v1073 = vsel %vm1009, %v1041, %v877
      %v1074 = vsel %vm1010, %v1042, %v884
      %v1075 = vsel %vm1011, %v1043, %v891
      %v1076 = vsel %vm1012, %v1044, %v898
      %v1077 = vsel %vm1013, %v1045, %v905
      %v1078 = vsel %vm1014, %v1046, %v912
      %v1079 = vsel %vm1015, %v1047, %v919
      %vm1080 = vcmp.eq.s32.totalorder %v1048, 0
      %vm1081 = vcmp.eq.s32.totalorder %v1049, 0
      %vm1082 = vcmp.eq.s32.totalorder %v1050, 0
      %vm1083 = vcmp.eq.s32.totalorder %v1051, 0
      %vm1084 = vcmp.eq.s32.totalorder %v1052, 0
      %vm1085 = vcmp.eq.s32.totalorder %v1053, 0
      %vm1086 = vcmp.eq.s32.totalorder %v1054, 0
      %vm1087 = vcmp.eq.s32.totalorder %v1055, 0
      %vm1088 = vcmp.eq.s32.totalorder %v1056, 0
      %vm1089 = vcmp.eq.s32.totalorder %v1057, 0
      %vm1090 = vcmp.eq.s32.totalorder %v1058, 0
      %vm1091 = vcmp.eq.s32.totalorder %v1059, 0
      %vm1092 = vcmp.eq.s32.totalorder %v1060, 0
      %vm1093 = vcmp.eq.s32.totalorder %v1061, 0
      %vm1094 = vcmp.eq.s32.totalorder %v1062, 0
      %vm1095 = vcmp.eq.s32.totalorder %v1063, 0
      %vm1096 = vcmp.eq.s32.totalorder %v1064, 0
      %vm1097 = vcmp.eq.s32.totalorder %v1065, 0
      %vm1098 = vcmp.eq.s32.totalorder %v1066, 0
      %vm1099 = vcmp.eq.s32.totalorder %v1067, 0
      %vm1100 = vcmp.eq.s32.totalorder %v1068, 0
      %vm1101 = vcmp.eq.s32.totalorder %v1069, 0
      %vm1102 = vcmp.eq.s32.totalorder %v1070, 0
      %vm1103 = vcmp.eq.s32.totalorder %v1071, 0
      %vm1104 = vcmp.eq.s32.totalorder %v1072, 0
      %vm1105 = vcmp.eq.s32.totalorder %v1073, 0
      %vm1106 = vcmp.eq.s32.totalorder %v1074, 0
      %vm1107 = vcmp.eq.s32.totalorder %v1075, 0
      %vm1108 = vcmp.eq.s32.totalorder %v1076, 0
      %vm1109 = vcmp.eq.s32.totalorder %v1077, 0
      %vm1110 = vcmp.eq.s32.totalorder %v1078, 0
      %vm1111 = vcmp.eq.s32.totalorder %v1079, 0
      %v1113 = vrot.slane %v662, 7
      %vm1146 = vcmask 1040384
      %v1147 = vrot.slane %v631, 7
      %v1148 = vrot.slane %v632, 7
      %v1149 = vsel %vm1146, %v1147, %v1148
      %v1150 = vrot.slane %v633, 7
      %v1151 = vsel %vm1146, %v1148, %v1150
      %v1152 = vrot.slane %v634, 7
      %v1153 = vsel %vm1146, %v1150, %v1152
      %v1154 = vrot.slane %v635, 7
      %v1155 = vsel %vm1146, %v1152, %v1154
      %v1156 = vrot.slane %v636, 7
      %v1157 = vsel %vm1146, %v1154, %v1156
      %v1158 = vrot.slane %v637, 7
      %v1159 = vsel %vm1146, %v1156, %v1158
      %v1160 = vrot.slane %v638, 7
      %v1161 = vsel %vm1146, %v1158, %v1160
      %v1162 = vrot.slane %v639, 7
      %v1163 = vsel %vm1146, %v1160, %v1162
      %v1164 = vrot.slane %v640, 7
      %v1165 = vsel %vm1146, %v1162, %v1164
      %v1166 = vrot.slane %v641, 7
      %v1167 = vsel %vm1146, %v1164, %v1166
      %v1168 = vrot.slane %v642, 7
      %v1169 = vsel %vm1146, %v1166, %v1168
      %v1170 = vrot.slane %v643, 7
      %v1171 = vsel %vm1146, %v1168, %v1170
      %v1172 = vrot.slane %v644, 7
      %v1173 = vsel %vm1146, %v1170, %v1172
      %v1174 = vrot.slane %v645, 7
      %v1175 = vsel %vm1146, %v1172, %v1174
      %v1176 = vrot.slane %v646, 7
      %v1177 = vsel %vm1146, %v1174, %v1176
      %v1178 = vrot.slane %v647, 7
      %v1179 = vsel %vm1146, %v1176, %v1178
      %v1180 = vrot.slane %v648, 7
      %v1181 = vsel %vm1146, %v1178, %v1180
      %v1182 = vrot.slane %v649, 7
      %v1183 = vsel %vm1146, %v1180, %v1182
      %v1184 = vrot.slane %v650, 7
      %v1185 = vsel %vm1146, %v1182, %v1184
      %v1186 = vrot.slane %v651, 7
      %v1187 = vsel %vm1146, %v1184, %v1186
      %v1188 = vrot.slane %v652, 7
      %v1189 = vsel %vm1146, %v1186, %v1188
      %v1190 = vrot.slane %v653, 7
      %v1191 = vsel %vm1146, %v1188, %v1190
      %v1192 = vrot.slane %v654, 7
      %v1193 = vsel %vm1146, %v1190, %v1192
      %v1194 = vrot.slane %v655, 7
      %v1195 = vsel %vm1146, %v1192, %v1194
      %v1196 = vrot.slane %v656, 7
      %v1197 = vsel %vm1146, %v1194, %v1196
      %v1198 = vrot.slane %v657, 7
      %v1199 = vsel %vm1146, %v1196, %v1198
      %v1200 = vrot.slane %v658, 7
      %v1201 = vsel %vm1146, %v1198, %v1200
      %v1202 = vrot.slane %v659, 7
      %v1203 = vsel %vm1146, %v1200, %v1202
      %v1204 = vrot.slane %v660, 7
      %v1205 = vsel %vm1146, %v1202, %v1204
      %v1206 = vrot.slane %v661, 7
      %v1207 = vsel %vm1146, %v1204, %v1206
      %v1208 = vsel %vm1146, %v1206, %v1113
      %v1241 = vsel %vm1146, %v1113, %v1147
      %v1242 = vsel %vm1080, 0.0, %v1241
      %v1243 = vsel %vm1081, 0.0, %v1149
      %v1244 = vsel %vm1082, 0.0, %v1151
      %v1245 = vsel %vm1083, 0.0, %v1153
      %v1246 = vsel %vm1084, 0.0, %v1155
      %v1247 = vsel %vm1085, 0.0, %v1157
      %v1248 = vsel %vm1086, 0.0, %v1159
      %v1249 = vsel %vm1087, 0.0, %v1161
      %v1250 = vsel %vm1088, 0.0, %v1163
      %v1251 = vsel %vm1089, 0.0, %v1165
      %v1252 = vsel %vm1090, 0.0, %v1167
      %v1253 = vsel %vm1091, 0.0, %v1169
      %v1254 = vsel %vm1092, 0.0, %v1171
      %v1255 = vsel %vm1093, 0.0, %v1173
      %v1256 = vsel %vm1094, 0.0, %v1175
      %v1257 = vsel %vm1095, 0.0, %v1177
      %v1258 = vsel %vm1096, 0.0, %v1179
      %v1259 = vsel %vm1097, 0.0, %v1181
      %v1260 = vsel %vm1098, 0.0, %v1183
      %v1261 = vsel %vm1099, 0.0, %v1185
      %v1262 = vsel %vm1100, 0.0, %v1187
      %v1263 = vsel %vm1101, 0.0, %v1189
      %v1264 = vsel %vm1102, 0.0, %v1191
      %v1265 = vsel %vm1103, 0.0, %v1193
      %v1266 = vsel %vm1104, 0.0, %v1195
      %v1267 = vsel %vm1105, 0.0, %v1197
      %v1268 = vsel %vm1106, 0.0, %v1199
      %v1269 = vsel %vm1107, 0.0, %v1201
      %v1270 = vsel %vm1108, 0.0, %v1203
      %v1271 = vsel %vm1109, 0.0, %v1205
      %v1272 = vsel %vm1110, 0.0, %v1207
      %v1273 = vsel %vm1111, 0.0, %v1208
      %vm1274 = vcmp.eq.s32.totalorder %v1048, 15
      %vm1275 = vcmp.eq.s32.totalorder %v1049, 15
      %vm1276 = vcmp.eq.s32.totalorder %v1050, 15
      %vm1277 = vcmp.eq.s32.totalorder %v1051, 15
      %vm1278 = vcmp.eq.s32.totalorder %v1052, 15
      %vm1279 = vcmp.eq.s32.totalorder %v1053, 15
      %vm1280 = vcmp.eq.s32.totalorder %v1054, 15
      %vm1281 = vcmp.eq.s32.totalorder %v1055, 15
      %vm1282 = vcmp.eq.s32.totalorder %v1056, 15
      %vm1283 = vcmp.eq.s32.totalorder %v1057, 15
      %vm1284 = vcmp.eq.s32.totalorder %v1058, 15
      %vm1285 = vcmp.eq.s32.totalorder %v1059, 15
      %vm1286 = vcmp.eq.s32.totalorder %v1060, 15
      %vm1287 = vcmp.eq.s32.totalorder %v1061, 15
      %vm1288 = vcmp.eq.s32.totalorder %v1062, 15
      %vm1289 = vcmp.eq.s32.totalorder %v1063, 15
      %vm1290 = vcmp.eq.s32.totalorder %v1064, 15
      %vm1291 = vcmp.eq.s32.totalorder %v1065, 15
      %vm1292 = vcmp.eq.s32.totalorder %v1066, 15
      %vm1293 = vcmp.eq.s32.totalorder %v1067, 15
      %vm1294 = vcmp.eq.s32.totalorder %v1068, 15
      %vm1295 = vcmp.eq.s32.totalorder %v1069, 15
      %vm1296 = vcmp.eq.s32.totalorder %v1070, 15
      %vm1297 = vcmp.eq.s32.totalorder %v1071, 15
      %vm1298 = vcmp.eq.s32.totalorder %v1072, 15
      %vm1299 = vcmp.eq.s32.totalorder %v1073, 15
      %vm1300 = vcmp.eq.s32.totalorder %v1074, 15
      %vm1301 = vcmp.eq.s32.totalorder %v1075, 15
      %vm1302 = vcmp.eq.s32.totalorder %v1076, 15
      %vm1303 = vcmp.eq.s32.totalorder %v1077, 15
      %vm1304 = vcmp.eq.s32.totalorder %v1078, 15
      %vm1305 = vcmp.eq.s32.totalorder %v1079, 15
      %vm1306 = vcmask 1046528
      %v1307 = vrot.slane %v631, 1
      %v1308 = vrot.slane %v632, 1
      %v1309 = vsel %vm1306, %v1307, %v1308
      %v1310 = vrot.slane %v633, 1
      %v1311 = vsel %vm1306, %v1308, %v1310
      %v1312 = vrot.slane %v634, 1
      %v1313 = vsel %vm1306, %v1310, %v1312
      %v1314 = vrot.slane %v635, 1
      %v1315 = vsel %vm1306, %v1312, %v1314
      %v1316 = vrot.slane %v636, 1
      %v1317 = vsel %vm1306, %v1314, %v1316
      %v1318 = vrot.slane %v637, 1
      %v1319 = vsel %vm1306, %v1316, %v1318
      %v1320 = vrot.slane %v638, 1
      %v1321 = vsel %vm1306, %v1318, %v1320
      %v1322 = vrot.slane %v639, 1
      %v1323 = vsel %vm1306, %v1320, %v1322
      %v1324 = vrot.slane %v640, 1
      %v1325 = vsel %vm1306, %v1322, %v1324
      %v1326 = vrot.slane %v641, 1
      %v1327 = vsel %vm1306, %v1324, %v1326
      %v1328 = vrot.slane %v642, 1
      %v1329 = vsel %vm1306, %v1326, %v1328
      %v1330 = vrot.slane %v643, 1
      %v1331 = vsel %vm1306, %v1328, %v1330
      %v1332 = vrot.slane %v644, 1
      %v1333 = vsel %vm1306, %v1330, %v1332
      %v1334 = vrot.slane %v645, 1
      %v1335 = vsel %vm1306, %v1332, %v1334
      %v1336 = vrot.slane %v646, 1
      %v1337 = vsel %vm1306, %v1334, %v1336
      %v1338 = vrot.slane %v647, 1
      %v1339 = vsel %vm1306, %v1336, %v1338
      %v1340 = vrot.slane %v648, 1
      %v1341 = vsel %vm1306, %v1338, %v1340
      %v1342 = vrot.slane %v649, 1
      %v1343 = vsel %vm1306, %v1340, %v1342
      %v1344 = vrot.slane %v650, 1
      %v1345 = vsel %vm1306, %v1342, %v1344
      %v1346 = vrot.slane %v651, 1
      %v1347 = vsel %vm1306, %v1344, %v1346
      %v1348 = vrot.slane %v652, 1
      %v1349 = vsel %vm1306, %v1346, %v1348
      %v1350 = vrot.slane %v653, 1
      %v1351 = vsel %vm1306, %v1348, %v1350
      %v1352 = vrot.slane %v654, 1
      %v1353 = vsel %vm1306, %v1350, %v1352
      %v1354 = vrot.slane %v655, 1
      %v1355 = vsel %vm1306, %v1352, %v1354
      %v1356 = vrot.slane %v656, 1
      %v1357 = vsel %vm1306, %v1354, %v1356
      %v1358 = vrot.slane %v657, 1
      %v1359 = vsel %vm1306, %v1356, %v1358
      %v1360 = vrot.slane %v658, 1
      %v1361 = vsel %vm1306, %v1358, %v1360
      %v1362 = vrot.slane %v659, 1
      %v1363 = vsel %vm1306, %v1360, %v1362
      %v1364 = vrot.slane %v660, 1
      %v1365 = vsel %vm1306, %v1362, %v1364
      %v1366 = vrot.slane %v661, 1
      %v1367 = vsel %vm1306, %v1364, %v1366
      %v1368 = vrot.slane %v662, 1
      %v1369 = vsel %vm1306, %v1366, %v1368
      %v1403 = vsel %vm1306, %v1368, %v1307
      %v1404 = vsel %vm1274, 0.0, %v1309
      %v1405 = vsel %vm1275, 0.0, %v1311
      %v1406 = vsel %vm1276, 0.0, %v1313
      %v1407 = vsel %vm1277, 0.0, %v1315
      %v1408 = vsel %vm1278, 0.0, %v1317
      %v1409 = vsel %vm1279, 0.0, %v1319
      %v1410 = vsel %vm1280, 0.0, %v1321
      %v1411 = vsel %vm1281, 0.0, %v1323
      %v1412 = vsel %vm1282, 0.0, %v1325
      %v1413 = vsel %vm1283, 0.0, %v1327
      %v1414 = vsel %vm1284, 0.0, %v1329
      %v1415 = vsel %vm1285, 0.0, %v1331
      %v1416 = vsel %vm1286, 0.0, %v1333
      %v1417 = vsel %vm1287, 0.0, %v1335
      %v1418 = vsel %vm1288, 0.0, %v1337
      %v1419 = vsel %vm1289, 0.0, %v1339
      %v1420 = vsel %vm1290, 0.0, %v1341
      %v1421 = vsel %vm1291, 0.0, %v1343
      %v1422 = vsel %vm1292, 0.0, %v1345
      %v1423 = vsel %vm1293, 0.0, %v1347
      %v1424 = vsel %vm1294, 0.0, %v1349
      %v1425 = vsel %vm1295, 0.0, %v1351
      %v1426 = vsel %vm1296, 0.0, %v1353
      %v1427 = vsel %vm1297, 0.0, %v1355
      %v1428 = vsel %vm1298, 0.0, %v1357
      %v1429 = vsel %vm1299, 0.0, %v1359
      %v1430 = vsel %vm1300, 0.0, %v1361
      %v1431 = vsel %vm1301, 0.0, %v1363
      %v1432 = vsel %vm1302, 0.0, %v1365
      %v1433 = vsel %vm1303, 0.0, %v1367
      %v1434 = vsel %vm1304, 0.0, %v1369
      %v1435 = vsel %vm1305, 0.0, %v1403
      %v1436 = vpack.c.bf16 %v1243, %v1242
      %v1437 = vpack.c.bf16 %v1245, %v1244
      %v1438 = vpack.c.bf16 %v1247, %v1246
      %v1439 = vpack.c.bf16 %v1249, %v1248
      %v1440 = vpack.c.bf16 %v1251, %v1250
      %v1441 = vpack.c.bf16 %v1253, %v1252
      %v1442 = vpack.c.bf16 %v1255, %v1254
      %v1443 = vpack.c.bf16 %v1257, %v1256
      %v1444 = vpack.c.bf16 %v1259, %v1258
      %v1445 = vpack.c.bf16 %v1261, %v1260
      %v1446 = vpack.c.bf16 %v1263, %v1262
      %v1447 = vpack.c.bf16 %v1265, %v1264
      %v1448 = vpack.c.bf16 %v1267, %v1266
      %v1449 = vpack.c.bf16 %v1269, %v1268
      %v1450 = vpack.c.bf16 %v1271, %v1270
      %v1451 = vpack.c.bf16 %v1273, %v1272
      %s1452 = scalar_lea.vmem [#allocation2], 24
      %1453 = vst [vmem:[%s1452] sm:$0xff] %v1436
      %1454 = vst [vmem:[%s1452 + $0x18] sm:$0xff] %v1437
      %1455 = vst [vmem:[%s1452 + $0x30] sm:$0xff] %v1438
      %1456 = vst [vmem:[%s1452 + $0x48] sm:$0xff] %v1439
      %1457 = vst [vmem:[%s1452 + $0x60] sm:$0xff] %v1440
      %1458 = vst [vmem:[%s1452 + $0x78] sm:$0xff] %v1441
      %1459 = vst [vmem:[%s1452 + $0x90] sm:$0xff] %v1442
      %1460 = vst [vmem:[%s1452 + $0xa8] sm:$0xff] %v1443
      %1461 = vst [vmem:[%s1452 + $0xc0] sm:$0xff] %v1444
      %1462 = vst [vmem:[%s1452 + $0xd8] sm:$0xff] %v1445
      %1463 = vst [vmem:[%s1452 + $0xf0] sm:$0xff] %v1446
      %1464 = vst [vmem:[%s1452 + $0x108] sm:$0xff] %v1447
      %1465 = vst [vmem:[%s1452 + $0x120] sm:$0xff] %v1448
      %1466 = vst [vmem:[%s1452 + $0x138] sm:$0xff] %v1449
      %1467 = vst [vmem:[%s1452 + $0x150] sm:$0xff] %v1450
      %1468 = vst [vmem:[%s1452 + $0x168] sm:$0xff] %v1451
      %v1469 = vpack.c.bf16 %v632, %v631
      %v1470 = vpack.c.bf16 %v634, %v633
      %v1471 = vpack.c.bf16 %v636, %v635
      %v1472 = vpack.c.bf16 %v638, %v637
      %v1473 = vpack.c.bf16 %v640, %v639
      %v1474 = vpack.c.bf16 %v642, %v641
      %v1475 = vpack.c.bf16 %v644, %v643
      %v1476 = vpack.c.bf16 %v646, %v645
      %v1477 = vpack.c.bf16 %v648, %v647
      %v1478 = vpack.c.bf16 %v650, %v649
      %v1479 = vpack.c.bf16 %v652, %v651
      %v1480 = vpack.c.bf16 %v654, %v653
      %v1481 = vpack.c.bf16 %v656, %v655
      %v1482 = vpack.c.bf16 %v658, %v657
      %v1483 = vpack.c.bf16 %v660, %v659
      %v1484 = vpack.c.bf16 %v662, %v661
      %1485 = vst [vmem:[%s1452 + $0x8] sm:$0xff] %v1469
      %1486 = vst [vmem:[%s1452 + $0x20] sm:$0xff] %v1470
      %1487 = vst [vmem:[%s1452 + $0x38] sm:$0xff] %v1471
      %1488 = vst [vmem:[%s1452 + $0x50] sm:$0xff] %v1472
      %1489 = vst [vmem:[%s1452 + $0x68] sm:$0xff] %v1473
      %1490 = vst [vmem:[%s1452 + $0x80] sm:$0xff] %v1474
      %1491 = vst [vmem:[%s1452 + $0x98] sm:$0xff] %v1475
      %1492 = vst [vmem:[%s1452 + $0xb0] sm:$0xff] %v1476
      %1493 = vst [vmem:[%s1452 + $0xc8] sm:$0xff] %v1477
      %1494 = vst [vmem:[%s1452 + $0xe0] sm:$0xff] %v1478
      %1495 = vst [vmem:[%s1452 + $0xf8] sm:$0xff] %v1479
      %1496 = vst [vmem:[%s1452 + $0x110] sm:$0xff] %v1480
      %1497 = vst [vmem:[%s1452 + $0x128] sm:$0xff] %v1481
      %1498 = vst [vmem:[%s1452 + $0x140] sm:$0xff] %v1482
      %1499 = vst [vmem:[%s1452 + $0x158] sm:$0xff] %v1483
      %1500 = vst [vmem:[%s1452 + $0x170] sm:$0xff] %v1484
      %v1501 = vpack.c.bf16 %v1405, %v1404
      %v1502 = vpack.c.bf16 %v1407, %v1406
      %v1503 = vpack.c.bf16 %v1409, %v1408
      %v1504 = vpack.c.bf16 %v1411, %v1410
      %v1505 = vpack.c.bf16 %v1413, %v1412
      %v1506 = vpack.c.bf16 %v1415, %v1414
      %v1507 = vpack.c.bf16 %v1417, %v1416
      %v1508 = vpack.c.bf16 %v1419, %v1418
      %v1509 = vpack.c.bf16 %v1421, %v1420
      %v1510 = vpack.c.bf16 %v1423, %v1422
      %v1511 = vpack.c.bf16 %v1425, %v1424
      %v1512 = vpack.c.bf16 %v1427, %v1426
      %v1513 = vpack.c.bf16 %v1429, %v1428
      %v1514 = vpack.c.bf16 %v1431, %v1430
      %v1515 = vpack.c.bf16 %v1433, %v1432
      %v1516 = vpack.c.bf16 %v1435, %v1434
      %1517 = vst [vmem:[%s1452 + $0x10] sm:$0xff] %v1501
      %1518 = vst [vmem:[%s1452 + $0x28] sm:$0xff] %v1502
      %1519 = vst [vmem:[%s1452 + $0x40] sm:$0xff] %v1503
      %1520 = vst [vmem:[%s1452 + $0x58] sm:$0xff] %v1504
      %1521 = vst [vmem:[%s1452 + $0x70] sm:$0xff] %v1505
      %1522 = vst [vmem:[%s1452 + $0x88] sm:$0xff] %v1506
      %1523 = vst [vmem:[%s1452 + $0xa0] sm:$0xff] %v1507
      %1524 = vst [vmem:[%s1452 + $0xb8] sm:$0xff] %v1508
      %1525 = vst [vmem:[%s1452 + $0xd0] sm:$0xff] %v1509
      %1526 = vst [vmem:[%s1452 + $0xe8] sm:$0xff] %v1510
      %1527 = vst [vmem:[%s1452 + $0x100] sm:$0xff] %v1511
      %1528 = vst [vmem:[%s1452 + $0x118] sm:$0xff] %v1512
      %1529 = vst [vmem:[%s1452 + $0x130] sm:$0xff] %v1513
      %1530 = vst [vmem:[%s1452 + $0x148] sm:$0xff] %v1514
      %1531 = vst [vmem:[%s1452 + $0x160] sm:$0xff] %v1515
      %1532 = vst [vmem:[%s1452 + $0x178] sm:$0xff] %v1516
      %v1533 = vld [vmem:[#allocation2] sm:$0xff]
      %v1534 = vld [vmem:[#allocation2 + $0x8] sm:$0xff]
      %v1535 = vld [vmem:[#allocation2 + $0x10] sm:$0xff]
      %v1536 = vld [vmem:[#allocation2 + $0x18] sm:$0xff]
      %v1537 = vld [vmem:[#allocation2 + $0x20] sm:$0xff]
      %v1538 = vld [vmem:[#allocation2 + $0x28] sm:$0xff]
      %v1539 = vld [vmem:[#allocation2 + $0x30] sm:$0xff]
      %v1540 = vld [vmem:[#allocation2 + $0x38] sm:$0xff]
      %v1541 = vld [vmem:[#allocation2 + $0x40] sm:$0xff]
      %v1542 = vld [vmem:[#allocation2 + $0x48] sm:$0xff]
      %v1543 = vld [vmem:[#allocation2 + $0x50] sm:$0xff]
      %v1544 = vld [vmem:[#allocation2 + $0x58] sm:$0xff]
      %v1545 = vld [vmem:[#allocation2 + $0x60] sm:$0xff]
      %v1546 = vld [vmem:[#allocation2 + $0x68] sm:$0xff]
      %v1547 = vld [vmem:[#allocation2 + $0x70] sm:$0xff]
      %v1548 = vld [vmem:[#allocation2 + $0x78] sm:$0xff]
      %v1549 = vld [vmem:[#allocation2 + $0x80] sm:$0xff]
      %v1550 = vld [vmem:[#allocation2 + $0x88] sm:$0xff]
      %v1551 = vld [vmem:[#allocation2 + $0x90] sm:$0xff]
      %v1552 = vld [vmem:[#allocation2 + $0x98] sm:$0xff]
      %v1553 = vld [vmem:[#allocation2 + $0xa0] sm:$0xff]
      %v1554 = vld [vmem:[#allocation2 + $0xa8] sm:$0xff]
      %v1555 = vld [vmem:[#allocation2 + $0xb0] sm:$0xff]
      %v1556 = vld [vmem:[#allocation2 + $0xb8] sm:$0xff]
      %v1557 = vld [vmem:[#allocation2 + $0xc0] sm:$0xff]
      %v1558 = vld [vmem:[#allocation2 + $0xc8] sm:$0xff]
      %v1559 = vld [vmem:[#allocation2 + $0xd0] sm:$0xff]
      %v1560 = vld [vmem:[#allocation2 + $0xd8] sm:$0xff]
      %v1561 = vld [vmem:[#allocation2 + $0xe0] sm:$0xff]
      %v1562 = vld [vmem:[#allocation2 + $0xe8] sm:$0xff]
      %v1563 = vld [vmem:[#allocation2 + $0xf0] sm:$0xff]
      %v1564 = vld [vmem:[#allocation2 + $0xf8] sm:$0xff]
      %v1565 = vld [vmem:[#allocation2 + $0x100] sm:$0xff]
      %v1566 = vld [vmem:[#allocation2 + $0x108] sm:$0xff]
      %v1567 = vld [vmem:[#allocation2 + $0x110] sm:$0xff]
      %v1568 = vld [vmem:[#allocation2 + $0x118] sm:$0xff]
      %v1569 = vld [vmem:[#allocation2 + $0x120] sm:$0xff]
      %v1570 = vld [vmem:[#allocation2 + $0x128] sm:$0xff]
      %v1571 = vld [vmem:[#allocation2 + $0x130] sm:$0xff]
      %v1572 = vld [vmem:[#allocation2 + $0x138] sm:$0xff]
      %v1573 = vld [vmem:[#allocation2 + $0x140] sm:$0xff]
      %v1574 = vld [vmem:[#allocation2 + $0x148] sm:$0xff]
      %v1575 = vld [vmem:[#allocation2 + $0x150] sm:$0xff]
      %v1576 = vld [vmem:[#allocation2 + $0x158] sm:$0xff]
      %v1577 = vld [vmem:[#allocation2 + $0x160] sm:$0xff]
      %v1578 = vld [vmem:[#allocation2 + $0x168] sm:$0xff]
      %v1579 = vld [vmem:[#allocation2 + $0x170] sm:$0xff]
      %v1580 = vld [vmem:[#allocation2 + $0x178] sm:$0xff]
      %v1581 = vld [vmem:[%s3] sm:$0xf]
      %v1582 = vld [vmem:[%s3 + $0x4] sm:$0xf]
      %v1583 = vld [vmem:[%s3 + $0x8] sm:$0xf]
      %v1584 = vld [vmem:[%s3 + $0xc] sm:$0xf]
      %v1585 = vld [vmem:[%s3 + $0x10] sm:$0xf]
      %v1586 = vld [vmem:[%s3 + $0x14] sm:$0xf]
      %v1587 = vld [vmem:[%s3 + $0x18] sm:$0xf]
      %v1588 = vld [vmem:[%s3 + $0x1c] sm:$0xf]
      %v1589 = vld [vmem:[%s3 + $0x20] sm:$0xf]
      %v1590 = vld [vmem:[%s3 + $0x24] sm:$0xf]
      %v1591 = vld [vmem:[%s3 + $0x28] sm:$0xf]
      %v1592 = vld [vmem:[%s3 + $0x2c] sm:$0xf]
      %v1593 = vld [vmem:[%s3 + $0x30] sm:$0xf]
      %v1594 = vld [vmem:[%s3 + $0x34] sm:$0xf]
      %v1595 = vld [vmem:[%s3 + $0x38] sm:$0xf]
      %v1596 = vld [vmem:[%s3 + $0x3c] sm:$0xf]
      %v1597 = vld [vmem:[%s3 + $0x40] sm:$0xf]
      %v1598 = vld [vmem:[%s3 + $0x44] sm:$0xf]
      %v1599 = vld [vmem:[%s3 + $0x48] sm:$0xf]
      %v1600 = vld [vmem:[%s3 + $0x4c] sm:$0xf]
      %v1601 = vld [vmem:[%s3 + $0x50] sm:$0xf]
      %v1602 = vld [vmem:[%s3 + $0x54] sm:$0xf]
      %v1603 = vld [vmem:[%s3 + $0x58] sm:$0xf]
      %v1604 = vld [vmem:[%s3 + $0x5c] sm:$0xf]
      %v1605 = vld [vmem:[%s3 + $0x60] sm:$0xf]
      %v1606 = vld [vmem:[%s3 + $0x64] sm:$0xf]
      %v1607 = vld [vmem:[%s3 + $0x68] sm:$0xf]
      %v1608 = vld [vmem:[%s3 + $0x6c] sm:$0xf]
      %v1609 = vld [vmem:[%s3 + $0x70] sm:$0xf]
      %v1610 = vld [vmem:[%s3 + $0x74] sm:$0xf]
      %v1611 = vld [vmem:[%s3 + $0x78] sm:$0xf]
      %v1612 = vld [vmem:[%s3 + $0x7c] sm:$0xf]
      %v1613 = vld [vmem:[%s3 + $0x80] sm:$0xf]
      %v1614 = vld [vmem:[%s3 + $0x84] sm:$0xf]
      %v1615 = vld [vmem:[%s3 + $0x88] sm:$0xf]
      %v1616 = vld [vmem:[%s3 + $0x8c] sm:$0xf]
      %v1617 = vld [vmem:[%s3 + $0x90] sm:$0xf]
      %v1618 = vld [vmem:[%s3 + $0x94] sm:$0xf]
      %v1619 = vld [vmem:[%s3 + $0x98] sm:$0xf]
      %v1620 = vld [vmem:[%s3 + $0x9c] sm:$0xf]
      %v1621 = vld [vmem:[%s3 + $0xa0] sm:$0xf]
      %v1622 = vld [vmem:[%s3 + $0xa4] sm:$0xf]
      %v1623 = vld [vmem:[%s3 + $0xa8] sm:$0xf]
      %v1624 = vld [vmem:[%s3 + $0xac] sm:$0xf]
      %v1625 = vld [vmem:[%s3 + $0xb0] sm:$0xf]
      %v1626 = vld [vmem:[%s3 + $0xb4] sm:$0xf]
      %v1627 = vld [vmem:[%s3 + $0xb8] sm:$0xf]
      %v1628 = vld [vmem:[%s3 + $0xbc] sm:$0xf]
      %v1629 = vld [vmem:[%s1452] sm:$0xff]
      %v1630 = vld [vmem:[%s1452 + $0x8] sm:$0xff]
      %v1631 = vld [vmem:[%s1452 + $0x10] sm:$0xff]
      %v1632 = vld [vmem:[%s1452 + $0x18] sm:$0xff]
      %v1633 = vld [vmem:[%s1452 + $0x20] sm:$0xff]
      %v1634 = vld [vmem:[%s1452 + $0x28] sm:$0xff]
      %v1635 = vld [vmem:[%s1452 + $0x30] sm:$0xff]
      %v1636 = vld [vmem:[%s1452 + $0x38] sm:$0xff]
      %v1637 = vld [vmem:[%s1452 + $0x40] sm:$0xff]
      %v1638 = vld [vmem:[%s1452 + $0x48] sm:$0xff]
      %v1639 = vld [vmem:[%s1452 + $0x50] sm:$0xff]
      %v1640 = vld [vmem:[%s1452 + $0x58] sm:$0xff]
      %v1641 = vld [vmem:[%s1452 + $0x60] sm:$0xff]
      %v1642 = vld [vmem:[%s1452 + $0x68] sm:$0xff]
      %v1643 = vld [vmem:[%s1452 + $0x70] sm:$0xff]
      %v1644 = vld [vmem:[%s1452 + $0x78] sm:$0xff]
      %v1645 = vld [vmem:[%s1452 + $0x80] sm:$0xff]
      %v1646 = vld [vmem:[%s1452 + $0x88] sm:$0xff]
      %v1647 = vld [vmem:[%s1452 + $0x90] sm:$0xff]
      %v1648 = vld [vmem:[%s1452 + $0x98] sm:$0xff]
      %v1649 = vld [vmem:[%s1452 + $0xa0] sm:$0xff]
      %v1650 = vld [vmem:[%s1452 + $0xa8] sm:$0xff]
      %v1651 = vld [vmem:[%s1452 + $0xb0] sm:$0xff]
      %v1652 = vld [vmem:[%s1452 + $0xb8] sm:$0xff]
      %v1653 = vld [vmem:[%s1452 + $0xc0] sm:$0xff]
      %v1654 = vld [vmem:[%s1452 + $0xc8] sm:$0xff]
      %v1655 = vld [vmem:[%s1452 + $0xd0] sm:$0xff]
      %v1656 = vld [vmem:[%s1452 + $0xd8] sm:$0xff]
      %v1657 = vld [vmem:[%s1452 + $0xe0] sm:$0xff]
      %v1658 = vld [vmem:[%s1452 + $0xe8] sm:$0xff]
      %v1659 = vld [vmem:[%s1452 + $0xf0] sm:$0xff]
      %v1660 = vld [vmem:[%s1452 + $0xf8] sm:$0xff]
      %v1661 = vld [vmem:[%s1452 + $0x100] sm:$0xff]
      %v1662 = vld [vmem:[%s1452 + $0x108] sm:$0xff]
      %v1663 = vld [vmem:[%s1452 + $0x110] sm:$0xff]
      %v1664 = vld [vmem:[%s1452 + $0x118] sm:$0xff]
      %v1665 = vld [vmem:[%s1452 + $0x120] sm:$0xff]
      %v1666 = vld [vmem:[%s1452 + $0x128] sm:$0xff]
      %v1667 = vld [vmem:[%s1452 + $0x130] sm:$0xff]
      %v1668 = vld [vmem:[%s1452 + $0x138] sm:$0xff]
      %v1669 = vld [vmem:[%s1452 + $0x140] sm:$0xff]
      %v1670 = vld [vmem:[%s1452 + $0x148] sm:$0xff]
      %v1671 = vld [vmem:[%s1452 + $0x150] sm:$0xff]
      %v1672 = vld [vmem:[%s1452 + $0x158] sm:$0xff]
      %v1673 = vld [vmem:[%s1452 + $0x160] sm:$0xff]
      %v1674 = vld [vmem:[%s1452 + $0x168] sm:$0xff]
      %v1675 = vld [vmem:[%s1452 + $0x170] sm:$0xff]
      %v1676 = vld [vmem:[%s1452 + $0x178] sm:$0xff]
      %s1677 = scalar_lea.vmem %s3, 192
      %v1678 = vld [vmem:[%s1677] sm:$0xf]
      %v1679 = vld [vmem:[%s1677 + $0x4] sm:$0xf]
      %v1680 = vld [vmem:[%s1677 + $0x8] sm:$0xf]
      %v1681 = vld [vmem:[%s1677 + $0xc] sm:$0xf]
      %v1682 = vld [vmem:[%s1677 + $0x10] sm:$0xf]
      %v1683 = vld [vmem:[%s1677 + $0x14] sm:$0xf]
      %v1684 = vld [vmem:[%s1677 + $0x18] sm:$0xf]
      %v1685 = vld [vmem:[%s1677 + $0x1c] sm:$0xf]
      %v1686 = vld [vmem:[%s1677 + $0x20] sm:$0xf]
      %v1687 = vld [vmem:[%s1677 + $0x24] sm:$0xf]
      %v1688 = vld [vmem:[%s1677 + $0x28] sm:$0xf]
      %v1689 = vld [vmem:[%s1677 + $0x2c] sm:$0xf]
      %v1690 = vld [vmem:[%s1677 + $0x30] sm:$0xf]
      %v1691 = vld [vmem:[%s1677 + $0x34] sm:$0xf]
      %v1692 = vld [vmem:[%s1677 + $0x38] sm:$0xf]
      %v1693 = vld [vmem:[%s1677 + $0x3c] sm:$0xf]
      %v1694 = vld [vmem:[%s1677 + $0x40] sm:$0xf]
      %v1695 = vld [vmem:[%s1677 + $0x44] sm:$0xf]
      %v1696 = vld [vmem:[%s1677 + $0x48] sm:$0xf]
      %v1697 = vld [vmem:[%s1677 + $0x4c] sm:$0xf]
      %v1698 = vld [vmem:[%s1677 + $0x50] sm:$0xf]
      %v1699 = vld [vmem:[%s1677 + $0x54] sm:$0xf]
      %v1700 = vld [vmem:[%s1677 + $0x58] sm:$0xf]
      %v1701 = vld [vmem:[%s1677 + $0x5c] sm:$0xf]
      %v1702 = vld [vmem:[%s1677 + $0x60] sm:$0xf]
      %v1703 = vld [vmem:[%s1677 + $0x64] sm:$0xf]
      %v1704 = vld [vmem:[%s1677 + $0x68] sm:$0xf]
      %v1705 = vld [vmem:[%s1677 + $0x6c] sm:$0xf]
      %v1706 = vld [vmem:[%s1677 + $0x70] sm:$0xf]
      %v1707 = vld [vmem:[%s1677 + $0x74] sm:$0xf]
      %v1708 = vld [vmem:[%s1677 + $0x78] sm:$0xf]
      %v1709 = vld [vmem:[%s1677 + $0x7c] sm:$0xf]
      %v1710 = vld [vmem:[%s1677 + $0x80] sm:$0xf]
      %v1711 = vld [vmem:[%s1677 + $0x84] sm:$0xf]
      %v1712 = vld [vmem:[%s1677 + $0x88] sm:$0xf]
      %v1713 = vld [vmem:[%s1677 + $0x8c] sm:$0xf]
      %v1714 = vld [vmem:[%s1677 + $0x90] sm:$0xf]
      %v1715 = vld [vmem:[%s1677 + $0x94] sm:$0xf]
      %v1716 = vld [vmem:[%s1677 + $0x98] sm:$0xf]
      %v1717 = vld [vmem:[%s1677 + $0x9c] sm:$0xf]
      %v1718 = vld [vmem:[%s1677 + $0xa0] sm:$0xf]
      %v1719 = vld [vmem:[%s1677 + $0xa4] sm:$0xf]
      %v1720 = vld [vmem:[%s1677 + $0xa8] sm:$0xf]
      %v1721 = vld [vmem:[%s1677 + $0xac] sm:$0xf]
      %v1722 = vld [vmem:[%s1677 + $0xb0] sm:$0xf]
      %v1723 = vld [vmem:[%s1677 + $0xb4] sm:$0xf]
      %v1724 = vld [vmem:[%s1677 + $0xb8] sm:$0xf]
      %v1725 = vld [vmem:[%s1677 + $0xbc] sm:$0xf]
      %v1774 = vunpack.c.l.b16 %v1678
      %v1775 = vunpack.c.l.b16 %v1679
      %v1776 = vunpack.c.l.b16 %v1680
      %v1777 = vunpack.c.l.b16 %v1681
      %v1778 = vunpack.c.l.b16 %v1682
      %v1779 = vunpack.c.l.b16 %v1683
      %v1780 = vunpack.c.l.b16 %v1684
      %v1781 = vunpack.c.l.b16 %v1685
      %v1782 = vunpack.c.l.b16 %v1686
      %v1783 = vunpack.c.l.b16 %v1687
      %v1784 = vunpack.c.l.b16 %v1688
      %v1785 = vunpack.c.l.b16 %v1689
      %v1786 = vunpack.c.l.b16 %v1690
      %v1787 = vunpack.c.l.b16 %v1691
      %v1788 = vunpack.c.l.b16 %v1692
      %v1789 = vunpack.c.l.b16 %v1693
      %v1790 = vunpack.c.l.b16 %v1694
      %v1791 = vunpack.c.l.b16 %v1695
      %v1792 = vunpack.c.l.b16 %v1696
      %v1793 = vunpack.c.l.b16 %v1697
      %v1794 = vunpack.c.l.b16 %v1698
      %v1795 = vunpack.c.l.b16 %v1699
      %v1796 = vunpack.c.l.b16 %v1700
      %v1797 = vunpack.c.l.b16 %v1701
      %v1798 = vunpack.c.l.b16 %v1702
      %v1799 = vunpack.c.l.b16 %v1703
      %v1800 = vunpack.c.l.b16 %v1704
      %v1801 = vunpack.c.l.b16 %v1705
      %v1802 = vunpack.c.l.b16 %v1706
      %v1803 = vunpack.c.l.b16 %v1707
      %v1804 = vunpack.c.l.b16 %v1708
      %v1805 = vunpack.c.l.b16 %v1709
      %v1806 = vunpack.c.l.b16 %v1710
      %v1807 = vunpack.c.l.b16 %v1711
      %v1808 = vunpack.c.l.b16 %v1712
      %v1809 = vunpack.c.l.b16 %v1713
      %v1810 = vunpack.c.l.b16 %v1714
      %v1811 = vunpack.c.l.b16 %v1715
      %v1812 = vunpack.c.l.b16 %v1716
      %v1813 = vunpack.c.l.b16 %v1717
      %v1814 = vunpack.c.l.b16 %v1718
      %v1815 = vunpack.c.l.b16 %v1719
      %v1816 = vunpack.c.l.b16 %v1720
      %v1817 = vunpack.c.l.b16 %v1721
      %v1818 = vunpack.c.l.b16 %v1722
      %v1819 = vunpack.c.l.b16 %v1723
      %v1820 = vunpack.c.l.b16 %v1724
      %v1821 = vunpack.c.l.b16 %v1725
      %v1822 = vpack.c.b16 %v1775, %v1774
      %v1823 = vpack.c.b16 %v1777, %v1776
      %v1824 = vpack.c.b16 %v1779, %v1778
      %v1825 = vpack.c.b16 %v1781, %v1780
      %v1826 = vpack.c.b16 %v1783, %v1782
      %v1827 = vpack.c.b16 %v1785, %v1784
      %v1828 = vpack.c.b16 %v1787, %v1786
      %v1829 = vpack.c.b16 %v1789, %v1788
      %v1830 = vpack.c.b16 %v1791, %v1790
      %v1831 = vpack.c.b16 %v1793, %v1792
      %v1832 = vpack.c.b16 %v1795, %v1794
      %v1833 = vpack.c.b16 %v1797, %v1796
      %v1834 = vpack.c.b16 %v1799, %v1798
      %v1835 = vpack.c.b16 %v1801, %v1800
      %v1836 = vpack.c.b16 %v1803, %v1802
      %v1837 = vpack.c.b16 %v1805, %v1804
      %v1838 = vpack.c.b16 %v1807, %v1806
      %v1839 = vpack.c.b16 %v1809, %v1808
      %v1840 = vpack.c.b16 %v1811, %v1810
      %v1841 = vpack.c.b16 %v1813, %v1812
      %v1842 = vpack.c.b16 %v1815, %v1814
      %v1843 = vpack.c.b16 %v1817, %v1816
      %v1844 = vpack.c.b16 %v1819, %v1818
      %v1845 = vpack.c.b16 %v1821, %v1820
      %1870 = vmatprep.subr.bf16.mxu0 0
      %1871 = vmatpush1.bf16.msra.mxu0 %v1822
      %1872 = vmatprep.subr.bf16.mxu0 0
      %1873 = vmatpush1.bf16.msra.mxu0 %v1823
      %1874 = vmatprep.subr.bf16.mxu0 0
      %1875 = vmatpush1.bf16.msra.mxu0 %v1824
      %1876 = vmatprep.subr.bf16.mxu0 0
      %1877 = vmatpush1.bf16.msra.mxu0 %v1825
      %1878 = vmatprep.subr.bf16.mxu0 0
      %1879 = vmatpush1.bf16.msra.mxu0 %v1826
      %1880 = vmatprep.subr.bf16.mxu0 0
      %1881 = vmatpush1.bf16.msra.mxu0 %v1827
      %1882 = vmatprep.subr.bf16.mxu0 0
      %1883 = vmatpush1.bf16.msra.mxu0 %v1828
      %1884 = vmatprep.subr.bf16.mxu0 0
      %1885 = vmatpush1.bf16.msra.mxu0 %v1829
      %1886 = vmatprep.subr.bf16.mxu0 0
      %1887 = vmatpush1.bf16.msra.mxu0 %v1830
      %1888 = vmatprep.subr.bf16.mxu0 0
      %1889 = vmatpush1.bf16.msra.mxu0 %v1831
      %1890 = vmatprep.subr.bf16.mxu0 0
      %1891 = vmatpush1.bf16.msra.mxu0 %v1832
      %1892 = vmatprep.subr.bf16.mxu0 0
      %1893 = vmatpush1.bf16.msra.mxu0 %v1833
      %1894 = vmatprep.subr.bf16.mxu0 0
      %1895 = vmatpush1.bf16.msra.mxu0 %v1834
      %1896 = vmatprep.subr.bf16.mxu0 0
      %1897 = vmatpush1.bf16.msra.mxu0 %v1835
      %1898 = vmatprep.subr.bf16.mxu0 0
      %1899 = vmatpush1.bf16.msra.mxu0 %v1836
      %1900 = vmatprep.subr.bf16.mxu0 0
      %1901 = vmatpush1.bf16.msra.mxu0 %v1837
      %1902 = vmatprep.mubr.bf16.mxu0 %v1630
      %1903 = vmatmul.mubr.bf16.gmra.mrb[0].mxu0 %v1629
      %v1904 = vpop.f32.mrb[0].mxu0
      %v1905 = vadd.f32 0.0, %v1904
      %v1906 = vpop.f32.mrb[0].mxu0
      %v1907 = vpop.f32.mrb[0].mxu0
      %v1908 = vadd.f32 0.0, %v1907
      %v1909 = vpop.f32.mrb[0].mxu0
      %1910 = vmatprep.mubr.bf16.mxu0 %v1633
      %1911 = vmatmul.mubr.bf16.gmra.mrb[0].mxu0 %v1632
      %v1912 = vpop.f32.mrb[0].mxu0
      %v1913 = vadd.f32 0.0, %v1912
      %v1914 = vpop.f32.mrb[0].mxu0
      %v1915 = vpop.f32.mrb[0].mxu0
      %v1916 = vadd.f32 0.0, %v1915
      %v1917 = vpop.f32.mrb[0].mxu0
      %1918 = vmatprep.mubr.bf16.mxu0 %v1636
      %1919 = vmatmul.mubr.bf16.gmra.mrb[0].mxu0 %v1635
      %v1920 = vpop.f32.mrb[0].mxu0
      %v1921 = vadd.f32 0.0, %v1920
      %v1922 = vpop.f32.mrb[0].mxu0
      %v1923 = vpop.f32.mrb[0].mxu0
      %v1924 = vadd.f32 0.0, %v1923
      %v1925 = vpop.f32.mrb[0].mxu0
      %1926 = vmatprep.mubr.bf16.mxu0 %v1639
      %1927 = vmatmul.mubr.bf16.gmra.mrb[0].mxu0 %v1638
      %v1928 = vpop.f32.mrb[0].mxu0
      %v1929 = vadd.f32 0.0, %v1928
      %v1930 = vpop.f32.mrb[0].mxu0
      %v1931 = vpop.f32.mrb[0].mxu0
      %v1932 = vadd.f32 0.0, %v1931
      %v1933 = vpop.f32.mrb[0].mxu0
      %1934 = vmatprep.mubr.bf16.mxu0 %v1642
      %1935 = vmatmul.mubr.bf16.gmra.mrb[0].mxu0 %v1641
      %v1936 = vpop.f32.mrb[0].mxu0
      %v1937 = vadd.f32 0.0, %v1936
      %v1938 = vpop.f32.mrb[0].mxu0
      %v1939 = vpop.f32.mrb[0].mxu0
      %v1940 = vadd.f32 0.0, %v1939
      %v1941 = vpop.f32.mrb[0].mxu0
      %1942 = vmatprep.mubr.bf16.mxu0 %v1645
      %1943 = vmatmul.mubr.bf16.gmra.mrb[0].mxu0 %v1644
      %v1944 = vpop.f32.mrb[0].mxu0
      %v1945 = vadd.f32 0.0, %v1944
      %v1946 = vpop.f32.mrb[0].mxu0
      %v1947 = vpop.f32.mrb[0].mxu0
      %v1948 = vadd.f32 0.0, %v1947
      %v1949 = vpop.f32.mrb[0].mxu0
      %1950 = vmatprep.mubr.bf16.mxu0 %v1648
      %1951 = vmatmul.mubr.bf16.gmra.mrb[0].mxu0 %v1647
      %v1952 = vpop.f32.mrb[0].mxu0
      %v1953 = vadd.f32 0.0, %v1952
      %v1954 = vpop.f32.mrb[0].mxu0
      %v1955 = vpop.f32.mrb[0].mxu0
      %v1956 = vadd.f32 0.0, %v1955
      %v1957 = vpop.f32.mrb[0].mxu0
      %1958 = vmatprep.mubr.bf16.mxu0 %v1651
      %1959 = vmatmul.mubr.bf16.gmra.mrb[0].mxu0 %v1650
      %v1960 = vpop.f32.mrb[0].mxu0
      %v1961 = vadd.f32 0.0, %v1960
      %v1962 = vpop.f32.mrb[0].mxu0
      %v1963 = vpop.f32.mrb[0].mxu0
      %v1964 = vadd.f32 0.0, %v1963
      %v1965 = vpop.f32.mrb[0].mxu0
      %1966 = vmatprep.mubr.bf16.mxu0 %v1654
      %1967 = vmatmul.mubr.bf16.gmra.mrb[0].mxu0 %v1653
      %v1968 = vpop.f32.mrb[0].mxu0
      %v1969 = vadd.f32 0.0, %v1968
      %v1970 = vpop.f32.mrb[0].mxu0
      %v1971 = vpop.f32.mrb[0].mxu0
      %v1972 = vadd.f32 0.0, %v1971
      %v1973 = vpop.f32.mrb[0].mxu0
      %1974 = vmatprep.mubr.bf16.mxu0 %v1657
      %1975 = vmatmul.mubr.bf16.gmra.mrb[0].mxu0 %v1656
      %v1976 = vpop.f32.mrb[0].mxu0
      %v1977 = vadd.f32 0.0, %v1976
      %v1978 = vpop.f32.mrb[0].mxu0
      %v1979 = vpop.f32.mrb[0].mxu0
      %v1980 = vadd.f32 0.0, %v1979
      %v1981 = vpop.f32.mrb[0].mxu0
      %1982 = vmatprep.mubr.bf16.mxu0 %v1660
      %1983 = vmatmul.mubr.bf16.gmra.mrb[0].mxu0 %v1659
      %v1984 = vpop.f32.mrb[0].mxu0
      %v1985 = vadd.f32 0.0, %v1984
      %v1986 = vpop.f32.mrb[0].mxu0
      %v1987 = vpop.f32.mrb[0].mxu0
      %v1988 = vadd.f32 0.0, %v1987
      %v1989 = vpop.f32.mrb[0].mxu0
      %1990 = vmatprep.mubr.bf16.mxu0 %v1663
      %1991 = vmatmul.mubr.bf16.gmra.mrb[0].mxu0 %v1662
      %v1992 = vpop.f32.mrb[0].mxu0
      %v1993 = vadd.f32 0.0, %v1992
      %v1994 = vpop.f32.mrb[0].mxu0
      %v1995 = vpop.f32.mrb[0].mxu0
      %v1996 = vadd.f32 0.0, %v1995
      %v1997 = vpop.f32.mrb[0].mxu0
      %1998 = vmatprep.mubr.bf16.mxu0 %v1666
      %1999 = vmatmul.mubr.bf16.gmra.mrb[0].mxu0 %v1665
      %v2000 = vpop.f32.mrb[0].mxu0
      %v2001 = vadd.f32 0.0, %v2000
      %v2002 = vpop.f32.mrb[0].mxu0
      %v2003 = vpop.f32.mrb[0].mxu0
      %v2004 = vadd.f32 0.0, %v2003
      %v2005 = vpop.f32.mrb[0].mxu0
      %2006 = vmatprep.mubr.bf16.mxu0 %v1669
      %2007 = vmatmul.mubr.bf16.gmra.mrb[0].mxu0 %v1668
      %v2008 = vpop.f32.mrb[0].mxu0
      %v2009 = vadd.f32 0.0, %v2008
      %v2010 = vpop.f32.mrb[0].mxu0
      %v2011 = vpop.f32.mrb[0].mxu0
      %v2012 = vadd.f32 0.0, %v2011
      %v2013 = vpop.f32.mrb[0].mxu0
      %2014 = vmatprep.mubr.bf16.mxu0 %v1672
      %2015 = vmatmul.mubr.bf16.gmra.mrb[0].mxu0 %v1671
      %v2016 = vpop.f32.mrb[0].mxu0
      %v2017 = vadd.f32 0.0, %v2016
      %v2018 = vpop.f32.mrb[0].mxu0
      %v2019 = vpop.f32.mrb[0].mxu0
      %v2020 = vadd.f32 0.0, %v2019
      %v2021 = vpop.f32.mrb[0].mxu0
      %2022 = vmatprep.mubr.bf16.mxu0 %v1675
      %2023 = vmatmul.mubr.bf16.gmra.mrb[0].mxu0 %v1674
      %v2024 = vpop.f32.mrb[0].mxu0
      %v2025 = vadd.f32 0.0, %v2024
      %v2026 = vpop.f32.mrb[0].mxu0
      %v2027 = vpop.f32.mrb[0].mxu0
      %v2028 = vadd.f32 0.0, %v2027
      %v2029 = vpop.f32.mrb[0].mxu0
      %2030 = vdwg.mxu0
      %2031 = vmatprep.subr.bf16.mxu0 0
      %2032 = vmatpush1.bf16.msra.mxu0 %v1838
      %2033 = vmatprep.subr.bf16.mxu0 0
      %2034 = vmatpush1.bf16.msra.mxu0 %v1839
      %2035 = vmatprep.subr.bf16.mxu0 0
      %2036 = vmatpush1.bf16.msra.mxu0 %v1840
      %2037 = vmatprep.subr.bf16.mxu0 0
      %2038 = vmatpush1.bf16.msra.mxu0 %v1841
      %2039 = vmatprep.subr.bf16.mxu0 0
      %2040 = vmatpush1.bf16.msra.mxu0 %v1842
      %2041 = vmatprep.subr.bf16.mxu0 0
      %2042 = vmatpush1.bf16.msra.mxu0 %v1843
      %2043 = vmatprep.subr.bf16.mxu0 0
      %2044 = vmatpush1.bf16.msra.mxu0 %v1844
      %2045 = vmatprep.subr.bf16.mxu0 0
      %2046 = vmatpush1.bf16.msra.mxu0 %v1845
      %2047 = vmatprep.subr.bf16.mxu0 0
      %2048 = vmatpush1.bf16.msra.mxu0 0
      %2049 = vmatprep.subr.bf16.mxu0 0
      %2050 = vmatpush1.bf16.msra.mxu0 0
      %2051 = vmatprep.subr.bf16.mxu0 0
      %2052 = vmatpush1.bf16.msra.mxu0 0
      %2053 = vmatprep.subr.bf16.mxu0 0
      %2054 = vmatpush1.bf16.msra.mxu0 0
      %2055 = vmatprep.subr.bf16.mxu0 0
      %2056 = vmatpush1.bf16.msra.mxu0 0
      %2057 = vmatprep.subr.bf16.mxu0 0
      %2058 = vmatpush1.bf16.msra.mxu0 0
      %2059 = vmatprep.subr.bf16.mxu0 0
      %2060 = vmatpush1.bf16.msra.mxu0 0
      %2061 = vmatprep.subr.bf16.mxu0 0
      %2062 = vmatpush1.bf16.msra.mxu0 0
      %2063 = vmatprep.mubr.bf16.mxu0 0
      %2064 = vmatmul.mubr.bf16.gmra.mrb[0].mxu0 %v1631
      %v2065 = vpop.f32.mrb[0].mxu0
      %v2066 = vadd.f32 %v1905, %v2065
      %v2067 = vpop.f32.mrb[0].mxu0
      %v2068 = vpop.f32.mrb[0].mxu0
      %v2069 = vadd.f32 %v1908, %v2068
      %v2070 = vpop.f32.mrb[0].mxu0
      %2071 = vmatprep.mubr.bf16.mxu0 0
      %2072 = vmatmul.mubr.bf16.gmra.mrb[0].mxu0 %v1634
      %v2073 = vpop.f32.mrb[0].mxu0
      %v2074 = vadd.f32 %v1913, %v2073
      %v2075 = vpop.f32.mrb[0].mxu0
      %v2076 = vpop.f32.mrb[0].mxu0
      %v2077 = vadd.f32 %v1916, %v2076
      %v2078 = vpop.f32.mrb[0].mxu0
      %2079 = vmatprep.mubr.bf16.mxu0 0
      %2080 = vmatmul.mubr.bf16.gmra.mrb[0].mxu0 %v1637
      %v2081 = vpop.f32.mrb[0].mxu0
      %v2082 = vadd.f32 %v1921, %v2081
      %v2083 = vpop.f32.mrb[0].mxu0
      %v2084 = vpop.f32.mrb[0].mxu0
      %v2085 = vadd.f32 %v1924, %v2084
      %v2086 = vpop.f32.mrb[0].mxu0
      %2087 = vmatprep.mubr.bf16.mxu0 0
      %2088 = vmatmul.mubr.bf16.gmra.mrb[0].mxu0 %v1640
      %v2089 = vpop.f32.mrb[0].mxu0
      %v2090 = vadd.f32 %v1929, %v2089
      %v2091 = vpop.f32.mrb[0].mxu0
      %v2092 = vpop.f32.mrb[0].mxu0
      %v2093 = vadd.f32 %v1932, %v2092
      %v2094 = vpop.f32.mrb[0].mxu0
      %2095 = vmatprep.mubr.bf16.mxu0 0
      %2096 = vmatmul.mubr.bf16.gmra.mrb[0].mxu0 %v1643
      %v2097 = vpop.f32.mrb[0].mxu0
      %v2098 = vadd.f32 %v1937, %v2097
      %v2099 = vpop.f32.mrb[0].mxu0
      %v2100 = vpop.f32.mrb[0].mxu0
      %v2101 = vadd.f32 %v1940, %v2100
      %v2102 = vpop.f32.mrb[0].mxu0
      %2103 = vmatprep.mubr.bf16.mxu0 0
      %2104 = vmatmul.mubr.bf16.gmra.mrb[0].mxu0 %v1646
      %v2105 = vpop.f32.mrb[0].mxu0
      %v2106 = vadd.f32 %v1945, %v2105
      %v2107 = vpop.f32.mrb[0].mxu0
      %v2108 = vpop.f32.mrb[0].mxu0
      %v2109 = vadd.f32 %v1948, %v2108
      %v2110 = vpop.f32.mrb[0].mxu0
      %2111 = vmatprep.mubr.bf16.mxu0 0
      %2112 = vmatmul.mubr.bf16.gmra.mrb[0].mxu0 %v1649
      %v2113 = vpop.f32.mrb[0].mxu0
      %v2114 = vadd.f32 %v1953, %v2113
      %v2115 = vpop.f32.mrb[0].mxu0
      %v2116 = vpop.f32.mrb[0].mxu0
      %v2117 = vadd.f32 %v1956, %v2116
      %v2118 = vpop.f32.mrb[0].mxu0
      %2119 = vmatprep.mubr.bf16.mxu0 0
      %2120 = vmatmul.mubr.bf16.gmra.mrb[0].mxu0 %v1652
      %v2121 = vpop.f32.mrb[0].mxu0
      %v2122 = vadd.f32 %v1961, %v2121
      %v2123 = vpop.f32.mrb[0].mxu0
      %v2124 = vpop.f32.mrb[0].mxu0
      %v2125 = vadd.f32 %v1964, %v2124
      %v2126 = vpop.f32.mrb[0].mxu0
      %2127 = vmatprep.mubr.bf16.mxu0 0
      %2128 = vmatmul.mubr.bf16.gmra.mrb[0].mxu0 %v1655
      %v2129 = vpop.f32.mrb[0].mxu0
      %v2130 = vadd.f32 %v1969, %v2129
      %v2131 = vpop.f32.mrb[0].mxu0
      %v2132 = vpop.f32.mrb[0].mxu0
      %v2133 = vadd.f32 %v1972, %v2132
      %v2134 = vpop.f32.mrb[0].mxu0
      %2135 = vmatprep.mubr.bf16.mxu0 0
      %2136 = vmatmul.mubr.bf16.gmra.mrb[0].mxu0 %v1658
      %v2137 = vpop.f32.mrb[0].mxu0
      %v2138 = vadd.f32 %v1977, %v2137
      %v2139 = vpop.f32.mrb[0].mxu0
      %v2140 = vpop.f32.mrb[0].mxu0
      %v2141 = vadd.f32 %v1980, %v2140
      %v2142 = vpop.f32.mrb[0].mxu0
      %2143 = vmatprep.mubr.bf16.mxu0 0
      %2144 = vmatmul.mubr.bf16.gmra.mrb[0].mxu0 %v1661
      %v2145 = vpop.f32.mrb[0].mxu0
      %v2146 = vadd.f32 %v1985, %v2145
      %v2147 = vpop.f32.mrb[0].mxu0
      %v2148 = vpop.f32.mrb[0].mxu0
      %v2149 = vadd.f32 %v1988, %v2148
      %v2150 = vpop.f32.mrb[0].mxu0
      %2151 = vmatprep.mubr.bf16.mxu0 0
      %2152 = vmatmul.mubr.bf16.gmra.mrb[0].mxu0 %v1664
      %v2153 = vpop.f32.mrb[0].mxu0
      %v2154 = vadd.f32 %v1993, %v2153
      %v2155 = vpop.f32.mrb[0].mxu0
      %v2156 = vpop.f32.mrb[0].mxu0
      %v2157 = vadd.f32 %v1996, %v2156
      %v2158 = vpop.f32.mrb[0].mxu0
      %2159 = vmatprep.mubr.bf16.mxu0 0
      %2160 = vmatmul.mubr.bf16.gmra.mrb[0].mxu0 %v1667
      %v2161 = vpop.f32.mrb[0].mxu0
      %v2162 = vadd.f32 %v2001, %v2161
      %v2163 = vpop.f32.mrb[0].mxu0
      %v2164 = vpop.f32.mrb[0].mxu0
      %v2165 = vadd.f32 %v2004, %v2164
      %v2166 = vpop.f32.mrb[0].mxu0
      %2167 = vmatprep.mubr.bf16.mxu0 0
      %2168 = vmatmul.mubr.bf16.gmra.mrb[0].mxu0 %v1670
      %v2169 = vpop.f32.mrb[0].mxu0
      %v2170 = vadd.f32 %v2009, %v2169
      %v2171 = vpop.f32.mrb[0].mxu0
      %v2172 = vpop.f32.mrb[0].mxu0
      %v2173 = vadd.f32 %v2012, %v2172
      %v2174 = vpop.f32.mrb[0].mxu0
      %2175 = vmatprep.mubr.bf16.mxu0 0
      %2176 = vmatmul.mubr.bf16.gmra.mrb[0].mxu0 %v1673
      %v2177 = vpop.f32.mrb[0].mxu0
      %v2178 = vadd.f32 %v2017, %v2177
      %v2179 = vpop.f32.mrb[0].mxu0
      %v2180 = vpop.f32.mrb[0].mxu0
      %v2181 = vadd.f32 %v2020, %v2180
      %v2182 = vpop.f32.mrb[0].mxu0
      %2183 = vmatprep.mubr.bf16.mxu0 0
      %2184 = vmatmul.mubr.bf16.gmra.mrb[0].mxu0 %v1676
      %v2185 = vpop.f32.mrb[0].mxu0
      %v2186 = vadd.f32 %v2025, %v2185
      %v2187 = vpop.f32.mrb[0].mxu0
      %v2188 = vpop.f32.mrb[0].mxu0
      %v2189 = vadd.f32 %v2028, %v2188
      %v2190 = vpop.f32.mrb[0].mxu0
      %2191 = vdwg.mxu0
      %v2240 = vunpack.c.l.b16 %v1581
      %v2241 = vunpack.c.l.b16 %v1582
      %v2242 = vunpack.c.l.b16 %v1583
      %v2243 = vunpack.c.l.b16 %v1584
      %v2244 = vunpack.c.l.b16 %v1585
      %v2245 = vunpack.c.l.b16 %v1586
      %v2246 = vunpack.c.l.b16 %v1587
      %v2247 = vunpack.c.l.b16 %v1588
      %v2248 = vunpack.c.l.b16 %v1589
      %v2249 = vunpack.c.l.b16 %v1590
      %v2250 = vunpack.c.l.b16 %v1591
      %v2251 = vunpack.c.l.b16 %v1592
      %v2252 = vunpack.c.l.b16 %v1593
      %v2253 = vunpack.c.l.b16 %v1594
      %v2254 = vunpack.c.l.b16 %v1595
      %v2255 = vunpack.c.l.b16 %v1596
      %v2256 = vunpack.c.l.b16 %v1597
      %v2257 = vunpack.c.l.b16 %v1598
      %v2258 = vunpack.c.l.b16 %v1599
      %v2259 = vunpack.c.l.b16 %v1600
      %v2260 = vunpack.c.l.b16 %v1601
      %v2261 = vunpack.c.l.b16 %v1602
      %v2262 = vunpack.c.l.b16 %v1603
      %v2263 = vunpack.c.l.b16 %v1604
      %v2264 = vunpack.c.l.b16 %v1605
      %v2265 = vunpack.c.l.b16 %v1606
      %v2266 = vunpack.c.l.b16 %v1607
      %v2267 = vunpack.c.l.b16 %v1608
      %v2268 = vunpack.c.l.b16 %v1609
      %v2269 = vunpack.c.l.b16 %v1610
      %v2270 = vunpack.c.l.b16 %v1611
      %v2271 = vunpack.c.l.b16 %v1612
      %v2272 = vunpack.c.l.b16 %v1613
      %v2273 = vunpack.c.l.b16 %v1614
      %v2274 = vunpack.c.l.b16 %v1615
      %v2275 = vunpack.c.l.b16 %v1616
      %v2276 = vunpack.c.l.b16 %v1617
      %v2277 = vunpack.c.l.b16 %v1618
      %v2278 = vunpack.c.l.b16 %v1619
      %v2279 = vunpack.c.l.b16 %v1620
      %v2280 = vunpack.c.l.b16 %v1621
      %v2281 = vunpack.c.l.b16 %v1622
      %v2282 = vunpack.c.l.b16 %v1623
      %v2283 = vunpack.c.l.b16 %v1624
      %v2284 = vunpack.c.l.b16 %v1625
      %v2285 = vunpack.c.l.b16 %v1626
      %v2286 = vunpack.c.l.b16 %v1627
      %v2287 = vunpack.c.l.b16 %v1628
      %v2288 = vpack.c.b16 %v2241, %v2240
      %v2289 = vpack.c.b16 %v2243, %v2242
      %v2290 = vpack.c.b16 %v2245, %v2244
      %v2291 = vpack.c.b16 %v2247, %v2246
      %v2292 = vpack.c.b16 %v2249, %v2248
      %v2293 = vpack.c.b16 %v2251, %v2250
      %v2294 = vpack.c.b16 %v2253, %v2252
      %v2295 = vpack.c.b16 %v2255, %v2254
      %v2296 = vpack.c.b16 %v2257, %v2256
      %v2297 = vpack.c.b16 %v2259, %v2258
      %v2298 = vpack.c.b16 %v2261, %v2260
      %v2299 = vpack.c.b16 %v2263, %v2262
      %v2300 = vpack.c.b16 %v2265, %v2264
      %v2301 = vpack.c.b16 %v2267, %v2266
      %v2302 = vpack.c.b16 %v2269, %v2268
      %v2303 = vpack.c.b16 %v2271, %v2270
      %v2304 = vpack.c.b16 %v2273, %v2272
      %v2305 = vpack.c.b16 %v2275, %v2274
      %v2306 = vpack.c.b16 %v2277, %v2276
      %v2307 = vpack.c.b16 %v2279, %v2278
      %v2308 = vpack.c.b16 %v2281, %v2280
      %v2309 = vpack.c.b16 %v2283, %v2282
      %v2310 = vpack.c.b16 %v2285, %v2284
      %v2311 = vpack.c.b16 %v2287, %v2286
      %2336 = vmatprep.subr.bf16.mxu0 0
      %2337 = vmatpush1.bf16.msra.mxu0 %v2288
      %2338 = vmatprep.subr.bf16.mxu0 0
      %2339 = vmatpush1.bf16.msra.mxu0 %v2289
      %2340 = vmatprep.subr.bf16.mxu0 0
      %2341 = vmatpush1.bf16.msra.mxu0 %v2290
      %2342 = vmatprep.subr.bf16.mxu0 0
      %2343 = vmatpush1.bf16.msra.mxu0 %v2291
      %2344 = vmatprep.subr.bf16.mxu0 0
      %2345 = vmatpush1.bf16.msra.mxu0 %v2292
      %2346 = vmatprep.subr.bf16.mxu0 0
      %2347 = vmatpush1.bf16.msra.mxu0 %v2293
      %2348 = vmatprep.subr.bf16.mxu0 0
      %2349 = vmatpush1.bf16.msra.mxu0 %v2294
      %2350 = vmatprep.subr.bf16.mxu0 0
      %2351 = vmatpush1.bf16.msra.mxu0 %v2295
      %2352 = vmatprep.subr.bf16.mxu0 0
      %2353 = vmatpush1.bf16.msra.mxu0 %v2296
      %2354 = vmatprep.subr.bf16.mxu0 0
      %2355 = vmatpush1.bf16.msra.mxu0 %v2297
      %2356 = vmatprep.subr.bf16.mxu0 0
      %2357 = vmatpush1.bf16.msra.mxu0 %v2298
      %2358 = vmatprep.subr.bf16.mxu0 0
      %2359 = vmatpush1.bf16.msra.mxu0 %v2299
      %2360 = vmatprep.subr.bf16.mxu0 0
      %2361 = vmatpush1.bf16.msra.mxu0 %v2300
      %2362 = vmatprep.subr.bf16.mxu0 0
      %2363 = vmatpush1.bf16.msra.mxu0 %v2301
      %2364 = vmatprep.subr.bf16.mxu0 0
      %2365 = vmatpush1.bf16.msra.mxu0 %v2302
      %2366 = vmatprep.subr.bf16.mxu0 0
      %2367 = vmatpush1.bf16.msra.mxu0 %v2303
      %2368 = vmatprep.mubr.bf16.mxu0 %v1534
      %2369 = vmatmul.mubr.bf16.gmra.mrb[0].mxu0 %v1533
      %v2370 = vpop.f32.mrb[0].mxu0
      %v2371 = vadd.f32 %v2066, %v2370
      %v2372 = vpop.f32.mrb[0].mxu0
      %v2373 = vpop.f32.mrb[0].mxu0
      %v2374 = vadd.f32 %v2069, %v2373
      %v2375 = vpop.f32.mrb[0].mxu0
      %2376 = vmatprep.mubr.bf16.mxu0 %v1537
      %2377 = vmatmul.mubr.bf16.gmra.mrb[0].mxu0 %v1536
      %v2378 = vpop.f32.mrb[0].mxu0
      %v2379 = vadd.f32 %v2074, %v2378
      %v2380 = vpop.f32.mrb[0].mxu0
      %v2381 = vpop.f32.mrb[0].mxu0
      %v2382 = vadd.f32 %v2077, %v2381
      %v2383 = vpop.f32.mrb[0].mxu0
      %2384 = vmatprep.mubr.bf16.mxu0 %v1540
      %2385 = vmatmul.mubr.bf16.gmra.mrb[0].mxu0 %v1539
      %v2386 = vpop.f32.mrb[0].mxu0
      %v2387 = vadd.f32 %v2082, %v2386
      %v2388 = vpop.f32.mrb[0].mxu0
      %v2389 = vpop.f32.mrb[0].mxu0
      %v2390 = vadd.f32 %v2085, %v2389
      %v2391 = vpop.f32.mrb[0].mxu0
      %2392 = vmatprep.mubr.bf16.mxu0 %v1543
      %2393 = vmatmul.mubr.bf16.gmra.mrb[0].mxu0 %v1542
      %v2394 = vpop.f32.mrb[0].mxu0
      %v2395 = vadd.f32 %v2090, %v2394
      %v2396 = vpop.f32.mrb[0].mxu0
      %v2397 = vpop.f32.mrb[0].mxu0
      %v2398 = vadd.f32 %v2093, %v2397
      %v2399 = vpop.f32.mrb[0].mxu0
      %2400 = vmatprep.mubr.bf16.mxu0 %v1546
      %2401 = vmatmul.mubr.bf16.gmra.mrb[0].mxu0 %v1545
      %v2402 = vpop.f32.mrb[0].mxu0
      %v2403 = vadd.f32 %v2098, %v2402
      %v2404 = vpop.f32.mrb[0].mxu0
      %v2405 = vpop.f32.mrb[0].mxu0
      %v2406 = vadd.f32 %v2101, %v2405
      %v2407 = vpop.f32.mrb[0].mxu0
      %2408 = vmatprep.mubr.bf16.mxu0 %v1549
      %2409 = vmatmul.mubr.bf16.gmra.mrb[0].mxu0 %v1548
      %v2410 = vpop.f32.mrb[0].mxu0
      %v2411 = vadd.f32 %v2106, %v2410
      %v2412 = vpop.f32.mrb[0].mxu0
      %v2413 = vpop.f32.mrb[0].mxu0
      %v2414 = vadd.f32 %v2109, %v2413
      %v2415 = vpop.f32.mrb[0].mxu0
      %2416 = vmatprep.mubr.bf16.mxu0 %v1552
      %2417 = vmatmul.mubr.bf16.gmra.mrb[0].mxu0 %v1551
      %v2418 = vpop.f32.mrb[0].mxu0
      %v2419 = vadd.f32 %v2114, %v2418
      %v2420 = vpop.f32.mrb[0].mxu0
      %v2421 = vpop.f32.mrb[0].mxu0
      %v2422 = vadd.f32 %v2117, %v2421
      %v2423 = vpop.f32.mrb[0].mxu0
      %2424 = vmatprep.mubr.bf16.mxu0 %v1555
      %2425 = vmatmul.mubr.bf16.gmra.mrb[0].mxu0 %v1554
      %v2426 = vpop.f32.mrb[0].mxu0
      %v2427 = vadd.f32 %v2122, %v2426
      %v2428 = vpop.f32.mrb[0].mxu0
      %v2429 = vpop.f32.mrb[0].mxu0
      %v2430 = vadd.f32 %v2125, %v2429
      %v2431 = vpop.f32.mrb[0].mxu0
      %2432 = vmatprep.mubr.bf16.mxu0 %v1558
      %2433 = vmatmul.mubr.bf16.gmra.mrb[0].mxu0 %v1557
      %v2434 = vpop.f32.mrb[0].mxu0
      %v2435 = vadd.f32 %v2130, %v2434
      %v2436 = vpop.f32.mrb[0].mxu0
      %v2437 = vpop.f32.mrb[0].mxu0
      %v2438 = vadd.f32 %v2133, %v2437
      %v2439 = vpop.f32.mrb[0].mxu0
      %2440 = vmatprep.mubr.bf16.mxu0 %v1561
      %2441 = vmatmul.mubr.bf16.gmra.mrb[0].mxu0 %v1560
      %v2442 = vpop.f32.mrb[0].mxu0
      %v2443 = vadd.f32 %v2138, %v2442
      %v2444 = vpop.f32.mrb[0].mxu0
      %v2445 = vpop.f32.mrb[0].mxu0
      %v2446 = vadd.f32 %v2141, %v2445
      %v2447 = vpop.f32.mrb[0].mxu0
      %2448 = vmatprep.mubr.bf16.mxu0 %v1564
      %2449 = vmatmul.mubr.bf16.gmra.mrb[0].mxu0 %v1563
      %v2450 = vpop.f32.mrb[0].mxu0
      %v2451 = vadd.f32 %v2146, %v2450
      %v2452 = vpop.f32.mrb[0].mxu0
      %v2453 = vpop.f32.mrb[0].mxu0
      %v2454 = vadd.f32 %v2149, %v2453
      %v2455 = vpop.f32.mrb[0].mxu0
      %2456 = vmatprep.mubr.bf16.mxu0 %v1567
      %2457 = vmatmul.mubr.bf16.gmra.mrb[0].mxu0 %v1566
      %v2458 = vpop.f32.mrb[0].mxu0
      %v2459 = vadd.f32 %v2154, %v2458
      %v2460 = vpop.f32.mrb[0].mxu0
      %v2461 = vpop.f32.mrb[0].mxu0
      %v2462 = vadd.f32 %v2157, %v2461
      %v2463 = vpop.f32.mrb[0].mxu0
      %2464 = vmatprep.mubr.bf16.mxu0 %v1570
      %2465 = vmatmul.mubr.bf16.gmra.mrb[0].mxu0 %v1569
      %v2466 = vpop.f32.mrb[0].mxu0
      %v2467 = vadd.f32 %v2162, %v2466
      %v2468 = vpop.f32.mrb[0].mxu0
      %v2469 = vpop.f32.mrb[0].mxu0
      %v2470 = vadd.f32 %v2165, %v2469
      %v2471 = vpop.f32.mrb[0].mxu0
      %2472 = vmatprep.mubr.bf16.mxu0 %v1573
      %2473 = vmatmul.mubr.bf16.gmra.mrb[0].mxu0 %v1572
      %v2474 = vpop.f32.mrb[0].mxu0
      %v2475 = vadd.f32 %v2170, %v2474
      %v2476 = vpop.f32.mrb[0].mxu0
      %v2477 = vpop.f32.mrb[0].mxu0
      %v2478 = vadd.f32 %v2173, %v2477
      %v2479 = vpop.f32.mrb[0].mxu0
      %2480 = vmatprep.mubr.bf16.mxu0 %v1576
      %2481 = vmatmul.mubr.bf16.gmra.mrb[0].mxu0 %v1575
      %v2482 = vpop.f32.mrb[0].mxu0
      %v2483 = vadd.f32 %v2178, %v2482
      %v2484 = vpop.f32.mrb[0].mxu0
      %v2485 = vpop.f32.mrb[0].mxu0
      %v2486 = vadd.f32 %v2181, %v2485
      %v2487 = vpop.f32.mrb[0].mxu0
      %2488 = vmatprep.mubr.bf16.mxu0 %v1579
      %2489 = vmatmul.mubr.bf16.gmra.mrb[0].mxu0 %v1578
      %v2490 = vpop.f32.mrb[0].mxu0
      %v2491 = vadd.f32 %v2186, %v2490
      %v2492 = vpop.f32.mrb[0].mxu0
      %v2493 = vpop.f32.mrb[0].mxu0
      %v2494 = vadd.f32 %v2189, %v2493
      %v2495 = vpop.f32.mrb[0].mxu0
      %2496 = vdwg.mxu0
      %2497 = vmatprep.subr.bf16.mxu0 0
      %2498 = vmatpush1.bf16.msra.mxu0 %v2304
      %2499 = vmatprep.subr.bf16.mxu0 0
      %2500 = vmatpush1.bf16.msra.mxu0 %v2305
      %2501 = vmatprep.subr.bf16.mxu0 0
      %2502 = vmatpush1.bf16.msra.mxu0 %v2306
      %2503 = vmatprep.subr.bf16.mxu0 0
      %2504 = vmatpush1.bf16.msra.mxu0 %v2307
      %2505 = vmatprep.subr.bf16.mxu0 0
      %2506 = vmatpush1.bf16.msra.mxu0 %v2308
      %2507 = vmatprep.subr.bf16.mxu0 0
      %2508 = vmatpush1.bf16.msra.mxu0 %v2309
      %2509 = vmatprep.subr.bf16.mxu0 0
      %2510 = vmatpush1.bf16.msra.mxu0 %v2310
      %2511 = vmatprep.subr.bf16.mxu0 0
      %2512 = vmatpush1.bf16.msra.mxu0 %v2311
      %2513 = vmatprep.subr.bf16.mxu0 0
      %2514 = vmatpush1.bf16.msra.mxu0 0
      %2515 = vmatprep.subr.bf16.mxu0 0
      %2516 = vmatpush1.bf16.msra.mxu0 0
      %2517 = vmatprep.subr.bf16.mxu0 0
      %2518 = vmatpush1.bf16.msra.mxu0 0
      %2519 = vmatprep.subr.bf16.mxu0 0
      %2520 = vmatpush1.bf16.msra.mxu0 0
      %2521 = vmatprep.subr.bf16.mxu0 0
      %2522 = vmatpush1.bf16.msra.mxu0 0
      %2523 = vmatprep.subr.bf16.mxu0 0
      %2524 = vmatpush1.bf16.msra.mxu0 0
      %2525 = vmatprep.subr.bf16.mxu0 0
      %2526 = vmatpush1.bf16.msra.mxu0 0
      %2527 = vmatprep.subr.bf16.mxu0 0
      %2528 = vmatpush1.bf16.msra.mxu0 0
      %2529 = vmatprep.mubr.bf16.mxu0 0
      %2530 = vmatmul.mubr.bf16.gmra.mrb[0].mxu0 %v1535
      %v2531 = vpop.f32.mrb[0].mxu0
      %v2532 = vadd.f32 %v2371, %v2531
      %v2533 = vpop.f32.mrb[0].mxu0
      %v2534 = vpop.f32.mrb[0].mxu0
      %v2535 = vadd.f32 %v2374, %v2534
      %v2536 = vpop.f32.mrb[0].mxu0
      %2537 = vmatprep.mubr.bf16.mxu0 0
      %2538 = vmatmul.mubr.bf16.gmra.mrb[0].mxu0 %v1538
      %v2539 = vpop.f32.mrb[0].mxu0
      %v2540 = vadd.f32 %v2379, %v2539
      %v2541 = vpop.f32.mrb[0].mxu0
      %v2542 = vpop.f32.mrb[0].mxu0
      %v2543 = vadd.f32 %v2382, %v2542
      %v2544 = vpop.f32.mrb[0].mxu0
      %2545 = vmatprep.mubr.bf16.mxu0 0
      %2546 = vmatmul.mubr.bf16.gmra.mrb[0].mxu0 %v1541
      %v2547 = vpop.f32.mrb[0].mxu0
      %v2548 = vadd.f32 %v2387, %v2547
      %v2549 = vpop.f32.mrb[0].mxu0
      %v2550 = vpop.f32.mrb[0].mxu0
      %v2551 = vadd.f32 %v2390, %v2550
      %v2552 = vpop.f32.mrb[0].mxu0
      %2553 = vmatprep.mubr.bf16.mxu0 0
      %2554 = vmatmul.mubr.bf16.gmra.mrb[0].mxu0 %v1544
      %v2555 = vpop.f32.mrb[0].mxu0
      %v2556 = vadd.f32 %v2395, %v2555
      %v2557 = vpop.f32.mrb[0].mxu0
      %v2558 = vpop.f32.mrb[0].mxu0
      %v2559 = vadd.f32 %v2398, %v2558
      %v2560 = vpop.f32.mrb[0].mxu0
      %2561 = vmatprep.mubr.bf16.mxu0 0
      %2562 = vmatmul.mubr.bf16.gmra.mrb[0].mxu0 %v1547
      %v2563 = vpop.f32.mrb[0].mxu0
      %v2564 = vadd.f32 %v2403, %v2563
      %v2565 = vpop.f32.mrb[0].mxu0
      %v2566 = vpop.f32.mrb[0].mxu0
      %v2567 = vadd.f32 %v2406, %v2566
      %v2568 = vpop.f32.mrb[0].mxu0
      %2569 = vmatprep.mubr.bf16.mxu0 0
      %2570 = vmatmul.mubr.bf16.gmra.mrb[0].mxu0 %v1550
      %v2571 = vpop.f32.mrb[0].mxu0
      %v2572 = vadd.f32 %v2411, %v2571
      %v2573 = vpop.f32.mrb[0].mxu0
      %v2574 = vpop.f32.mrb[0].mxu0
      %v2575 = vadd.f32 %v2414, %v2574
      %v2576 = vpop.f32.mrb[0].mxu0
      %2577 = vmatprep.mubr.bf16.mxu0 0
      %2578 = vmatmul.mubr.bf16.gmra.mrb[0].mxu0 %v1553
      %v2579 = vpop.f32.mrb[0].mxu0
      %v2580 = vadd.f32 %v2419, %v2579
      %v2581 = vpop.f32.mrb[0].mxu0
      %v2582 = vpop.f32.mrb[0].mxu0
      %v2583 = vadd.f32 %v2422, %v2582
      %v2584 = vpop.f32.mrb[0].mxu0
      %2585 = vmatprep.mubr.bf16.mxu0 0
      %2586 = vmatmul.mubr.bf16.gmra.mrb[0].mxu0 %v1556
      %v2587 = vpop.f32.mrb[0].mxu0
      %v2588 = vadd.f32 %v2427, %v2587
      %v2589 = vpop.f32.mrb[0].mxu0
      %v2590 = vpop.f32.mrb[0].mxu0
      %v2591 = vadd.f32 %v2430, %v2590
      %v2592 = vpop.f32.mrb[0].mxu0
      %2593 = vmatprep.mubr.bf16.mxu0 0
      %2594 = vmatmul.mubr.bf16.gmra.mrb[0].mxu0 %v1559
      %v2595 = vpop.f32.mrb[0].mxu0
      %v2596 = vadd.f32 %v2435, %v2595
      %v2597 = vpop.f32.mrb[0].mxu0
      %v2598 = vpop.f32.mrb[0].mxu0
      %v2599 = vadd.f32 %v2438, %v2598
      %v2600 = vpop.f32.mrb[0].mxu0
      %2601 = vmatprep.mubr.bf16.mxu0 0
      %2602 = vmatmul.mubr.bf16.gmra.mrb[0].mxu0 %v1562
      %v2603 = vpop.f32.mrb[0].mxu0
      %v2604 = vadd.f32 %v2443, %v2603
      %v2605 = vpop.f32.mrb[0].mxu0
      %v2606 = vpop.f32.mrb[0].mxu0
      %v2607 = vadd.f32 %v2446, %v2606
      %v2608 = vpop.f32.mrb[0].mxu0
      %2609 = vmatprep.mubr.bf16.mxu0 0
      %2610 = vmatmul.mubr.bf16.gmra.mrb[0].mxu0 %v1565
      %v2611 = vpop.f32.mrb[0].mxu0
      %v2612 = vadd.f32 %v2451, %v2611
      %v2613 = vpop.f32.mrb[0].mxu0
      %v2614 = vpop.f32.mrb[0].mxu0
      %v2615 = vadd.f32 %v2454, %v2614
      %v2616 = vpop.f32.mrb[0].mxu0
      %2617 = vmatprep.mubr.bf16.mxu0 0
      %2618 = vmatmul.mubr.bf16.gmra.mrb[0].mxu0 %v1568
      %v2619 = vpop.f32.mrb[0].mxu0
      %v2620 = vadd.f32 %v2459, %v2619
      %v2621 = vpop.f32.mrb[0].mxu0
      %v2622 = vpop.f32.mrb[0].mxu0
      %v2623 = vadd.f32 %v2462, %v2622
      %v2624 = vpop.f32.mrb[0].mxu0
      %2625 = vmatprep.mubr.bf16.mxu0 0
      %2626 = vmatmul.mubr.bf16.gmra.mrb[0].mxu0 %v1571
      %v2627 = vpop.f32.mrb[0].mxu0
      %v2628 = vadd.f32 %v2467, %v2627
      %v2629 = vpop.f32.mrb[0].mxu0
      %v2630 = vpop.f32.mrb[0].mxu0
      %v2631 = vadd.f32 %v2470, %v2630
      %v2632 = vpop.f32.mrb[0].mxu0
      %2633 = vmatprep.mubr.bf16.mxu0 0
      %2634 = vmatmul.mubr.bf16.gmra.mrb[0].mxu0 %v1574
      %v2635 = vpop.f32.mrb[0].mxu0
      %v2636 = vadd.f32 %v2475, %v2635
      %v2637 = vpop.f32.mrb[0].mxu0
      %v2638 = vpop.f32.mrb[0].mxu0
      %v2639 = vadd.f32 %v2478, %v2638
      %v2640 = vpop.f32.mrb[0].mxu0
      %2641 = vmatprep.mubr.bf16.mxu0 0
      %2642 = vmatmul.mubr.bf16.gmra.mrb[0].mxu0 %v1577
      %v2643 = vpop.f32.mrb[0].mxu0
      %v2644 = vadd.f32 %v2483, %v2643
      %v2645 = vpop.f32.mrb[0].mxu0
      %v2646 = vpop.f32.mrb[0].mxu0
      %v2647 = vadd.f32 %v2486, %v2646
      %v2648 = vpop.f32.mrb[0].mxu0
      %2649 = vmatprep.mubr.bf16.mxu0 0
      %2650 = vmatmul.mubr.bf16.gmra.mrb[0].mxu0 %v1580
      %v2651 = vpop.f32.mrb[0].mxu0
      %v2652 = vadd.f32 %v2491, %v2651
      %v2653 = vpop.f32.mrb[0].mxu0
      %v2654 = vpop.f32.mrb[0].mxu0
      %v2655 = vadd.f32 %v2494, %v2654
      %v2656 = vpop.f32.mrb[0].mxu0
      %2657 = vdwg.mxu0
      %s2658 = scalar_lea.vmem [#allocation2], 48
      %v2659 = vld [vmem:[%s2658] sm:$0xff]
      %v2660 = vld [vmem:[%s2658 + $0x8] sm:$0xff]
      %v2661 = vld [vmem:[%s2658 + $0x10] sm:$0xff]
      %v2662 = vld [vmem:[%s2658 + $0x18] sm:$0xff]
      %v2663 = vld [vmem:[%s2658 + $0x20] sm:$0xff]
      %v2664 = vld [vmem:[%s2658 + $0x28] sm:$0xff]
      %v2665 = vld [vmem:[%s2658 + $0x30] sm:$0xff]
      %v2666 = vld [vmem:[%s2658 + $0x38] sm:$0xff]
      %v2667 = vld [vmem:[%s2658 + $0x40] sm:$0xff]
      %v2668 = vld [vmem:[%s2658 + $0x48] sm:$0xff]
      %v2669 = vld [vmem:[%s2658 + $0x50] sm:$0xff]
      %v2670 = vld [vmem:[%s2658 + $0x58] sm:$0xff]
      %v2671 = vld [vmem:[%s2658 + $0x60] sm:$0xff]
      %v2672 = vld [vmem:[%s2658 + $0x68] sm:$0xff]
      %v2673 = vld [vmem:[%s2658 + $0x70] sm:$0xff]
      %v2674 = vld [vmem:[%s2658 + $0x78] sm:$0xff]
      %v2675 = vld [vmem:[%s2658 + $0x80] sm:$0xff]
      %v2676 = vld [vmem:[%s2658 + $0x88] sm:$0xff]
      %v2677 = vld [vmem:[%s2658 + $0x90] sm:$0xff]
      %v2678 = vld [vmem:[%s2658 + $0x98] sm:$0xff]
      %v2679 = vld [vmem:[%s2658 + $0xa0] sm:$0xff]
      %v2680 = vld [vmem:[%s2658 + $0xa8] sm:$0xff]
      %v2681 = vld [vmem:[%s2658 + $0xb0] sm:$0xff]
      %v2682 = vld [vmem:[%s2658 + $0xb8] sm:$0xff]
      %v2683 = vld [vmem:[%s2658 + $0xc0] sm:$0xff]
      %v2684 = vld [vmem:[%s2658 + $0xc8] sm:$0xff]
      %v2685 = vld [vmem:[%s2658 + $0xd0] sm:$0xff]
      %v2686 = vld [vmem:[%s2658 + $0xd8] sm:$0xff]
      %v2687 = vld [vmem:[%s2658 + $0xe0] sm:$0xff]
      %v2688 = vld [vmem:[%s2658 + $0xe8] sm:$0xff]
      %v2689 = vld [vmem:[%s2658 + $0xf0] sm:$0xff]
      %v2690 = vld [vmem:[%s2658 + $0xf8] sm:$0xff]
      %v2691 = vld [vmem:[%s2658 + $0x100] sm:$0xff]
      %v2692 = vld [vmem:[%s2658 + $0x108] sm:$0xff]
      %v2693 = vld [vmem:[%s2658 + $0x110] sm:$0xff]
      %v2694 = vld [vmem:[%s2658 + $0x118] sm:$0xff]
      %v2695 = vld [vmem:[%s2658 + $0x120] sm:$0xff]
      %v2696 = vld [vmem:[%s2658 + $0x128] sm:$0xff]
      %v2697 = vld [vmem:[%s2658 + $0x130] sm:$0xff]
      %v2698 = vld [vmem:[%s2658 + $0x138] sm:$0xff]
      %v2699 = vld [vmem:[%s2658 + $0x140] sm:$0xff]
      %v2700 = vld [vmem:[%s2658 + $0x148] sm:$0xff]
      %v2701 = vld [vmem:[%s2658 + $0x150] sm:$0xff]
      %v2702 = vld [vmem:[%s2658 + $0x158] sm:$0xff]
      %v2703 = vld [vmem:[%s2658 + $0x160] sm:$0xff]
      %v2704 = vld [vmem:[%s2658 + $0x168] sm:$0xff]
      %v2705 = vld [vmem:[%s2658 + $0x170] sm:$0xff]
      %v2706 = vld [vmem:[%s2658 + $0x178] sm:$0xff]
      %s2707 = scalar_lea.vmem %s3, 384
      %v2708 = vld [vmem:[%s2707] sm:$0xf]
      %v2709 = vld [vmem:[%s2707 + $0x4] sm:$0xf]
      %v2710 = vld [vmem:[%s2707 + $0x8] sm:$0xf]
      %v2711 = vld [vmem:[%s2707 + $0xc] sm:$0xf]
      %v2712 = vld [vmem:[%s2707 + $0x10] sm:$0xf]
      %v2713 = vld [vmem:[%s2707 + $0x14] sm:$0xf]
      %v2714 = vld [vmem:[%s2707 + $0x18] sm:$0xf]
      %v2715 = vld [vmem:[%s2707 + $0x1c] sm:$0xf]
      %v2716 = vld [vmem:[%s2707 + $0x20] sm:$0xf]
      %v2717 = vld [vmem:[%s2707 + $0x24] sm:$0xf]
      %v2718 = vld [vmem:[%s2707 + $0x28] sm:$0xf]
      %v2719 = vld [vmem:[%s2707 + $0x2c] sm:$0xf]
      %v2720 = vld [vmem:[%s2707 + $0x30] sm:$0xf]
      %v2721 = vld [vmem:[%s2707 + $0x34] sm:$0xf]
      %v2722 = vld [vmem:[%s2707 + $0x38] sm:$0xf]
      %v2723 = vld [vmem:[%s2707 + $0x3c] sm:$0xf]
      %v2724 = vld [vmem:[%s2707 + $0x40] sm:$0xf]
      %v2725 = vld [vmem:[%s2707 + $0x44] sm:$0xf]
      %v2726 = vld [vmem:[%s2707 + $0x48] sm:$0xf]
      %v2727 = vld [vmem:[%s2707 + $0x4c] sm:$0xf]
      %v2728 = vld [vmem:[%s2707 + $0x50] sm:$0xf]
      %v2729 = vld [vmem:[%s2707 + $0x54] sm:$0xf]
      %v2730 = vld [vmem:[%s2707 + $0x58] sm:$0xf]
      %v2731 = vld [vmem:[%s2707 + $0x5c] sm:$0xf]
      %v2732 = vld [vmem:[%s2707 + $0x60] sm:$0xf]
      %v2733 = vld [vmem:[%s2707 + $0x64] sm:$0xf]
      %v2734 = vld [vmem:[%s2707 + $0x68] sm:$0xf]
      %v2735 = vld [vmem:[%s2707 + $0x6c] sm:$0xf]
      %v2736 = vld [vmem:[%s2707 + $0x70] sm:$0xf]
      %v2737 = vld [vmem:[%s2707 + $0x74] sm:$0xf]
      %v2738 = vld [vmem:[%s2707 + $0x78] sm:$0xf]
      %v2739 = vld [vmem:[%s2707 + $0x7c] sm:$0xf]
      %v2740 = vld [vmem:[%s2707 + $0x80] sm:$0xf]
      %v2741 = vld [vmem:[%s2707 + $0x84] sm:$0xf]
      %v2742 = vld [vmem:[%s2707 + $0x88] sm:$0xf]
      %v2743 = vld [vmem:[%s2707 + $0x8c] sm:$0xf]
      %v2744 = vld [vmem:[%s2707 + $0x90] sm:$0xf]
      %v2745 = vld [vmem:[%s2707 + $0x94] sm:$0xf]
      %v2746 = vld [vmem:[%s2707 + $0x98] sm:$0xf]
      %v2747 = vld [vmem:[%s2707 + $0x9c] sm:$0xf]
      %v2748 = vld [vmem:[%s2707 + $0xa0] sm:$0xf]
      %v2749 = vld [vmem:[%s2707 + $0xa4] sm:$0xf]
      %v2750 = vld [vmem:[%s2707 + $0xa8] sm:$0xf]
      %v2751 = vld [vmem:[%s2707 + $0xac] sm:$0xf]
      %v2752 = vld [vmem:[%s2707 + $0xb0] sm:$0xf]
      %v2753 = vld [vmem:[%s2707 + $0xb4] sm:$0xf]
      %v2754 = vld [vmem:[%s2707 + $0xb8] sm:$0xf]
      %v2755 = vld [vmem:[%s2707 + $0xbc] sm:$0xf]
      %v2804 = vunpack.c.l.b16 %v2708
      %v2805 = vunpack.c.l.b16 %v2709
      %v2806 = vunpack.c.l.b16 %v2710
      %v2807 = vunpack.c.l.b16 %v2711
      %v2808 = vunpack.c.l.b16 %v2712
      %v2809 = vunpack.c.l.b16 %v2713
      %v2810 = vunpack.c.l.b16 %v2714
      %v2811 = vunpack.c.l.b16 %v2715
      %v2812 = vunpack.c.l.b16 %v2716
      %v2813 = vunpack.c.l.b16 %v2717
      %v2814 = vunpack.c.l.b16 %v2718
      %v2815 = vunpack.c.l.b16 %v2719
      %v2816 = vunpack.c.l.b16 %v2720
      %v2817 = vunpack.c.l.b16 %v2721
      %v2818 = vunpack.c.l.b16 %v2722
      %v2819 = vunpack.c.l.b16 %v2723
      %v2820 = vunpack.c.l.b16 %v2724
      %v2821 = vunpack.c.l.b16 %v2725
      %v2822 = vunpack.c.l.b16 %v2726
      %v2823 = vunpack.c.l.b16 %v2727
      %v2824 = vunpack.c.l.b16 %v2728
      %v2825 = vunpack.c.l.b16 %v2729
      %v2826 = vunpack.c.l.b16 %v2730
      %v2827 = vunpack.c.l.b16 %v2731
      %v2828 = vunpack.c.l.b16 %v2732
      %v2829 = vunpack.c.l.b16 %v2733
      %v2830 = vunpack.c.l.b16 %v2734
      %v2831 = vunpack.c.l.b16 %v2735
      %v2832 = vunpack.c.l.b16 %v2736
      %v2833 = vunpack.c.l.b16 %v2737
      %v2834 = vunpack.c.l.b16 %v2738
      %v2835 = vunpack.c.l.b16 %v2739
      %v2836 = vunpack.c.l.b16 %v2740
      %v2837 = vunpack.c.l.b16 %v2741
      %v2838 = vunpack.c.l.b16 %v2742
      %v2839 = vunpack.c.l.b16 %v2743
      %v2840 = vunpack.c.l.b16 %v2744
      %v2841 = vunpack.c.l.b16 %v2745
      %v2842 = vunpack.c.l.b16 %v2746
      %v2843 = vunpack.c.l.b16 %v2747
      %v2844 = vunpack.c.l.b16 %v2748
      %v2845 = vunpack.c.l.b16 %v2749
      %v2846 = vunpack.c.l.b16 %v2750
      %v2847 = vunpack.c.l.b16 %v2751
      %v2848 = vunpack.c.l.b16 %v2752
      %v2849 = vunpack.c.l.b16 %v2753
      %v2850 = vunpack.c.l.b16 %v2754
      %v2851 = vunpack.c.l.b16 %v2755
      %v2852 = vpack.c.b16 %v2805, %v2804
      %v2853 = vpack.c.b16 %v2807, %v2806
      %v2854 = vpack.c.b16 %v2809, %v2808
      %v2855 = vpack.c.b16 %v2811, %v2810
      %v2856 = vpack.c.b16 %v2813, %v2812
      %v2857 = vpack.c.b16 %v2815, %v2814
      %v2858 = vpack.c.b16 %v2817, %v2816
      %v2859 = vpack.c.b16 %v2819, %v2818
      %v2860 = vpack.c.b16 %v2821, %v2820
      %v2861 = vpack.c.b16 %v2823, %v2822
      %v2862 = vpack.c.b16 %v2825, %v2824
      %v2863 = vpack.c.b16 %v2827, %v2826
      %v2864 = vpack.c.b16 %v2829, %v2828
      %v2865 = vpack.c.b16 %v2831, %v2830
      %v2866 = vpack.c.b16 %v2833, %v2832
      %v2867 = vpack.c.b16 %v2835, %v2834
      %v2868 = vpack.c.b16 %v2837, %v2836
      %v2869 = vpack.c.b16 %v2839, %v2838
      %v2870 = vpack.c.b16 %v2841, %v2840
      %v2871 = vpack.c.b16 %v2843, %v2842
      %v2872 = vpack.c.b16 %v2845, %v2844
      %v2873 = vpack.c.b16 %v2847, %v2846
      %v2874 = vpack.c.b16 %v2849, %v2848
      %v2875 = vpack.c.b16 %v2851, %v2850
      %2900 = vmatprep.subr.bf16.mxu0 0
      %2901 = vmatpush1.bf16.msra.mxu0 %v2852
      %2902 = vmatprep.subr.bf16.mxu0 0
      %2903 = vmatpush1.bf16.msra.mxu0 %v2853
      %2904 = vmatprep.subr.bf16.mxu0 0
      %2905 = vmatpush1.bf16.msra.mxu0 %v2854
      %2906 = vmatprep.subr.bf16.mxu0 0
      %2907 = vmatpush1.bf16.msra.mxu0 %v2855
      %2908 = vmatprep.subr.bf16.mxu0 0
      %2909 = vmatpush1.bf16.msra.mxu0 %v2856
      %2910 = vmatprep.subr.bf16.mxu0 0
      %2911 = vmatpush1.bf16.msra.mxu0 %v2857
      %2912 = vmatprep.subr.bf16.mxu0 0
      %2913 = vmatpush1.bf16.msra.mxu0 %v2858
      %2914 = vmatprep.subr.bf16.mxu0 0
      %2915 = vmatpush1.bf16.msra.mxu0 %v2859
      %2916 = vmatprep.subr.bf16.mxu0 0
      %2917 = vmatpush1.bf16.msra.mxu0 %v2860
      %2918 = vmatprep.subr.bf16.mxu0 0
      %2919 = vmatpush1.bf16.msra.mxu0 %v2861
      %2920 = vmatprep.subr.bf16.mxu0 0
      %2921 = vmatpush1.bf16.msra.mxu0 %v2862
      %2922 = vmatprep.subr.bf16.mxu0 0
      %2923 = vmatpush1.bf16.msra.mxu0 %v2863
      %2924 = vmatprep.subr.bf16.mxu0 0
      %2925 = vmatpush1.bf16.msra.mxu0 %v2864
      %2926 = vmatprep.subr.bf16.mxu0 0
      %2927 = vmatpush1.bf16.msra.mxu0 %v2865
      %2928 = vmatprep.subr.bf16.mxu0 0
      %2929 = vmatpush1.bf16.msra.mxu0 %v2866
      %2930 = vmatprep.subr.bf16.mxu0 0
      %2931 = vmatpush1.bf16.msra.mxu0 %v2867
      %2932 = vmatprep.mubr.bf16.mxu0 %v2660
      %2933 = vmatmul.mubr.bf16.gmra.mrb[0].mxu0 %v2659
      %v2934 = vpop.f32.mrb[0].mxu0
      %v2935 = vadd.f32 0.0, %v2934
      %v2936 = vpop.f32.mrb[0].mxu0
      %v2937 = vpop.f32.mrb[0].mxu0
      %v2938 = vadd.f32 0.0, %v2937
      %v2939 = vpop.f32.mrb[0].mxu0
      %2940 = vmatprep.mubr.bf16.mxu0 %v2663
      %2941 = vmatmul.mubr.bf16.gmra.mrb[0].mxu0 %v2662
      %v2942 = vpop.f32.mrb[0].mxu0
      %v2943 = vadd.f32 0.0, %v2942
      %v2944 = vpop.f32.mrb[0].mxu0
      %v2945 = vpop.f32.mrb[0].mxu0
      %v2946 = vadd.f32 0.0, %v2945
      %v2947 = vpop.f32.mrb[0].mxu0
      %2948 = vmatprep.mubr.bf16.mxu0 %v2666
      %2949 = vmatmul.mubr.bf16.gmra.mrb[0].mxu0 %v2665
      %v2950 = vpop.f32.mrb[0].mxu0
      %v2951 = vadd.f32 0.0, %v2950
      %v2952 = vpop.f32.mrb[0].mxu0
      %v2953 = vpop.f32.mrb[0].mxu0
      %v2954 = vadd.f32 0.0, %v2953
      %v2955 = vpop.f32.mrb[0].mxu0
      %2956 = vmatprep.mubr.bf16.mxu0 %v2669
      %2957 = vmatmul.mubr.bf16.gmra.mrb[0].mxu0 %v2668
      %v2958 = vpop.f32.mrb[0].mxu0
      %v2959 = vadd.f32 0.0, %v2958
      %v2960 = vpop.f32.mrb[0].mxu0
      %v2961 = vpop.f32.mrb[0].mxu0
      %v2962 = vadd.f32 0.0, %v2961
      %v2963 = vpop.f32.mrb[0].mxu0
      %2964 = vmatprep.mubr.bf16.mxu0 %v2672
      %2965 = vmatmul.mubr.bf16.gmra.mrb[0].mxu0 %v2671
      %v2966 = vpop.f32.mrb[0].mxu0
      %v2967 = vadd.f32 0.0, %v2966
      %v2968 = vpop.f32.mrb[0].mxu0
      %v2969 = vpop.f32.mrb[0].mxu0
      %v2970 = vadd.f32 0.0, %v2969
      %v2971 = vpop.f32.mrb[0].mxu0
      %2972 = vmatprep.mubr.bf16.mxu0 %v2675
      %2973 = vmatmul.mubr.bf16.gmra.mrb[0].mxu0 %v2674
      %v2974 = vpop.f32.mrb[0].mxu0
      %v2975 = vadd.f32 0.0, %v2974
      %v2976 = vpop.f32.mrb[0].mxu0
      %v2977 = vpop.f32.mrb[0].mxu0
      %v2978 = vadd.f32 0.0, %v2977
      %v2979 = vpop.f32.mrb[0].mxu0
      %2980 = vmatprep.mubr.bf16.mxu0 %v2678
      %2981 = vmatmul.mubr.bf16.gmra.mrb[0].mxu0 %v2677
      %v2982 = vpop.f32.mrb[0].mxu0
      %v2983 = vadd.f32 0.0, %v2982
      %v2984 = vpop.f32.mrb[0].mxu0
      %v2985 = vpop.f32.mrb[0].mxu0
      %v2986 = vadd.f32 0.0, %v2985
      %v2987 = vpop.f32.mrb[0].mxu0
      %2988 = vmatprep.mubr.bf16.mxu0 %v2681
      %2989 = vmatmul.mubr.bf16.gmra.mrb[0].mxu0 %v2680
      %v2990 = vpop.f32.mrb[0].mxu0
      %v2991 = vadd.f32 0.0, %v2990
      %v2992 = vpop.f32.mrb[0].mxu0
      %v2993 = vpop.f32.mrb[0].mxu0
      %v2994 = vadd.f32 0.0, %v2993
      %v2995 = vpop.f32.mrb[0].mxu0
      %2996 = vmatprep.mubr.bf16.mxu0 %v2684
      %2997 = vmatmul.mubr.bf16.gmra.mrb[0].mxu0 %v2683
      %v2998 = vpop.f32.mrb[0].mxu0
      %v2999 = vadd.f32 0.0, %v2998
      %v3000 = vpop.f32.mrb[0].mxu0
      %v3001 = vpop.f32.mrb[0].mxu0
      %v3002 = vadd.f32 0.0, %v3001
      %v3003 = vpop.f32.mrb[0].mxu0
      %3004 = vmatprep.mubr.bf16.mxu0 %v2687
      %3005 = vmatmul.mubr.bf16.gmra.mrb[0].mxu0 %v2686
      %v3006 = vpop.f32.mrb[0].mxu0
      %v3007 = vadd.f32 0.0, %v3006
      %v3008 = vpop.f32.mrb[0].mxu0
      %v3009 = vpop.f32.mrb[0].mxu0
      %v3010 = vadd.f32 0.0, %v3009
      %v3011 = vpop.f32.mrb[0].mxu0
      %3012 = vmatprep.mubr.bf16.mxu0 %v2690
      %3013 = vmatmul.mubr.bf16.gmra.mrb[0].mxu0 %v2689
      %v3014 = vpop.f32.mrb[0].mxu0
      %v3015 = vadd.f32 0.0, %v3014
      %v3016 = vpop.f32.mrb[0].mxu0
      %v3017 = vpop.f32.mrb[0].mxu0
      %v3018 = vadd.f32 0.0, %v3017
      %v3019 = vpop.f32.mrb[0].mxu0
      %3020 = vmatprep.mubr.bf16.mxu0 %v2693
      %3021 = vmatmul.mubr.bf16.gmra.mrb[0].mxu0 %v2692
      %v3022 = vpop.f32.mrb[0].mxu0
      %v3023 = vadd.f32 0.0, %v3022
      %v3024 = vpop.f32.mrb[0].mxu0
      %v3025 = vpop.f32.mrb[0].mxu0
      %v3026 = vadd.f32 0.0, %v3025
      %v3027 = vpop.f32.mrb[0].mxu0
      %3028 = vmatprep.mubr.bf16.mxu0 %v2696
      %3029 = vmatmul.mubr.bf16.gmra.mrb[0].mxu0 %v2695
      %v3030 = vpop.f32.mrb[0].mxu0
      %v3031 = vadd.f32 0.0, %v3030
      %v3032 = vpop.f32.mrb[0].mxu0
      %v3033 = vpop.f32.mrb[0].mxu0
      %v3034 = vadd.f32 0.0, %v3033
      %v3035 = vpop.f32.mrb[0].mxu0
      %3036 = vmatprep.mubr.bf16.mxu0 %v2699
      %3037 = vmatmul.mubr.bf16.gmra.mrb[0].mxu0 %v2698
      %v3038 = vpop.f32.mrb[0].mxu0
      %v3039 = vadd.f32 0.0, %v3038
      %v3040 = vpop.f32.mrb[0].mxu0
      %v3041 = vpop.f32.mrb[0].mxu0
      %v3042 = vadd.f32 0.0, %v3041
      %v3043 = vpop.f32.mrb[0].mxu0
      %3044 = vmatprep.mubr.bf16.mxu0 %v2702
      %3045 = vmatmul.mubr.bf16.gmra.mrb[0].mxu0 %v2701
      %v3046 = vpop.f32.mrb[0].mxu0
      %v3047 = vadd.f32 0.0, %v3046
      %v3048 = vpop.f32.mrb[0].mxu0
      %v3049 = vpop.f32.mrb[0].mxu0
      %v3050 = vadd.f32 0.0, %v3049
      %v3051 = vpop.f32.mrb[0].mxu0
      %3052 = vmatprep.mubr.bf16.mxu0 %v2705
      %3053 = vmatmul.mubr.bf16.gmra.mrb[0].mxu0 %v2704
      %v3054 = vpop.f32.mrb[0].mxu0
      %v3055 = vadd.f32 0.0, %v3054
      %v3056 = vpop.f32.mrb[0].mxu0
      %v3057 = vpop.f32.mrb[0].mxu0
      %v3058 = vadd.f32 0.0, %v3057
      %v3059 = vpop.f32.mrb[0].mxu0
      %3060 = vdwg.mxu0
      %3061 = vmatprep.subr.bf16.mxu0 0
      %3062 = vmatpush1.bf16.msra.mxu0 %v2868
      %3063 = vmatprep.subr.bf16.mxu0 0
      %3064 = vmatpush1.bf16.msra.mxu0 %v2869
      %3065 = vmatprep.subr.bf16.mxu0 0
      %3066 = vmatpush1.bf16.msra.mxu0 %v2870
      %3067 = vmatprep.subr.bf16.mxu0 0
      %3068 = vmatpush1.bf16.msra.mxu0 %v2871
      %3069 = vmatprep.subr.bf16.mxu0 0
      %3070 = vmatpush1.bf16.msra.mxu0 %v2872
      %3071 = vmatprep.subr.bf16.mxu0 0
      %3072 = vmatpush1.bf16.msra.mxu0 %v2873
      %3073 = vmatprep.subr.bf16.mxu0 0
      %3074 = vmatpush1.bf16.msra.mxu0 %v2874
      %3075 = vmatprep.subr.bf16.mxu0 0
      %3076 = vmatpush1.bf16.msra.mxu0 %v2875
      %3077 = vmatprep.subr.bf16.mxu0 0
      %3078 = vmatpush1.bf16.msra.mxu0 0
      %3079 = vmatprep.subr.bf16.mxu0 0
      %3080 = vmatpush1.bf16.msra.mxu0 0
      %3081 = vmatprep.subr.bf16.mxu0 0
      %3082 = vmatpush1.bf16.msra.mxu0 0
      %3083 = vmatprep.subr.bf16.mxu0 0
      %3084 = vmatpush1.bf16.msra.mxu0 0
      %3085 = vmatprep.subr.bf16.mxu0 0
      %3086 = vmatpush1.bf16.msra.mxu0 0
      %3087 = vmatprep.subr.bf16.mxu0 0
      %3088 = vmatpush1.bf16.msra.mxu0 0
      %3089 = vmatprep.subr.bf16.mxu0 0
      %3090 = vmatpush1.bf16.msra.mxu0 0
      %3091 = vmatprep.subr.bf16.mxu0 0
      %3092 = vmatpush1.bf16.msra.mxu0 0
      %3093 = vmatprep.mubr.bf16.mxu0 0
      %3094 = vmatmul.mubr.bf16.gmra.mrb[0].mxu0 %v2661
      %v3095 = vpop.f32.mrb[0].mxu0
      %v3096 = vadd.f32 %v2935, %v3095
      %v3097 = vpop.f32.mrb[0].mxu0
      %v3098 = vpop.f32.mrb[0].mxu0
      %v3099 = vadd.f32 %v2938, %v3098
      %v3100 = vpop.f32.mrb[0].mxu0
      %3101 = vmatprep.mubr.bf16.mxu0 0
      %3102 = vmatmul.mubr.bf16.gmra.mrb[0].mxu0 %v2664
      %v3103 = vpop.f32.mrb[0].mxu0
      %v3104 = vadd.f32 %v2943, %v3103
      %v3105 = vpop.f32.mrb[0].mxu0
      %v3106 = vpop.f32.mrb[0].mxu0
      %v3107 = vadd.f32 %v2946, %v3106
      %v3108 = vpop.f32.mrb[0].mxu0
      %3109 = vmatprep.mubr.bf16.mxu0 0
      %3110 = vmatmul.mubr.bf16.gmra.mrb[0].mxu0 %v2667
      %v3111 = vpop.f32.mrb[0].mxu0
      %v3112 = vadd.f32 %v2951, %v3111
      %v3113 = vpop.f32.mrb[0].mxu0
      %v3114 = vpop.f32.mrb[0].mxu0
      %v3115 = vadd.f32 %v2954, %v3114
      %v3116 = vpop.f32.mrb[0].mxu0
      %3117 = vmatprep.mubr.bf16.mxu0 0
      %3118 = vmatmul.mubr.bf16.gmra.mrb[0].mxu0 %v2670
      %v3119 = vpop.f32.mrb[0].mxu0
      %v3120 = vadd.f32 %v2959, %v3119
      %v3121 = vpop.f32.mrb[0].mxu0
      %v3122 = vpop.f32.mrb[0].mxu0
      %v3123 = vadd.f32 %v2962, %v3122
      %v3124 = vpop.f32.mrb[0].mxu0
      %3125 = vmatprep.mubr.bf16.mxu0 0
      %3126 = vmatmul.mubr.bf16.gmra.mrb[0].mxu0 %v2673
      %v3127 = vpop.f32.mrb[0].mxu0
      %v3128 = vadd.f32 %v2967, %v3127
      %v3129 = vpop.f32.mrb[0].mxu0
      %v3130 = vpop.f32.mrb[0].mxu0
      %v3131 = vadd.f32 %v2970, %v3130
      %v3132 = vpop.f32.mrb[0].mxu0
      %3133 = vmatprep.mubr.bf16.mxu0 0
      %3134 = vmatmul.mubr.bf16.gmra.mrb[0].mxu0 %v2676
      %v3135 = vpop.f32.mrb[0].mxu0
      %v3136 = vadd.f32 %v2975, %v3135
      %v3137 = vpop.f32.mrb[0].mxu0
      %v3138 = vpop.f32.mrb[0].mxu0
      %v3139 = vadd.f32 %v2978, %v3138
      %v3140 = vpop.f32.mrb[0].mxu0
      %3141 = vmatprep.mubr.bf16.mxu0 0
      %3142 = vmatmul.mubr.bf16.gmra.mrb[0].mxu0 %v2679
      %v3143 = vpop.f32.mrb[0].mxu0
      %v3144 = vadd.f32 %v2983, %v3143
      %v3145 = vpop.f32.mrb[0].mxu0
      %v3146 = vpop.f32.mrb[0].mxu0
      %v3147 = vadd.f32 %v2986, %v3146
      %v3148 = vpop.f32.mrb[0].mxu0
      %3149 = vmatprep.mubr.bf16.mxu0 0
      %3150 = vmatmul.mubr.bf16.gmra.mrb[0].mxu0 %v2682
      %v3151 = vpop.f32.mrb[0].mxu0
      %v3152 = vadd.f32 %v2991, %v3151
      %v3153 = vpop.f32.mrb[0].mxu0
      %v3154 = vpop.f32.mrb[0].mxu0
      %v3155 = vadd.f32 %v2994, %v3154
      %v3156 = vpop.f32.mrb[0].mxu0
      %3157 = vmatprep.mubr.bf16.mxu0 0
      %3158 = vmatmul.mubr.bf16.gmra.mrb[0].mxu0 %v2685
      %v3159 = vpop.f32.mrb[0].mxu0
      %v3160 = vadd.f32 %v2999, %v3159
      %v3161 = vpop.f32.mrb[0].mxu0
      %v3162 = vpop.f32.mrb[0].mxu0
      %v3163 = vadd.f32 %v3002, %v3162
      %v3164 = vpop.f32.mrb[0].mxu0
      %3165 = vmatprep.mubr.bf16.mxu0 0
      %3166 = vmatmul.mubr.bf16.gmra.mrb[0].mxu0 %v2688
      %v3167 = vpop.f32.mrb[0].mxu0
      %v3168 = vadd.f32 %v3007, %v3167
      %v3169 = vpop.f32.mrb[0].mxu0
      %v3170 = vpop.f32.mrb[0].mxu0
      %v3171 = vadd.f32 %v3010, %v3170
      %v3172 = vpop.f32.mrb[0].mxu0
      %3173 = vmatprep.mubr.bf16.mxu0 0
      %3174 = vmatmul.mubr.bf16.gmra.mrb[0].mxu0 %v2691
      %v3175 = vpop.f32.mrb[0].mxu0
      %v3176 = vadd.f32 %v3015, %v3175
      %v3177 = vpop.f32.mrb[0].mxu0
      %v3178 = vpop.f32.mrb[0].mxu0
      %v3179 = vadd.f32 %v3018, %v3178
      %v3180 = vpop.f32.mrb[0].mxu0
      %3181 = vmatprep.mubr.bf16.mxu0 0
      %3182 = vmatmul.mubr.bf16.gmra.mrb[0].mxu0 %v2694
      %v3183 = vpop.f32.mrb[0].mxu0
      %v3184 = vadd.f32 %v3023, %v3183
      %v3185 = vpop.f32.mrb[0].mxu0
      %v3186 = vpop.f32.mrb[0].mxu0
      %v3187 = vadd.f32 %v3026, %v3186
      %v3188 = vpop.f32.mrb[0].mxu0
      %3189 = vmatprep.mubr.bf16.mxu0 0
      %3190 = vmatmul.mubr.bf16.gmra.mrb[0].mxu0 %v2697
      %v3191 = vpop.f32.mrb[0].mxu0
      %v3192 = vadd.f32 %v3031, %v3191
      %v3193 = vpop.f32.mrb[0].mxu0
      %v3194 = vpop.f32.mrb[0].mxu0
      %v3195 = vadd.f32 %v3034, %v3194
      %v3196 = vpop.f32.mrb[0].mxu0
      %3197 = vmatprep.mubr.bf16.mxu0 0
      %3198 = vmatmul.mubr.bf16.gmra.mrb[0].mxu0 %v2700
      %v3199 = vpop.f32.mrb[0].mxu0
      %v3200 = vadd.f32 %v3039, %v3199
      %v3201 = vpop.f32.mrb[0].mxu0
      %v3202 = vpop.f32.mrb[0].mxu0
      %v3203 = vadd.f32 %v3042, %v3202
      %v3204 = vpop.f32.mrb[0].mxu0
      %3205 = vmatprep.mubr.bf16.mxu0 0
      %3206 = vmatmul.mubr.bf16.gmra.mrb[0].mxu0 %v2703
      %v3207 = vpop.f32.mrb[0].mxu0
      %v3208 = vadd.f32 %v3047, %v3207
      %v3209 = vpop.f32.mrb[0].mxu0
      %v3210 = vpop.f32.mrb[0].mxu0
      %v3211 = vadd.f32 %v3050, %v3210
      %v3212 = vpop.f32.mrb[0].mxu0
      %3213 = vmatprep.mubr.bf16.mxu0 0
      %3214 = vmatmul.mubr.bf16.gmra.mrb[0].mxu0 %v2706
      %v3215 = vpop.f32.mrb[0].mxu0
      %v3216 = vadd.f32 %v3055, %v3215
      %v3217 = vpop.f32.mrb[0].mxu0
      %v3218 = vpop.f32.mrb[0].mxu0
      %v3219 = vadd.f32 %v3058, %v3218
      %v3220 = vpop.f32.mrb[0].mxu0
      %3221 = vdwg.mxu0
      %v3222 = vadd.f32 %v2532, %v3096
      %v3223 = vadd.f32 %v2535, %v3099
      %v3224 = vadd.f32 %v2540, %v3104
      %v3225 = vadd.f32 %v2543, %v3107
      %v3226 = vadd.f32 %v2548, %v3112
      %v3227 = vadd.f32 %v2551, %v3115
      %v3228 = vadd.f32 %v2556, %v3120
      %v3229 = vadd.f32 %v2559, %v3123
      %v3230 = vadd.f32 %v2564, %v3128
      %v3231 = vadd.f32 %v2567, %v3131
      %v3232 = vadd.f32 %v2572, %v3136
      %v3233 = vadd.f32 %v2575, %v3139
      %v3234 = vadd.f32 %v2580, %v3144
      %v3235 = vadd.f32 %v2583, %v3147
      %v3236 = vadd.f32 %v2588, %v3152
      %v3237 = vadd.f32 %v2591, %v3155
      %v3238 = vadd.f32 %v2596, %v3160
      %v3239 = vadd.f32 %v2599, %v3163
      %v3240 = vadd.f32 %v2604, %v3168
      %v3241 = vadd.f32 %v2607, %v3171
      %v3242 = vadd.f32 %v2612, %v3176
      %v3243 = vadd.f32 %v2615, %v3179
      %v3244 = vadd.f32 %v2620, %v3184
      %v3245 = vadd.f32 %v2623, %v3187
      %v3246 = vadd.f32 %v2628, %v3192
      %v3247 = vadd.f32 %v2631, %v3195
      %v3248 = vadd.f32 %v2636, %v3200
      %v3249 = vadd.f32 %v2639, %v3203
      %v3250 = vadd.f32 %v2644, %v3208
      %v3251 = vadd.f32 %v2647, %v3211
      %v3252 = vadd.f32 %v2652, %v3216
      %v3253 = vadd.f32 %v2655, %v3219
      %v3254 = vld [vmem:[%s4] sm:$0x1]
      %v3256 = vlaneseq
      %v3257 = vshrl.u32 %v3256, 7
      %v3258 = vsub.s32 0, %v3257
      %v3259 = vrot.slane %v3254, %v3258
      %v3261 = vadd.f32 %v3222, %v3259
      %v3262 = vadd.f32 %v3223, %v3259
      %v3263 = vadd.f32 %v3224, %v3259
      %v3264 = vadd.f32 %v3225, %v3259
      %v3265 = vadd.f32 %v3226, %v3259
      %v3266 = vadd.f32 %v3227, %v3259
      %v3267 = vadd.f32 %v3228, %v3259
      %v3268 = vadd.f32 %v3229, %v3259
      %v3269 = vadd.f32 %v3230, %v3259
      %v3270 = vadd.f32 %v3231, %v3259
      %v3271 = vadd.f32 %v3232, %v3259
      %v3272 = vadd.f32 %v3233, %v3259
      %v3273 = vadd.f32 %v3234, %v3259
      %v3274 = vadd.f32 %v3235, %v3259
      %v3275 = vadd.f32 %v3236, %v3259
      %v3276 = vadd.f32 %v3237, %v3259
      %v3277 = vadd.f32 %v3238, %v3259
      %v3278 = vadd.f32 %v3239, %v3259
      %v3279 = vadd.f32 %v3240, %v3259
      %v3280 = vadd.f32 %v3241, %v3259
      %v3281 = vadd.f32 %v3242, %v3259
      %v3282 = vadd.f32 %v3243, %v3259
      %v3283 = vadd.f32 %v3244, %v3259
      %v3284 = vadd.f32 %v3245, %v3259
      %v3285 = vadd.f32 %v3246, %v3259
      %v3286 = vadd.f32 %v3247, %v3259
      %v3287 = vadd.f32 %v3248, %v3259
      %v3288 = vadd.f32 %v3249, %v3259
      %v3289 = vadd.f32 %v3250, %v3259
      %v3290 = vadd.f32 %v3251, %v3259
      %v3291 = vadd.f32 %v3252, %v3259
      %v3292 = vadd.f32 %v3253, %v3259
      %v3293 = vadd.f32 %v3261, 3.0
      %v3294 = vadd.f32 %v3262, 3.0
      %v3295 = vadd.f32 %v3263, 3.0
      %v3296 = vadd.f32 %v3264, 3.0
      %v3297 = vadd.f32 %v3265, 3.0
      %v3298 = vadd.f32 %v3266, 3.0
      %v3299 = vadd.f32 %v3267, 3.0
      %v3300 = vadd.f32 %v3268, 3.0
      %v3301 = vadd.f32 %v3269, 3.0
      %v3302 = vadd.f32 %v3270, 3.0
      %v3303 = vadd.f32 %v3271, 3.0
      %v3304 = vadd.f32 %v3272, 3.0
      %v3305 = vadd.f32 %v3273, 3.0
      %v3306 = vadd.f32 %v3274, 3.0
      %v3307 = vadd.f32 %v3275, 3.0
      %v3308 = vadd.f32 %v3276, 3.0
      %v3309 = vadd.f32 %v3277, 3.0
      %v3310 = vadd.f32 %v3278, 3.0
      %v3311 = vadd.f32 %v3279, 3.0
      %v3312 = vadd.f32 %v3280, 3.0
      %v3313 = vadd.f32 %v3281, 3.0
      %v3314 = vadd.f32 %v3282, 3.0
      %v3315 = vadd.f32 %v3283, 3.0
      %v3316 = vadd.f32 %v3284, 3.0
      %v3317 = vadd.f32 %v3285, 3.0
      %v3318 = vadd.f32 %v3286, 3.0
      %v3319 = vadd.f32 %v3287, 3.0
      %v3320 = vadd.f32 %v3288, 3.0
      %v3321 = vadd.f32 %v3289, 3.0
      %v3322 = vadd.f32 %v3290, 3.0
      %v3323 = vadd.f32 %v3291, 3.0
      %v3324 = vadd.f32 %v3292, 3.0
      %v3325 = vmax.f32 %v3293, 0.0
      %v3326 = vmax.f32 %v3294, 0.0
      %v3327 = vmax.f32 %v3295, 0.0
      %v3328 = vmax.f32 %v3296, 0.0
      %v3329 = vmax.f32 %v3297, 0.0
      %v3330 = vmax.f32 %v3298, 0.0
      %v3331 = vmax.f32 %v3299, 0.0
      %v3332 = vmax.f32 %v3300, 0.0
      %v3333 = vmax.f32 %v3301, 0.0
      %v3334 = vmax.f32 %v3302, 0.0
      %v3335 = vmax.f32 %v3303, 0.0
      %v3336 = vmax.f32 %v3304, 0.0
      %v3337 = vmax.f32 %v3305, 0.0
      %v3338 = vmax.f32 %v3306, 0.0
      %v3339 = vmax.f32 %v3307, 0.0
      %v3340 = vmax.f32 %v3308, 0.0
      %v3341 = vmax.f32 %v3309, 0.0
      %v3342 = vmax.f32 %v3310, 0.0
      %v3343 = vmax.f32 %v3311, 0.0
      %v3344 = vmax.f32 %v3312, 0.0
      %v3345 = vmax.f32 %v3313, 0.0
      %v3346 = vmax.f32 %v3314, 0.0
      %v3347 = vmax.f32 %v3315, 0.0
      %v3348 = vmax.f32 %v3316, 0.0
      %v3349 = vmax.f32 %v3317, 0.0
      %v3350 = vmax.f32 %v3318, 0.0
      %v3351 = vmax.f32 %v3319, 0.0
      %v3352 = vmax.f32 %v3320, 0.0
      %v3353 = vmax.f32 %v3321, 0.0
      %v3354 = vmax.f32 %v3322, 0.0
      %v3355 = vmax.f32 %v3323, 0.0
      %v3356 = vmax.f32 %v3324, 0.0
      %v3357 = vmin.f32 %v3325, 6.0
      %v3358 = vmin.f32 %v3326, 6.0
      %v3359 = vmin.f32 %v3327, 6.0
      %v3360 = vmin.f32 %v3328, 6.0
      %v3361 = vmin.f32 %v3329, 6.0
      %v3362 = vmin.f32 %v3330, 6.0
      %v3363 = vmin.f32 %v3331, 6.0
      %v3364 = vmin.f32 %v3332, 6.0
      %v3365 = vmin.f32 %v3333, 6.0
      %v3366 = vmin.f32 %v3334, 6.0
      %v3367 = vmin.f32 %v3335, 6.0
      %v3368 = vmin.f32 %v3336, 6.0
      %v3369 = vmin.f32 %v3337, 6.0
      %v3370 = vmin.f32 %v3338, 6.0
      %v3371 = vmin.f32 %v3339, 6.0
      %v3372 = vmin.f32 %v3340, 6.0
      %v3373 = vmin.f32 %v3341, 6.0
      %v3374 = vmin.f32 %v3342, 6.0
      %v3375 = vmin.f32 %v3343, 6.0
      %v3376 = vmin.f32 %v3344, 6.0
      %v3377 = vmin.f32 %v3345, 6.0
      %v3378 = vmin.f32 %v3346, 6.0
      %v3379 = vmin.f32 %v3347, 6.0
      %v3380 = vmin.f32 %v3348, 6.0
      %v3381 = vmin.f32 %v3349, 6.0
      %v3382 = vmin.f32 %v3350, 6.0
      %v3383 = vmin.f32 %v3351, 6.0
      %v3384 = vmin.f32 %v3352, 6.0
      %v3385 = vmin.f32 %v3353, 6.0
      %v3386 = vmin.f32 %v3354, 6.0
      %v3387 = vmin.f32 %v3355, 6.0
      %v3388 = vmin.f32 %v3356, 6.0
      %v3389 = vmul.f32 %v3261, %v3357
      %v3390 = vmul.f32 %v3262, %v3358
      %v3391 = vmul.f32 %v3263, %v3359
      %v3392 = vmul.f32 %v3264, %v3360
      %v3393 = vmul.f32 %v3265, %v3361
      %v3394 = vmul.f32 %v3266, %v3362
      %v3395 = vmul.f32 %v3267, %v3363
      %v3396 = vmul.f32 %v3268, %v3364
      %v3397 = vmul.f32 %v3269, %v3365
      %v3398 = vmul.f32 %v3270, %v3366
      %v3399 = vmul.f32 %v3271, %v3367
      %v3400 = vmul.f32 %v3272, %v3368
      %v3401 = vmul.f32 %v3273, %v3369
      %v3402 = vmul.f32 %v3274, %v3370
      %v3403 = vmul.f32 %v3275, %v3371
      %v3404 = vmul.f32 %v3276, %v3372
      %v3405 = vmul.f32 %v3277, %v3373
      %v3406 = vmul.f32 %v3278, %v3374
      %v3407 = vmul.f32 %v3279, %v3375
      %v3408 = vmul.f32 %v3280, %v3376
      %v3409 = vmul.f32 %v3281, %v3377
      %v3410 = vmul.f32 %v3282, %v3378
      %v3411 = vmul.f32 %v3283, %v3379
      %v3412 = vmul.f32 %v3284, %v3380
      %v3413 = vmul.f32 %v3285, %v3381
      %v3414 = vmul.f32 %v3286, %v3382
      %v3415 = vmul.f32 %v3287, %v3383
      %v3416 = vmul.f32 %v3288, %v3384
      %v3417 = vmul.f32 %v3289, %v3385
      %v3418 = vmul.f32 %v3290, %v3386
      %v3419 = vmul.f32 %v3291, %v3387
      %v3420 = vmul.f32 %v3292, %v3388
      %v3421 = vmul.f32 %v3389, 0.16666667
      %v3422 = vmul.f32 %v3390, 0.16666667
      %v3423 = vmul.f32 %v3391, 0.16666667
      %v3424 = vmul.f32 %v3392, 0.16666667
      %v3425 = vmul.f32 %v3393, 0.16666667
      %v3426 = vmul.f32 %v3394, 0.16666667
      %v3427 = vmul.f32 %v3395, 0.16666667
      %v3428 = vmul.f32 %v3396, 0.16666667
      %v3429 = vmul.f32 %v3397, 0.16666667
      %v3430 = vmul.f32 %v3398, 0.16666667
      %v3431 = vmul.f32 %v3399, 0.16666667
      %v3432 = vmul.f32 %v3400, 0.16666667
      %v3433 = vmul.f32 %v3401, 0.16666667
      %v3434 = vmul.f32 %v3402, 0.16666667
      %v3435 = vmul.f32 %v3403, 0.16666667
      %v3436 = vmul.f32 %v3404, 0.16666667
      %v3437 = vmul.f32 %v3405, 0.16666667
      %v3438 = vmul.f32 %v3406, 0.16666667
      %v3439 = vmul.f32 %v3407, 0.16666667
      %v3440 = vmul.f32 %v3408, 0.16666667
      %v3441 = vmul.f32 %v3409, 0.16666667
      %v3442 = vmul.f32 %v3410, 0.16666667
      %v3443 = vmul.f32 %v3411, 0.16666667
      %v3444 = vmul.f32 %v3412, 0.16666667
      %v3445 = vmul.f32 %v3413, 0.16666667
      %v3446 = vmul.f32 %v3414, 0.16666667
      %v3447 = vmul.f32 %v3415, 0.16666667
      %v3448 = vmul.f32 %v3416, 0.16666667
      %v3449 = vmul.f32 %v3417, 0.16666667
      %v3450 = vmul.f32 %v3418, 0.16666667
      %v3451 = vmul.f32 %v3419, 0.16666667
      %v3452 = vmul.f32 %v3420, 0.16666667
      %v3453 = vld [vmem:[%s219] sm:$0xff]
      %v3454 = vld [vmem:[%s219 + $0x8] sm:$0xff]
      %v3455 = vld [vmem:[%s219 + $0x10] sm:$0xff]
      %v3456 = vld [vmem:[%s219 + $0x18] sm:$0xff]
      %v3457 = vld [vmem:[%s219 + $0x20] sm:$0xff]
      %v3458 = vld [vmem:[%s219 + $0x28] sm:$0xff]
      %v3459 = vld [vmem:[%s219 + $0x30] sm:$0xff]
      %v3460 = vld [vmem:[%s219 + $0x38] sm:$0xff]
      %v3461 = vld [vmem:[%s219 + $0x40] sm:$0xff]
      %v3462 = vld [vmem:[%s219 + $0x48] sm:$0xff]
      %v3463 = vld [vmem:[%s219 + $0x50] sm:$0xff]
      %v3464 = vld [vmem:[%s219 + $0x58] sm:$0xff]
      %v3465 = vld [vmem:[%s219 + $0x60] sm:$0xff]
      %v3466 = vld [vmem:[%s219 + $0x68] sm:$0xff]
      %v3467 = vld [vmem:[%s219 + $0x70] sm:$0xff]
      %v3468 = vld [vmem:[%s219 + $0x78] sm:$0xff]
      %v3469 = vld [vmem:[%s219 + $0x80] sm:$0xff]
      %v3470 = vld [vmem:[%s219 + $0x88] sm:$0xff]
      %v3471 = vld [vmem:[%s219 + $0x90] sm:$0xff]
      %v3472 = vld [vmem:[%s219 + $0x98] sm:$0xff]
      %v3473 = vld [vmem:[%s219 + $0xa0] sm:$0xff]
      %v3474 = vld [vmem:[%s219 + $0xa8] sm:$0xff]
      %v3475 = vld [vmem:[%s219 + $0xb0] sm:$0xff]
      %v3476 = vld [vmem:[%s219 + $0xb8] sm:$0xff]
      %v3477 = vld [vmem:[%s219 + $0xc0] sm:$0xff]
      %v3478 = vld [vmem:[%s219 + $0xc8] sm:$0xff]
      %v3479 = vld [vmem:[%s219 + $0xd0] sm:$0xff]
      %v3480 = vld [vmem:[%s219 + $0xd8] sm:$0xff]
      %v3481 = vld [vmem:[%s219 + $0xe0] sm:$0xff]
      %v3482 = vld [vmem:[%s219 + $0xe8] sm:$0xff]
      %v3483 = vld [vmem:[%s219 + $0xf0] sm:$0xff]
      %v3484 = vld [vmem:[%s219 + $0xf8] sm:$0xff]
      %v3485 = vadd.f32 %v3421, %v3453
      %v3486 = vadd.f32 %v3422, %v3454
      %v3487 = vadd.f32 %v3423, %v3455
      %v3488 = vadd.f32 %v3424, %v3456
      %v3489 = vadd.f32 %v3425, %v3457
      %v3490 = vadd.f32 %v3426, %v3458
      %v3491 = vadd.f32 %v3427, %v3459
      %v3492 = vadd.f32 %v3428, %v3460
      %v3493 = vadd.f32 %v3429, %v3461
      %v3494 = vadd.f32 %v3430, %v3462
      %v3495 = vadd.f32 %v3431, %v3463
      %v3496 = vadd.f32 %v3432, %v3464
      %v3497 = vadd.f32 %v3433, %v3465
      %v3498 = vadd.f32 %v3434, %v3466
      %v3499 = vadd.f32 %v3435, %v3467
      %v3500 = vadd.f32 %v3436, %v3468
      %v3501 = vadd.f32 %v3437, %v3469
      %v3502 = vadd.f32 %v3438, %v3470
      %v3503 = vadd.f32 %v3439, %v3471
      %v3504 = vadd.f32 %v3440, %v3472
      %v3505 = vadd.f32 %v3441, %v3473
      %v3506 = vadd.f32 %v3442, %v3474
      %v3507 = vadd.f32 %v3443, %v3475
      %v3508 = vadd.f32 %v3444, %v3476
      %v3509 = vadd.f32 %v3445, %v3477
      %v3510 = vadd.f32 %v3446, %v3478
      %v3511 = vadd.f32 %v3447, %v3479
      %v3512 = vadd.f32 %v3448, %v3480
      %v3513 = vadd.f32 %v3449, %v3481
      %v3514 = vadd.f32 %v3450, %v3482
      %v3515 = vadd.f32 %v3451, %v3483
      %v3516 = vadd.f32 %v3452, %v3484
      %3517 = vst.msk [vmem:[%s224] sm:$0xff] %vm289, %v3485
      %3518 = vst.msk [vmem:[%s224 + $0x8] sm:$0xff] %vm289, %v3486
      %3519 = vst.msk [vmem:[%s224 + $0x10] sm:$0xff] %vm289, %v3487
      %3520 = vst.msk [vmem:[%s224 + $0x18] sm:$0xff] %vm289, %v3488
      %3521 = vst.msk [vmem:[%s224 + $0x20] sm:$0xff] %vm289, %v3489
      %3522 = vst.msk [vmem:[%s224 + $0x28] sm:$0xff] %vm289, %v3490
      %3523 = vst.msk [vmem:[%s224 + $0x30] sm:$0xff] %vm289, %v3491
      %3524 = vst.msk [vmem:[%s224 + $0x38] sm:$0xff] %vm289, %v3492
      %3525 = vst.msk [vmem:[%s224 + $0x40] sm:$0xff] %vm289, %v3493
      %3526 = vst.msk [vmem:[%s224 + $0x48] sm:$0xff] %vm289, %v3494
      %3527 = vst.msk [vmem:[%s224 + $0x50] sm:$0xff] %vm289, %v3495
      %3528 = vst.msk [vmem:[%s224 + $0x58] sm:$0xff] %vm289, %v3496
      %3529 = vst.msk [vmem:[%s224 + $0x60] sm:$0xff] %vm289, %v3497
      %3530 = vst.msk [vmem:[%s224 + $0x68] sm:$0xff] %vm289, %v3498
      %3531 = vst.msk [vmem:[%s224 + $0x70] sm:$0xff] %vm289, %v3499
      %3532 = vst.msk [vmem:[%s224 + $0x78] sm:$0xff] %vm289, %v3500
      %3533 = vst.msk [vmem:[%s224 + $0x80] sm:$0xff] %vm289, %v3501
      %3534 = vst.msk [vmem:[%s224 + $0x88] sm:$0xff] %vm289, %v3502
      %3535 = vst.msk [vmem:[%s224 + $0x90] sm:$0xff] %vm289, %v3503
      %3536 = vst.msk [vmem:[%s224 + $0x98] sm:$0xff] %vm289, %v3504
      %3537 = vst.msk [vmem:[%s224 + $0xa0] sm:$0xff] %vm289, %v3505
      %3538 = vst.msk [vmem:[%s224 + $0xa8] sm:$0xff] %vm289, %v3506
      %3539 = vst.msk [vmem:[%s224 + $0xb0] sm:$0xff] %vm289, %v3507
      %3540 = vst.msk [vmem:[%s224 + $0xb8] sm:$0xff] %vm289, %v3508
      %3541 = vst.msk [vmem:[%s224 + $0xc0] sm:$0xff] %vm289, %v3509
      %3542 = vst.msk [vmem:[%s224 + $0xc8] sm:$0xff] %vm289, %v3510
      %3543 = vst.msk [vmem:[%s224 + $0xd0] sm:$0xff] %vm289, %v3511
      %3544 = vst.msk [vmem:[%s224 + $0xd8] sm:$0xff] %vm289, %v3512
      %3545 = vst.msk [vmem:[%s224 + $0xe0] sm:$0xff] %vm289, %v3513
      %3546 = vst.msk [vmem:[%s224 + $0xe8] sm:$0xff] %vm289, %v3514
      %3547 = vst.msk [vmem:[%s224 + $0xf0] sm:$0xff] %vm289, %v3515
      %3548 = vst.msk [vmem:[%s224 + $0xf8] sm:$0xff] %vm289, %v3516
      %p3549 = scmp.lt.s32.totalorder %s16, 1
      %s3550 = scalar_select %p3549, %s16, 1
      %s3551 = smul.addr %s3550, 32
      %s3552 = smul.addr %s3551, 8
      %s3553 = scalar_lea.vmem %s5, %s3552
      // Predicated region
      $region41: #{tpu_custom_call.1} parent=39 // pred_check
        %p3554 = pneg %p144
      $region42: #{tpu_custom_call.1} parent=39 // pred_check_branch
        %3556 = sbr.rel (%p3554) target = $region44
      $region43: #{tpu_custom_call.1} parent=39 // pred_region
        _
      $region44: #{tpu_custom_call.1} parent=39 // pred_fallthru
        _
    $region40: #{tpu_custom_call.1} parent=5 // pred_fallthru
      _
    %p3557 = scmp.le.s32.totalorder 2, %s11
    // Predicated region
    $region45: #{tpu_custom_call.1} parent=5 // pred_check
      %p3558 = pneg %p3557
    $region46: #{tpu_custom_call.1} parent=5 // pred_check_branch
      %3560 = sbr.rel (%p3558) target = $region48
    $region47: #{tpu_custom_call.1} parent=5 // pred_region
      %s3561 = ssub.s32 %s11, 2
      // Predicated region
      $region49: #{tpu_custom_call.1} parent=47 // pred_check
        %p3562 = pneg %p150
      $region50: #{tpu_custom_call.1} parent=47 // pred_check_branch
        %3564 = sbr.rel (%p3562) target = $region52
      $region51: #{tpu_custom_call.1} parent=47 // pred_region
        %p3565 = scmp.lt.s32.totalorder %s17, 1
        %s3566 = scalar_select %p3565, %s17, 1
        %s3567 = smul.addr %s3566, 32
        %s3568 = smul.addr %s3567, 8
        %s3569 = scalar_lea.vmem %s5, %s3568
      $region52: #{tpu_custom_call.1} parent=47 // pred_fallthru
        _
    $region48: #{tpu_custom_call.1} parent=5 // pred_fallthru
      _
  $region6: #{tpu_custom_call.1} parent=0 // loop_footer
    %s15 = sadd.s32 1, %s11
  $region7: #{tpu_custom_call.1} parent=0 // loop_footer_branch
    %10 = sbr.rel target = $region3
  $region8: #{tpu_custom_call.1} parent=0 // loop_exit
    _

</llo_original>
